<compile_context>
chip_gen: v7x
topology: tpu7x:2x2x1
jax: 0.10.0
libtpu: 0.0.40
codegen_flags: <defaults>
</compile_context>

<pallas_src>
import math
from functools import partial

import jax
import jax.numpy as jnp
import numpy as np
from jax.experimental import pallas as pl
from jax.experimental.pallas import tpu as pltpu


# ----------------------------- Pallas kernel -------------------------------

def fused_decoder_kernel(*refs, num_layers, num_units, max_diffusion_step):
    """All DCGRU layers + projection for one batch tile, fully fused.

    refs layout (in order):
      x_ref    : (TB, N, in0)          decoder input for this batch tile
      h_ref    : (L, TB, N, U)         previous hidden states (all layers)
      adj_ref  : (N, N)                support / adjacency matrix
      per layer l (5 refs each):
        w_x    : (K1, in_l, 3U)        [gate | candidate] weights, x rows
        w_ru_h : (K1, U,    2U)        gate weights, state rows
        w_c_h  : (K1, U,    U)         candidate weights, state rows
        b_ru   : (1, 2U)
        b_c    : (1, U)
      proj_w   : (U, out_dim)
      proj_b   : (1, out_dim)
      out_ref  : (TB, N, out_dim)      projected output
      hnew_ref : (L, TB, N, U)         new hidden states
    """
    K1 = max_diffusion_step + 1
    U = num_units
    x_ref, h_ref, adj_ref = refs[0], refs[1], refs[2]
    p = 3
    layer_refs = []
    for _ in range(num_layers):
        layer_refs.append(refs[p:p + 5])
        p += 5
    proj_w_ref, proj_b_ref = refs[p], refs[p + 1]
    out_ref, hnew_ref = refs[p + 2], refs[p + 3]

    adj = adj_ref[...].astype(jnp.float32)           # (N, N)

    def diffuse(v):
        """Chebyshev diffusion terms of v (TB, N, D) -> list of K1 tensors."""
        mats = [v]
        if max_diffusion_step >= 1:
            v1 = jnp.einsum("nm,bmd->bnd", adj, v,
                            preferred_element_type=jnp.float32)
            mats.append(v1)
            vk_1, vk_2 = v1, v
            for _ in range(2, max_diffusion_step + 1):
                v2 = 2.0 * jnp.einsum("nm,bmd->bnd", adj, vk_1,
                                      preferred_element_type=jnp.float32) - vk_2
                mats.append(v2)
                vk_1, vk_2 = v2, vk_1
        return mats

    def project(mats, w_ref):
        """sum_k mats[k] @ w_ref[k] ; w_ref: (K1, D, out)."""
        acc = jnp.einsum("bnd,do->bno", mats[0], w_ref[0],
                         preferred_element_type=jnp.float32)
        for k in range(1, K1):
            acc = acc + jnp.einsum("bnd,do->bno", mats[k], w_ref[k],
                                   preferred_element_type=jnp.float32)
        return acc

    out = x_ref[...].astype(jnp.float32)              # (TB, N, in0)
    for l in range(num_layers):
        w_x, w_ru_h, w_c_h, b_ru, b_c = layer_refs[l]
        h = h_ref[l].astype(jnp.float32)               # (TB, N, U)

        # x-diffusion computed once; a single fused projection produces both
        # the gate (2U) and candidate (U) x-contributions.
        x_mats = diffuse(out)
        xp = project(x_mats, w_x)                      # (TB, N, 3U)
        x_ru = xp[..., :2 * U]                         # (TB, N, 2U)
        x_c = xp[..., 2 * U:]                          # (TB, N, U)

        # gate gconv: state part uses h
        h_mats = diffuse(h)
        h_ru = project(h_mats, w_ru_h)                 # (TB, N, 2U)
        value = jax.nn.sigmoid(x_ru + h_ru + b_ru[...])
        r = value[..., :U]
        u = value[..., U:]

        # candidate gconv: state part uses r*h
        rh_mats = diffuse(r * h)
        h_c = project(rh_mats, w_c_h)                  # (TB, N, U)
        c = jnp.tanh(x_c + h_c + b_c[...])

        h_new = u * h + (1.0 - u) * c                  # (TB, N, U)
        hnew_ref[l] = h_new.astype(hnew_ref.dtype)
        out = h_new

    # projection epilogue (fused; no separate pallas_call)
    proj = jnp.einsum("bnu,uo->bno", out, proj_w_ref[...],
                      preferred_element_type=jnp.float32) + proj_b_ref[...]
    out_ref[...] = proj.astype(out_ref.dtype)


# ------------------------------ JAX wrapper ---------------------------------

def _split_gconv_weight(w, in_dim, num_units, K1):
    """Permute PyTorch-layout gconv weight rows (d-major, k-minor) into
    per-diffusion-step blocks, split into x rows vs state rows."""
    D = in_dim + num_units
    out = w.shape[1]
    w3 = w.reshape(D, K1, out)                         # row f = d*K1 + k
    w_x = jnp.transpose(w3[:in_dim], (1, 0, 2))        # (K1, in_dim, out)
    w_h = jnp.transpose(w3[in_dim:], (1, 0, 2))        # (K1, U, out)
    return w_x, w_h


def _pick_batch_tile(B):
    """Tile that divides B and (when possible) gives >=2 grid tiles so the
    'parallel' axis can shard across TensorCores."""
    for tb in (8, 4, 2, 1):
        if B % tb == 0 and B // tb >= 2:
            return tb
    return B


def decoder_forward(params, inputs, adj, hidden_state, *, num_nodes, rnn_units,
                    output_dim, max_diffusion_step):
    """Mirrors DecoderModel.forward.

    inputs       : (B, num_nodes * output_dim)
    adj          : (num_nodes, num_nodes)
    hidden_state : (num_layers, B, num_nodes * rnn_units)
    returns (output (B, num_nodes * output_dim),
             new_hidden (num_layers, B, num_nodes * rnn_units))
    """
    B = inputs.shape[0]
    L = len(params["layers"])
    K1 = max_diffusion_step + 1

    x = inputs.reshape(B, num_nodes, output_dim)
    h = hidden_state.reshape(L, B, num_nodes, rnn_units)

    # Prepare permuted / split / fused weights (cheap XLA ops in the wrapper).
    weight_args = []
    for li, lp in enumerate(params["layers"]):
        in_dim = output_dim if li == 0 else rnn_units
        w_ru_x, w_ru_h = _split_gconv_weight(lp["w_ru"], in_dim, rnn_units, K1)
        w_c_x, w_c_h = _split_gconv_weight(lp["w_c"], in_dim, rnn_units, K1)
        # Fuse the gate + candidate x-weights: one matmul per diffusion step.
        w_x = jnp.concatenate([w_ru_x, w_c_x], axis=-1)   # (K1, in_dim, 3U)
        weight_args += [w_x, w_ru_h, w_c_h, lp["b_ru"], lp["b_c"]]
    weight_args += [params["proj_w"], params["proj_b"]]

    TB = _pick_batch_tile(B)
    grid = (B // TB,)

    in_specs = [
        pl.BlockSpec((TB, num_nodes, output_dim), lambda i: (i, 0, 0)),
        pl.BlockSpec((L, TB, num_nodes, rnn_units), lambda i: (0, i, 0, 0)),
        pl.BlockSpec((num_nodes, num_nodes), lambda i: (0, 0)),
    ]
    for w in weight_args:
        in_specs.append(
            pl.BlockSpec(w.shape, (lambda i, _nd=w.ndim: (0,) * _nd)))

    out_specs = [
        pl.BlockSpec((TB, num_nodes, output_dim), lambda i: (i, 0, 0)),
        pl.BlockSpec((L, TB, num_nodes, rnn_units), lambda i: (0, i, 0, 0)),
    ]
    out_shape = [
        jax.ShapeDtypeStruct((B, num_nodes, output_dim), jnp.float32),
        jax.ShapeDtypeStruct((L, B, num_nodes, rnn_units), jnp.float32),
    ]

    kernel = partial(fused_decoder_kernel, num_layers=L, num_units=rnn_units,
                     max_diffusion_step=max_diffusion_step)

    out3, hnew4 = pl.pallas_call(
        kernel,
        grid=grid,
        in_specs=in_specs,
        out_specs=out_specs,
        out_shape=out_shape,
        compiler_params=pltpu.CompilerParams(
            dimension_semantics=("parallel",)),
    )(x, h, adj, *weight_args)

    # TODO(synk): for production configs consider padding U / 2U / out_dim to
    # lane-dense multiples of 128 and bf16 MXU inputs on v6e/v7x.
    return (out3.reshape(B, num_nodes * output_dim),
            hnew4.reshape(L, B, num_nodes * rnn_units))


# --------------------------- pure-JAX reference ------------------------------

def _ref_gconv(x, state, adj, w, b, K):
    B, N, _ = x.shape
    xs = jnp.concatenate([x, state], axis=-1)
    D = xs.shape[-1]
    x0 = xs.transpose(1, 0, 2).reshape(N, B * D)
    mats = [x0]
    if K >= 1:
        x1 = adj @ x0
        mats.append(x1)
        xk_1, xk_2 = x1, x0
        for _ in range(2, K + 1):
            x2 = 2.0 * (adj @ xk_1) - xk_2
            mats.append(x2)
            xk_1, xk_2 = x2, xk_1
    st = jnp.stack(mats, 0).reshape(K + 1, N, B, D).transpose(2, 1, 3, 0)
    return (st.reshape(B * N, D * (K + 1)) @ w + b).reshape(B, N, -1)


def decoder_forward_ref(params, inputs, adj, hidden_state, *, num_nodes,
                        rnn_units, output_dim, max_diffusion_step):
    B = inputs.shape[0]
    output = inputs
    new_hidden = []
    for li, lp in enumerate(params["layers"]):
        in_dim = output.shape[-1] // num_nodes
        x = output.reshape(B, num_nodes, in_dim)
        h = hidden_state[li].reshape(B, num_nodes, rnn_units)
        value = jax.nn.sigmoid(_ref_gconv(x, h, adj, lp["w_ru"], lp["b_ru"],
                                          max_diffusion_step))
        r, u = value[..., :rnn_units], value[..., rnn_units:]
        c = jnp.tanh(_ref_gconv(x, r * h, adj, lp["w_c"], lp["b_c"],
                                max_diffusion_step))
        h_new = u * h + (1.0 - u) * c
        h_flat = h_new.reshape(B, num_nodes * rnn_units)
        new_hidden.append(h_flat)
        output = h_flat
    proj = output.reshape(B * num_nodes, rnn_units) @ params["proj_w"] + params["proj_b"]
    return proj.reshape(B, num_nodes * output_dim), jnp.stack(new_hidden)


# ------------------------------- param init ---------------------------------

def xavier_normal(key, shape):
    fan_in, fan_out = shape
    std = math.sqrt(2.0 / (fan_in + fan_out))
    return std * jax.random.normal(key, shape, jnp.float32)


def init_params(key, *, num_layers, num_nodes, rnn_units, output_dim,
                max_diffusion_step):
    K1 = max_diffusion_step + 1
    layers = []
    for li in range(num_layers):
        in_dim = output_dim if li == 0 else rnn_units
        D = in_dim + rnn_units
        key, k1, k2 = jax.random.split(key, 3)
        layers.append({
            "w_ru": xavier_normal(k1, (D * K1, 2 * rnn_units)),
            "b_ru": jnp.full((1, 2 * rnn_units), 1.0, jnp.float32),  # bias_start=1.0
            "w_c": xavier_normal(k2, (D * K1, rnn_units)),
            "b_c": jnp.zeros((1, rnn_units), jnp.float32),           # bias_start=0.0
        })
    key, kp = jax.random.split(key)
    bound = 1.0 / math.sqrt(rnn_units)
    proj_w = jax.random.uniform(kp, (rnn_units, output_dim), jnp.float32,
                                -bound, bound)   # stored pre-transposed (U, out)
    proj_b = jnp.zeros((1, output_dim), jnp.float32)
    return {"layers": layers, "proj_w": proj_w, "proj_b": proj_b}


# ---------------------------------- main -------------------------------------

if __name__ == "__main__":
    # model config (small test shapes)
    num_nodes = 4
    rnn_units = 8
    output_dim = 1
    num_rnn_layers = 2
    max_diffusion_step = 2
    batch = 2

    key = jax.random.PRNGKey(0)
    key, k_in, k_h, k_adj, k_p = jax.random.split(key, 5)

    params = init_params(k_p, num_layers=num_rnn_layers, num_nodes=num_nodes,
                         rnn_units=rnn_units, output_dim=output_dim,
                         max_diffusion_step=max_diffusion_step)

    inputs = jax.random.normal(k_in, (batch, num_nodes * output_dim), jnp.float32)
    hidden_state = jax.random.normal(
        k_h, (num_rnn_layers, batch, num_nodes * rnn_units), jnp.float32)
    # row-normalized random adjacency (support matrix)
    adj_raw = jax.random.uniform(k_adj, (num_nodes, num_nodes), jnp.float32)
    adj = adj_raw / jnp.sum(adj_raw, axis=1, keepdims=True)

    fwd = partial(decoder_forward, num_nodes=num_nodes, rnn_units=rnn_units,
                  output_dim=output_dim, max_diffusion_step=max_diffusion_step)
    out, new_hidden = jax.jit(lambda p, x, a, h: fwd(p, x, a, h))(
        params, inputs, adj, hidden_state)
    jax.block_until_ready((out, new_hidden))

    # correctness check against pure-JAX reference
    out_ref, hid_ref = decoder_forward_ref(
        params, inputs, adj, hidden_state, num_nodes=num_nodes,
        rnn_units=rnn_units, output_dim=output_dim,
        max_diffusion_step=max_diffusion_step)
    np.testing.assert_allclose(np.asarray(out), np.asarray(out_ref),
                               rtol=1e-2, atol=1e-2)
    np.testing.assert_allclose(np.asarray(new_hidden), np.asarray(hid_ref),
                               rtol=1e-2, atol=1e-2)

    assert out.shape == (batch, num_nodes * output_dim)
    assert new_hidden.shape == (num_rnn_layers, batch, num_nodes * rnn_units)
    print("KERNEL_OK")
</pallas_src>

<mosaic_0001>
module attributes {stable_mosaic.version = 11 : i64} {
  func.func @fused_decoder_kernel(%arg0: i32, %arg1: memref<1x4x1xf32, #tpu.memory_space<vmem>>, %arg2: memref<2x1x4x8xf32, #tpu.memory_space<vmem>>, %arg3: memref<4x4xf32, #tpu.memory_space<vmem>>, %arg4: memref<3x1x24xf32, #tpu.memory_space<vmem>>, %arg5: memref<3x8x16xf32, #tpu.memory_space<vmem>>, %arg6: memref<3x8x8xf32, #tpu.memory_space<vmem>>, %arg7: memref<1x16xf32, #tpu.memory_space<vmem>>, %arg8: memref<1x8xf32, #tpu.memory_space<vmem>>, %arg9: memref<3x8x24xf32, #tpu.memory_space<vmem>>, %arg10: memref<3x8x16xf32, #tpu.memory_space<vmem>>, %arg11: memref<3x8x8xf32, #tpu.memory_space<vmem>>, %arg12: memref<1x16xf32, #tpu.memory_space<vmem>>, %arg13: memref<1x8xf32, #tpu.memory_space<vmem>>, %arg14: memref<8x1xf32, #tpu.memory_space<vmem>>, %arg15: memref<1x1xf32, #tpu.memory_space<vmem>>, %arg16: memref<1x4x1xf32, #tpu.memory_space<vmem>>, %arg17: memref<2x1x4x8xf32, #tpu.memory_space<vmem>>) attributes {dimension_semantics = [#tpu.dimension_semantics<parallel>], iteration_bounds = array<i64: 2>, scalar_prefetch = 0 : i64, scratch_operands = 0 : i64, tpu.core_type = #tpu.core_type<tc>, window_params = [{transform_indices = @transform_0, window_bounds = array<i64: 1, 4, 1>}, {transform_indices = @transform_1, window_bounds = array<i64: 2, 1, 4, 8>}, {pipeline_mode = #tpu.pipeline_mode<synchronous>, transform_indices = @transform_2, window_bounds = array<i64: 4, 4>}, {pipeline_mode = #tpu.pipeline_mode<synchronous>, transform_indices = @transform_3, window_bounds = array<i64: 3, 1, 24>}, {pipeline_mode = #tpu.pipeline_mode<synchronous>, transform_indices = @transform_4, window_bounds = array<i64: 3, 8, 16>}, {pipeline_mode = #tpu.pipeline_mode<synchronous>, transform_indices = @transform_5, window_bounds = array<i64: 3, 8, 8>}, {pipeline_mode = #tpu.pipeline_mode<synchronous>, transform_indices = @transform_6, window_bounds = array<i64: 1, 16>}, {pipeline_mode = #tpu.pipeline_mode<synchronous>, transform_indices = @transform_7, window_bounds = array<i64: 1, 8>}, {pipeline_mode = #tpu.pipeline_mode<synchronous>, transform_indices = @transform_8, window_bounds = array<i64: 3, 8, 24>}, {pipeline_mode = #tpu.pipeline_mode<synchronous>, transform_indices = @transform_9, window_bounds = array<i64: 3, 8, 16>}, {pipeline_mode = #tpu.pipeline_mode<synchronous>, transform_indices = @transform_10, window_bounds = array<i64: 3, 8, 8>}, {pipeline_mode = #tpu.pipeline_mode<synchronous>, transform_indices = @transform_11, window_bounds = array<i64: 1, 16>}, {pipeline_mode = #tpu.pipeline_mode<synchronous>, transform_indices = @transform_12, window_bounds = array<i64: 1, 8>}, {pipeline_mode = #tpu.pipeline_mode<synchronous>, transform_indices = @transform_13, window_bounds = array<i64: 8, 1>}, {pipeline_mode = #tpu.pipeline_mode<synchronous>, transform_indices = @transform_14, window_bounds = array<i64: 1, 1>}, {transform_indices = @transform_15, window_bounds = array<i64: 1, 4, 1>}, {transform_indices = @transform_16, window_bounds = array<i64: 2, 1, 4, 8>}]} {
    %c0 = arith.constant 0 : index
    %c0_0 = arith.constant 0 : index
    %0 = vector.load %arg3[%c0, %c0_0] : memref<4x4xf32, #tpu.memory_space<vmem>>, vector<4x4xf32>
    %c0_1 = arith.constant 0 : index
    %c0_2 = arith.constant 0 : index
    %c0_3 = arith.constant 0 : index
    %1 = vector.load %arg1[%c0_1, %c0_2, %c0_3] : memref<1x4x1xf32, #tpu.memory_space<vmem>>, vector<1x4x1xf32>
    %c0_4 = arith.constant 0 : index
    %c0_5 = arith.constant 0 : index
    %c0_6 = arith.constant 0 : index
    %c0_7 = arith.constant 0 : index
    %2 = vector.load %arg2[%c0_4, %c0_5, %c0_6, %c0_7] : memref<2x1x4x8xf32, #tpu.memory_space<vmem>>, vector<1x1x4x8xf32>
    %3 = vector.shape_cast %2 : vector<1x1x4x8xf32> to vector<1x4x8xf32>
    "tpu.trace_start"() <{level = 10 : i32, message = "nm,bmd->bnd"}> : () -> ()
    %cst = arith.constant dense<0.000000e+00> : vector<1x1x4xf32>
    %4 = tpu.matmul %1, %0, %cst {dimension_numbers = #tpu.dot_dimension_numbers<[1], [1], [0, 2], [0], [0, 0, 0, 2, 1, 0], [], []>} : vector<1x4x1xf32>, vector<4x4xf32>, vector<1x1x4xf32> -> vector<1x1x4xf32>
    %5 = tpu.transpose %4, [0, 2, 1] : vector<1x1x4xf32> -> vector<1x4x1xf32>
    %cst_8 = arith.constant dense<0.000000e+00> : vector<1x1x4xf32>
    %6 = tpu.matmul %5, %0, %cst_8 {dimension_numbers = #tpu.dot_dimension_numbers<[1], [1], [0, 2], [0], [0, 0, 0, 2, 1, 0], [], []>} : vector<1x4x1xf32>, vector<4x4xf32>, vector<1x1x4xf32> -> vector<1x1x4xf32>
    %7 = tpu.transpose %6, [0, 2, 1] : vector<1x1x4xf32> -> vector<1x4x1xf32>
    "tpu.trace_stop"() : () -> ()
    %cst_9 = arith.constant 2.000000e+00 : f32
    %8 = vector.broadcast %cst_9 : f32 to vector<1x4x1xf32>
    %9 = arith.mulf %8, %7 : vector<1x4x1xf32>
    %10 = arith.subf %9, %1 : vector<1x4x1xf32>
    %c0_10 = arith.constant 0 : index
    %c0_11 = arith.constant 0 : index
    %c0_12 = arith.constant 0 : index
    %11 = vector.load %arg4[%c0_10, %c0_11, %c0_12] : memref<3x1x24xf32, #tpu.memory_space<vmem>>, vector<1x1x24xf32>
    %12 = vector.shape_cast %11 : vector<1x1x24xf32> to vector<1x24xf32>
    "tpu.trace_start"() <{level = 10 : i32, message = "bnd,do->bno"}> : () -> ()
    %cst_13 = arith.constant dense<0.000000e+00> : vector<1x4x24xf32>
    %13 = tpu.matmul %1, %12, %cst_13 {dimension_numbers = #tpu.dot_dimension_numbers<[2], [0], [0, 1], [1], [0, 0, 0, 1, 1, 1], [], []>} : vector<1x4x1xf32>, vector<1x24xf32>, vector<1x4x24xf32> -> vector<1x4x24xf32>
    "tpu.trace_stop"() : () -> ()
    %c1 = arith.constant 1 : index
    %c0_14 = arith.constant 0 : index
    %c0_15 = arith.constant 0 : index
    %14 = vector.load %arg4[%c1, %c0_14, %c0_15] : memref<3x1x24xf32, #tpu.memory_space<vmem>>, vector<1x1x24xf32>
    %15 = vector.shape_cast %14 : vector<1x1x24xf32> to vector<1x24xf32>
    "tpu.trace_start"() <{level = 10 : i32, message = "bnd,do->bno"}> : () -> ()
    %cst_16 = arith.constant dense<0.000000e+00> : vector<1x4x24xf32>
    %16 = tpu.matmul %5, %15, %cst_16 {dimension_numbers = #tpu.dot_dimension_numbers<[2], [0], [0, 1], [1], [0, 0, 0, 1, 1, 1], [], []>} : vector<1x4x1xf32>, vector<1x24xf32>, vector<1x4x24xf32> -> vector<1x4x24xf32>
    "tpu.trace_stop"() : () -> ()
    %17 = arith.addf %13, %16 : vector<1x4x24xf32>
    %c2 = arith.constant 2 : index
    %c0_17 = arith.constant 0 : index
    %c0_18 = arith.constant 0 : index
    %18 = vector.load %arg4[%c2, %c0_17, %c0_18] : memref<3x1x24xf32, #tpu.memory_space<vmem>>, vector<1x1x24xf32>
    %19 = vector.shape_cast %18 : vector<1x1x24xf32> to vector<1x24xf32>
    "tpu.trace_start"() <{level = 10 : i32, message = "bnd,do->bno"}> : () -> ()
    %cst_19 = arith.constant dense<0.000000e+00> : vector<1x4x24xf32>
    %20 = tpu.matmul %10, %19, %cst_19 {dimension_numbers = #tpu.dot_dimension_numbers<[2], [0], [0, 1], [1], [0, 0, 0, 1, 1, 1], [], []>} : vector<1x4x1xf32>, vector<1x24xf32>, vector<1x4x24xf32> -> vector<1x4x24xf32>
    "tpu.trace_stop"() : () -> ()
    %21 = arith.addf %17, %20 : vector<1x4x24xf32>
    %22 = vector.extract_strided_slice %21 {offsets = [0, 0, 0], sizes = [1, 4, 16], strides = [1, 1, 1]} : vector<1x4x24xf32> to vector<1x4x16xf32>
    %23 = vector.extract_strided_slice %21 {offsets = [0, 0, 16], sizes = [1, 4, 8], strides = [1, 1, 1]} : vector<1x4x24xf32> to vector<1x4x8xf32>
    "tpu.trace_start"() <{level = 10 : i32, message = "nm,bmd->bnd"}> : () -> ()
    %cst_20 = arith.constant dense<0.000000e+00> : vector<1x8x4xf32>
    %24 = tpu.matmul %3, %0, %cst_20 {dimension_numbers = #tpu.dot_dimension_numbers<[1], [1], [0, 2], [0], [0, 0, 0, 2, 1, 0], [], []>} : vector<1x4x8xf32>, vector<4x4xf32>, vector<1x8x4xf32> -> vector<1x8x4xf32>
    %25 = tpu.transpose %24, [0, 2, 1] : vector<1x8x4xf32> -> vector<1x4x8xf32>
    %cst_21 = arith.constant dense<0.000000e+00> : vector<1x8x4xf32>
    %26 = tpu.matmul %25, %0, %cst_21 {dimension_numbers = #tpu.dot_dimension_numbers<[1], [1], [0, 2], [0], [0, 0, 0, 2, 1, 0], [], []>} : vector<1x4x8xf32>, vector<4x4xf32>, vector<1x8x4xf32> -> vector<1x8x4xf32>
    %27 = tpu.transpose %26, [0, 2, 1] : vector<1x8x4xf32> -> vector<1x4x8xf32>
    "tpu.trace_stop"() : () -> ()
    %cst_22 = arith.constant 2.000000e+00 : f32
    %28 = vector.broadcast %cst_22 : f32 to vector<1x4x8xf32>
    %29 = arith.mulf %28, %27 : vector<1x4x8xf32>
    %30 = arith.subf %29, %3 : vector<1x4x8xf32>
    %c0_23 = arith.constant 0 : index
    %c0_24 = arith.constant 0 : index
    %c0_25 = arith.constant 0 : index
    %31 = vector.load %arg5[%c0_23, %c0_24, %c0_25] : memref<3x8x16xf32, #tpu.memory_space<vmem>>, vector<1x8x16xf32>
    %32 = vector.shape_cast %31 : vector<1x8x16xf32> to vector<8x16xf32>
    "tpu.trace_start"() <{level = 10 : i32, message = "bnd,do->bno"}> : () -> ()
    %cst_26 = arith.constant dense<0.000000e+00> : vector<1x4x16xf32>
    %33 = tpu.matmul %3, %32, %cst_26 {dimension_numbers = #tpu.dot_dimension_numbers<[2], [0], [0, 1], [1], [0, 0, 0, 1, 1, 1], [], []>} : vector<1x4x8xf32>, vector<8x16xf32>, vector<1x4x16xf32> -> vector<1x4x16xf32>
    "tpu.trace_stop"() : () -> ()
    %c1_27 = arith.constant 1 : index
    %c0_28 = arith.constant 0 : index
    %c0_29 = arith.constant 0 : index
    %34 = vector.load %arg5[%c1_27, %c0_28, %c0_29] : memref<3x8x16xf32, #tpu.memory_space<vmem>>, vector<1x8x16xf32>
    %35 = vector.shape_cast %34 : vector<1x8x16xf32> to vector<8x16xf32>
    "tpu.trace_start"() <{level = 10 : i32, message = "bnd,do->bno"}> : () -> ()
    %cst_30 = arith.constant dense<0.000000e+00> : vector<1x4x16xf32>
    %36 = tpu.matmul %25, %35, %cst_30 {dimension_numbers = #tpu.dot_dimension_numbers<[2], [0], [0, 1], [1], [0, 0, 0, 1, 1, 1], [], []>} : vector<1x4x8xf32>, vector<8x16xf32>, vector<1x4x16xf32> -> vector<1x4x16xf32>
    "tpu.trace_stop"() : () -> ()
    %37 = arith.addf %33, %36 : vector<1x4x16xf32>
    %c2_31 = arith.constant 2 : index
    %c0_32 = arith.constant 0 : index
    %c0_33 = arith.constant 0 : index
    %38 = vector.load %arg5[%c2_31, %c0_32, %c0_33] : memref<3x8x16xf32, #tpu.memory_space<vmem>>, vector<1x8x16xf32>
    %39 = vector.shape_cast %38 : vector<1x8x16xf32> to vector<8x16xf32>
    "tpu.trace_start"() <{level = 10 : i32, message = "bnd,do->bno"}> : () -> ()
    %cst_34 = arith.constant dense<0.000000e+00> : vector<1x4x16xf32>
    %40 = tpu.matmul %30, %39, %cst_34 {dimension_numbers = #tpu.dot_dimension_numbers<[2], [0], [0, 1], [1], [0, 0, 0, 1, 1, 1], [], []>} : vector<1x4x8xf32>, vector<8x16xf32>, vector<1x4x16xf32> -> vector<1x4x16xf32>
    "tpu.trace_stop"() : () -> ()
    %41 = arith.addf %37, %40 : vector<1x4x16xf32>
    %42 = arith.addf %22, %41 : vector<1x4x16xf32>
    %c0_35 = arith.constant 0 : index
    %c0_36 = arith.constant 0 : index
    %43 = vector.load %arg7[%c0_35, %c0_36] : memref<1x16xf32, #tpu.memory_space<vmem>>, vector<1x16xf32>
    %44 = vector.shape_cast %43 : vector<1x16xf32> to vector<1x1x16xf32>
    %45 = vector.broadcast %44 : vector<1x1x16xf32> to vector<1x4x16xf32>
    %46 = arith.addf %42, %45 : vector<1x4x16xf32>
    %47 = arith.negf %46 : vector<1x4x16xf32>
    %48 = math.exp %47 : vector<1x4x16xf32>
    %cst_37 = arith.constant 1.000000e+00 : f32
    %49 = vector.broadcast %cst_37 : f32 to vector<1x4x16xf32>
    %50 = arith.addf %49, %48 : vector<1x4x16xf32>
    %51 = arith.divf %49, %50 : vector<1x4x16xf32>
    %52 = vector.extract_strided_slice %51 {offsets = [0, 0, 0], sizes = [1, 4, 8], strides = [1, 1, 1]} : vector<1x4x16xf32> to vector<1x4x8xf32>
    %53 = vector.extract_strided_slice %51 {offsets = [0, 0, 8], sizes = [1, 4, 8], strides = [1, 1, 1]} : vector<1x4x16xf32> to vector<1x4x8xf32>
    %54 = arith.mulf %52, %3 : vector<1x4x8xf32>
    "tpu.trace_start"() <{level = 10 : i32, message = "nm,bmd->bnd"}> : () -> ()
    %cst_38 = arith.constant dense<0.000000e+00> : vector<1x8x4xf32>
    %55 = tpu.matmul %54, %0, %cst_38 {dimension_numbers = #tpu.dot_dimension_numbers<[1], [1], [0, 2], [0], [0, 0, 0, 2, 1, 0], [], []>} : vector<1x4x8xf32>, vector<4x4xf32>, vector<1x8x4xf32> -> vector<1x8x4xf32>
    %56 = tpu.transpose %55, [0, 2, 1] : vector<1x8x4xf32> -> vector<1x4x8xf32>
    %cst_39 = arith.constant dense<0.000000e+00> : vector<1x8x4xf32>
    %57 = tpu.matmul %56, %0, %cst_39 {dimension_numbers = #tpu.dot_dimension_numbers<[1], [1], [0, 2], [0], [0, 0, 0, 2, 1, 0], [], []>} : vector<1x4x8xf32>, vector<4x4xf32>, vector<1x8x4xf32> -> vector<1x8x4xf32>
    %58 = tpu.transpose %57, [0, 2, 1] : vector<1x8x4xf32> -> vector<1x4x8xf32>
    "tpu.trace_stop"() : () -> ()
    %cst_40 = arith.constant 2.000000e+00 : f32
    %59 = vector.broadcast %cst_40 : f32 to vector<1x4x8xf32>
    %60 = arith.mulf %59, %58 : vector<1x4x8xf32>
    %61 = arith.subf %60, %54 : vector<1x4x8xf32>
    %c0_41 = arith.constant 0 : index
    %c0_42 = arith.constant 0 : index
    %c0_43 = arith.constant 0 : index
    %62 = vector.load %arg6[%c0_41, %c0_42, %c0_43] : memref<3x8x8xf32, #tpu.memory_space<vmem>>, vector<1x8x8xf32>
    %63 = vector.shape_cast %62 : vector<1x8x8xf32> to vector<8x8xf32>
    "tpu.trace_start"() <{level = 10 : i32, message = "bnd,do->bno"}> : () -> ()
    %cst_44 = arith.constant dense<0.000000e+00> : vector<1x4x8xf32>
    %64 = tpu.matmul %54, %63, %cst_44 {dimension_numbers = #tpu.dot_dimension_numbers<[2], [0], [0, 1], [1], [0, 0, 0, 1, 1, 1], [], []>} : vector<1x4x8xf32>, vector<8x8xf32>, vector<1x4x8xf32> -> vector<1x4x8xf32>
    "tpu.trace_stop"() : () -> ()
    %c1_45 = arith.constant 1 : index
    %c0_46 = arith.constant 0 : index
    %c0_47 = arith.constant 0 : index
    %65 = vector.load %arg6[%c1_45, %c0_46, %c0_47] : memref<3x8x8xf32, #tpu.memory_space<vmem>>, vector<1x8x8xf32>
    %66 = vector.shape_cast %65 : vector<1x8x8xf32> to vector<8x8xf32>
    "tpu.trace_start"() <{level = 10 : i32, message = "bnd,do->bno"}> : () -> ()
    %cst_48 = arith.constant dense<0.000000e+00> : vector<1x4x8xf32>
    %67 = tpu.matmul %56, %66, %cst_48 {dimension_numbers = #tpu.dot_dimension_numbers<[2], [0], [0, 1], [1], [0, 0, 0, 1, 1, 1], [], []>} : vector<1x4x8xf32>, vector<8x8xf32>, vector<1x4x8xf32> -> vector<1x4x8xf32>
    "tpu.trace_stop"() : () -> ()
    %68 = arith.addf %64, %67 : vector<1x4x8xf32>
    %c2_49 = arith.constant 2 : index
    %c0_50 = arith.constant 0 : index
    %c0_51 = arith.constant 0 : index
    %69 = vector.load %arg6[%c2_49, %c0_50, %c0_51] : memref<3x8x8xf32, #tpu.memory_space<vmem>>, vector<1x8x8xf32>
    %70 = vector.shape_cast %69 : vector<1x8x8xf32> to vector<8x8xf32>
    "tpu.trace_start"() <{level = 10 : i32, message = "bnd,do->bno"}> : () -> ()
    %cst_52 = arith.constant dense<0.000000e+00> : vector<1x4x8xf32>
    %71 = tpu.matmul %61, %70, %cst_52 {dimension_numbers = #tpu.dot_dimension_numbers<[2], [0], [0, 1], [1], [0, 0, 0, 1, 1, 1], [], []>} : vector<1x4x8xf32>, vector<8x8xf32>, vector<1x4x8xf32> -> vector<1x4x8xf32>
    "tpu.trace_stop"() : () -> ()
    %72 = arith.addf %68, %71 : vector<1x4x8xf32>
    %73 = arith.addf %23, %72 : vector<1x4x8xf32>
    %c0_53 = arith.constant 0 : index
    %c0_54 = arith.constant 0 : index
    %74 = vector.load %arg8[%c0_53, %c0_54] : memref<1x8xf32, #tpu.memory_space<vmem>>, vector<1x8xf32>
    %75 = vector.shape_cast %74 : vector<1x8xf32> to vector<1x1x8xf32>
    %76 = vector.broadcast %75 : vector<1x1x8xf32> to vector<1x4x8xf32>
    %77 = arith.addf %73, %76 : vector<1x4x8xf32>
    %78 = math.tanh %77 : vector<1x4x8xf32>
    %79 = arith.mulf %53, %3 : vector<1x4x8xf32>
    %cst_55 = arith.constant 1.000000e+00 : f32
    %80 = vector.broadcast %cst_55 : f32 to vector<1x4x8xf32>
    %81 = arith.subf %80, %53 : vector<1x4x8xf32>
    %82 = arith.mulf %81, %78 : vector<1x4x8xf32>
    %83 = arith.addf %79, %82 : vector<1x4x8xf32>
    %c0_56 = arith.constant 0 : index
    %c0_57 = arith.constant 0 : index
    %c0_58 = arith.constant 0 : index
    %c0_59 = arith.constant 0 : index
    %84 = vector.load %arg17[%c0_56, %c0_57, %c0_58, %c0_59] : memref<2x1x4x8xf32, #tpu.memory_space<vmem>>, vector<1x1x4x8xf32>
    %85 = vector.shape_cast %84 : vector<1x1x4x8xf32> to vector<1x4x8xf32>
    %86 = vector.shape_cast %83 : vector<1x4x8xf32> to vector<1x1x4x8xf32>
    tpu.vector_store %arg17[%c0_56, %c0_57, %c0_58, %c0_59], %86 {strides = array<i32>} : memref<2x1x4x8xf32, #tpu.memory_space<vmem>>, vector<1x1x4x8xf32>,
    %c1_60 = arith.constant 1 : index
    %c0_61 = arith.constant 0 : index
    %c0_62 = arith.constant 0 : index
    %c0_63 = arith.constant 0 : index
    %87 = vector.load %arg2[%c1_60, %c0_61, %c0_62, %c0_63] : memref<2x1x4x8xf32, #tpu.memory_space<vmem>>, vector<1x1x4x8xf32>
    %88 = vector.shape_cast %87 : vector<1x1x4x8xf32> to vector<1x4x8xf32>
    "tpu.trace_start"() <{level = 10 : i32, message = "nm,bmd->bnd"}> : () -> ()
    %cst_64 = arith.constant dense<0.000000e+00> : vector<1x8x4xf32>
    %89 = tpu.matmul %83, %0, %cst_64 {dimension_numbers = #tpu.dot_dimension_numbers<[1], [1], [0, 2], [0], [0, 0, 0, 2, 1, 0], [], []>} : vector<1x4x8xf32>, vector<4x4xf32>, vector<1x8x4xf32> -> vector<1x8x4xf32>
    %90 = tpu.transpose %89, [0, 2, 1] : vector<1x8x4xf32> -> vector<1x4x8xf32>
    %cst_65 = arith.constant dense<0.000000e+00> : vector<1x8x4xf32>
    %91 = tpu.matmul %90, %0, %cst_65 {dimension_numbers = #tpu.dot_dimension_numbers<[1], [1], [0, 2], [0], [0, 0, 0, 2, 1, 0], [], []>} : vector<1x4x8xf32>, vector<4x4xf32>, vector<1x8x4xf32> -> vector<1x8x4xf32>
    %92 = tpu.transpose %91, [0, 2, 1] : vector<1x8x4xf32> -> vector<1x4x8xf32>
    "tpu.trace_stop"() : () -> ()
    %cst_66 = arith.constant 2.000000e+00 : f32
    %93 = vector.broadcast %cst_66 : f32 to vector<1x4x8xf32>
    %94 = arith.mulf %93, %92 : vector<1x4x8xf32>
    %95 = arith.subf %94, %83 : vector<1x4x8xf32>
    %c0_67 = arith.constant 0 : index
    %c0_68 = arith.constant 0 : index
    %c0_69 = arith.constant 0 : index
    %96 = vector.load %arg9[%c0_67, %c0_68, %c0_69] : memref<3x8x24xf32, #tpu.memory_space<vmem>>, vector<1x8x24xf32>
    %97 = vector.shape_cast %96 : vector<1x8x24xf32> to vector<8x24xf32>
    "tpu.trace_start"() <{level = 10 : i32, message = "bnd,do->bno"}> : () -> ()
    %cst_70 = arith.constant dense<0.000000e+00> : vector<1x4x24xf32>
    %98 = tpu.matmul %83, %97, %cst_70 {dimension_numbers = #tpu.dot_dimension_numbers<[2], [0], [0, 1], [1], [0, 0, 0, 1, 1, 1], [], []>} : vector<1x4x8xf32>, vector<8x24xf32>, vector<1x4x24xf32> -> vector<1x4x24xf32>
    "tpu.trace_stop"() : () -> ()
    %c1_71 = arith.constant 1 : index
    %c0_72 = arith.constant 0 : index
    %c0_73 = arith.constant 0 : index
    %99 = vector.load %arg9[%c1_71, %c0_72, %c0_73] : memref<3x8x24xf32, #tpu.memory_space<vmem>>, vector<1x8x24xf32>
    %100 = vector.shape_cast %99 : vector<1x8x24xf32> to vector<8x24xf32>
    "tpu.trace_start"() <{level = 10 : i32, message = "bnd,do->bno"}> : () -> ()
    %cst_74 = arith.constant dense<0.000000e+00> : vector<1x4x24xf32>
    %101 = tpu.matmul %90, %100, %cst_74 {dimension_numbers = #tpu.dot_dimension_numbers<[2], [0], [0, 1], [1], [0, 0, 0, 1, 1, 1], [], []>} : vector<1x4x8xf32>, vector<8x24xf32>, vector<1x4x24xf32> -> vector<1x4x24xf32>
    "tpu.trace_stop"() : () -> ()
    %102 = arith.addf %98, %101 : vector<1x4x24xf32>
    %c2_75 = arith.constant 2 : index
    %c0_76 = arith.constant 0 : index
    %c0_77 = arith.constant 0 : index
    %103 = vector.load %arg9[%c2_75, %c0_76, %c0_77] : memref<3x8x24xf32, #tpu.memory_space<vmem>>, vector<1x8x24xf32>
    %104 = vector.shape_cast %103 : vector<1x8x24xf32> to vector<8x24xf32>
    "tpu.trace_start"() <{level = 10 : i32, message = "bnd,do->bno"}> : () -> ()
    %cst_78 = arith.constant dense<0.000000e+00> : vector<1x4x24xf32>
    %105 = tpu.matmul %95, %104, %cst_78 {dimension_numbers = #tpu.dot_dimension_numbers<[2], [0], [0, 1], [1], [0, 0, 0, 1, 1, 1], [], []>} : vector<1x4x8xf32>, vector<8x24xf32>, vector<1x4x24xf32> -> vector<1x4x24xf32>
    "tpu.trace_stop"() : () -> ()
    %106 = arith.addf %102, %105 : vector<1x4x24xf32>
    %107 = vector.extract_strided_slice %106 {offsets = [0, 0, 0], sizes = [1, 4, 16], strides = [1, 1, 1]} : vector<1x4x24xf32> to vector<1x4x16xf32>
    %108 = vector.extract_strided_slice %106 {offsets = [0, 0, 16], sizes = [1, 4, 8], strides = [1, 1, 1]} : vector<1x4x24xf32> to vector<1x4x8xf32>
    "tpu.trace_start"() <{level = 10 : i32, message = "nm,bmd->bnd"}> : () -> ()
    %cst_79 = arith.constant dense<0.000000e+00> : vector<1x8x4xf32>
    %109 = tpu.matmul %88, %0, %cst_79 {dimension_numbers = #tpu.dot_dimension_numbers<[1], [1], [0, 2], [0], [0, 0, 0, 2, 1, 0], [], []>} : vector<1x4x8xf32>, vector<4x4xf32>, vector<1x8x4xf32> -> vector<1x8x4xf32>
    %110 = tpu.transpose %109, [0, 2, 1] : vector<1x8x4xf32> -> vector<1x4x8xf32>
    %cst_80 = arith.constant dense<0.000000e+00> : vector<1x8x4xf32>
    %111 = tpu.matmul %110, %0, %cst_80 {dimension_numbers = #tpu.dot_dimension_numbers<[1], [1], [0, 2], [0], [0, 0, 0, 2, 1, 0], [], []>} : vector<1x4x8xf32>, vector<4x4xf32>, vector<1x8x4xf32> -> vector<1x8x4xf32>
    %112 = tpu.transpose %111, [0, 2, 1] : vector<1x8x4xf32> -> vector<1x4x8xf32>
    "tpu.trace_stop"() : () -> ()
    %cst_81 = arith.constant 2.000000e+00 : f32
    %113 = vector.broadcast %cst_81 : f32 to vector<1x4x8xf32>
    %114 = arith.mulf %113, %112 : vector<1x4x8xf32>
    %115 = arith.subf %114, %88 : vector<1x4x8xf32>
    %c0_82 = arith.constant 0 : index
    %c0_83 = arith.constant 0 : index
    %c0_84 = arith.constant 0 : index
    %116 = vector.load %arg10[%c0_82, %c0_83, %c0_84] : memref<3x8x16xf32, #tpu.memory_space<vmem>>, vector<1x8x16xf32>
    %117 = vector.shape_cast %116 : vector<1x8x16xf32> to vector<8x16xf32>
    "tpu.trace_start"() <{level = 10 : i32, message = "bnd,do->bno"}> : () -> ()
    %cst_85 = arith.constant dense<0.000000e+00> : vector<1x4x16xf32>
    %118 = tpu.matmul %88, %117, %cst_85 {dimension_numbers = #tpu.dot_dimension_numbers<[2], [0], [0, 1], [1], [0, 0, 0, 1, 1, 1], [], []>} : vector<1x4x8xf32>, vector<8x16xf32>, vector<1x4x16xf32> -> vector<1x4x16xf32>
    "tpu.trace_stop"() : () -> ()
    %c1_86 = arith.constant 1 : index
    %c0_87 = arith.constant 0 : index
    %c0_88 = arith.constant 0 : index
    %119 = vector.load %arg10[%c1_86, %c0_87, %c0_88] : memref<3x8x16xf32, #tpu.memory_space<vmem>>, vector<1x8x16xf32>
    %120 = vector.shape_cast %119 : vector<1x8x16xf32> to vector<8x16xf32>
    "tpu.trace_start"() <{level = 10 : i32, message = "bnd,do->bno"}> : () -> ()
    %cst_89 = arith.constant dense<0.000000e+00> : vector<1x4x16xf32>
    %121 = tpu.matmul %110, %120, %cst_89 {dimension_numbers = #tpu.dot_dimension_numbers<[2], [0], [0, 1], [1], [0, 0, 0, 1, 1, 1], [], []>} : vector<1x4x8xf32>, vector<8x16xf32>, vector<1x4x16xf32> -> vector<1x4x16xf32>
    "tpu.trace_stop"() : () -> ()
    %122 = arith.addf %118, %121 : vector<1x4x16xf32>
    %c2_90 = arith.constant 2 : index
    %c0_91 = arith.constant 0 : index
    %c0_92 = arith.constant 0 : index
    %123 = vector.load %arg10[%c2_90, %c0_91, %c0_92] : memref<3x8x16xf32, #tpu.memory_space<vmem>>, vector<1x8x16xf32>
    %124 = vector.shape_cast %123 : vector<1x8x16xf32> to vector<8x16xf32>
    "tpu.trace_start"() <{level = 10 : i32, message = "bnd,do->bno"}> : () -> ()
    %cst_93 = arith.constant dense<0.000000e+00> : vector<1x4x16xf32>
    %125 = tpu.matmul %115, %124, %cst_93 {dimension_numbers = #tpu.dot_dimension_numbers<[2], [0], [0, 1], [1], [0, 0, 0, 1, 1, 1], [], []>} : vector<1x4x8xf32>, vector<8x16xf32>, vector<1x4x16xf32> -> vector<1x4x16xf32>
    "tpu.trace_stop"() : () -> ()
    %126 = arith.addf %122, %125 : vector<1x4x16xf32>
    %127 = arith.addf %107, %126 : vector<1x4x16xf32>
    %c0_94 = arith.constant 0 : index
    %c0_95 = arith.constant 0 : index
    %128 = vector.load %arg12[%c0_94, %c0_95] : memref<1x16xf32, #tpu.memory_space<vmem>>, vector<1x16xf32>
    %129 = vector.shape_cast %128 : vector<1x16xf32> to vector<1x1x16xf32>
    %130 = vector.broadcast %129 : vector<1x1x16xf32> to vector<1x4x16xf32>
    %131 = arith.addf %127, %130 : vector<1x4x16xf32>
    %132 = arith.negf %131 : vector<1x4x16xf32>
    %133 = math.exp %132 : vector<1x4x16xf32>
    %cst_96 = arith.constant 1.000000e+00 : f32
    %134 = vector.broadcast %cst_96 : f32 to vector<1x4x16xf32>
    %135 = arith.addf %134, %133 : vector<1x4x16xf32>
    %136 = arith.divf %134, %135 : vector<1x4x16xf32>
    %137 = vector.extract_strided_slice %136 {offsets = [0, 0, 0], sizes = [1, 4, 8], strides = [1, 1, 1]} : vector<1x4x16xf32> to vector<1x4x8xf32>
    %138 = vector.extract_strided_slice %136 {offsets = [0, 0, 8], sizes = [1, 4, 8], strides = [1, 1, 1]} : vector<1x4x16xf32> to vector<1x4x8xf32>
    %139 = arith.mulf %137, %88 : vector<1x4x8xf32>
    "tpu.trace_start"() <{level = 10 : i32, message = "nm,bmd->bnd"}> : () -> ()
    %cst_97 = arith.constant dense<0.000000e+00> : vector<1x8x4xf32>
    %140 = tpu.matmul %139, %0, %cst_97 {dimension_numbers = #tpu.dot_dimension_numbers<[1], [1], [0, 2], [0], [0, 0, 0, 2, 1, 0], [], []>} : vector<1x4x8xf32>, vector<4x4xf32>, vector<1x8x4xf32> -> vector<1x8x4xf32>
    %141 = tpu.transpose %140, [0, 2, 1] : vector<1x8x4xf32> -> vector<1x4x8xf32>
    %cst_98 = arith.constant dense<0.000000e+00> : vector<1x8x4xf32>
    %142 = tpu.matmul %141, %0, %cst_98 {dimension_numbers = #tpu.dot_dimension_numbers<[1], [1], [0, 2], [0], [0, 0, 0, 2, 1, 0], [], []>} : vector<1x4x8xf32>, vector<4x4xf32>, vector<1x8x4xf32> -> vector<1x8x4xf32>
    %143 = tpu.transpose %142, [0, 2, 1] : vector<1x8x4xf32> -> vector<1x4x8xf32>
    "tpu.trace_stop"() : () -> ()
    %cst_99 = arith.constant 2.000000e+00 : f32
    %144 = vector.broadcast %cst_99 : f32 to vector<1x4x8xf32>
    %145 = arith.mulf %144, %143 : vector<1x4x8xf32>
    %146 = arith.subf %145, %139 : vector<1x4x8xf32>
    %c0_100 = arith.constant 0 : index
    %c0_101 = arith.constant 0 : index
    %c0_102 = arith.constant 0 : index
    %147 = vector.load %arg11[%c0_100, %c0_101, %c0_102] : memref<3x8x8xf32, #tpu.memory_space<vmem>>, vector<1x8x8xf32>
    %148 = vector.shape_cast %147 : vector<1x8x8xf32> to vector<8x8xf32>
    "tpu.trace_start"() <{level = 10 : i32, message = "bnd,do->bno"}> : () -> ()
    %cst_103 = arith.constant dense<0.000000e+00> : vector<1x4x8xf32>
    %149 = tpu.matmul %139, %148, %cst_103 {dimension_numbers = #tpu.dot_dimension_numbers<[2], [0], [0, 1], [1], [0, 0, 0, 1, 1, 1], [], []>} : vector<1x4x8xf32>, vector<8x8xf32>, vector<1x4x8xf32> -> vector<1x4x8xf32>
    "tpu.trace_stop"() : () -> ()
    %c1_104 = arith.constant 1 : index
    %c0_105 = arith.constant 0 : index
    %c0_106 = arith.constant 0 : index
    %150 = vector.load %arg11[%c1_104, %c0_105, %c0_106] : memref<3x8x8xf32, #tpu.memory_space<vmem>>, vector<1x8x8xf32>
    %151 = vector.shape_cast %150 : vector<1x8x8xf32> to vector<8x8xf32>
    "tpu.trace_start"() <{level = 10 : i32, message = "bnd,do->bno"}> : () -> ()
    %cst_107 = arith.constant dense<0.000000e+00> : vector<1x4x8xf32>
    %152 = tpu.matmul %141, %151, %cst_107 {dimension_numbers = #tpu.dot_dimension_numbers<[2], [0], [0, 1], [1], [0, 0, 0, 1, 1, 1], [], []>} : vector<1x4x8xf32>, vector<8x8xf32>, vector<1x4x8xf32> -> vector<1x4x8xf32>
    "tpu.trace_stop"() : () -> ()
    %153 = arith.addf %149, %152 : vector<1x4x8xf32>
    %c2_108 = arith.constant 2 : index
    %c0_109 = arith.constant 0 : index
    %c0_110 = arith.constant 0 : index
    %154 = vector.load %arg11[%c2_108, %c0_109, %c0_110] : memref<3x8x8xf32, #tpu.memory_space<vmem>>, vector<1x8x8xf32>
    %155 = vector.shape_cast %154 : vector<1x8x8xf32> to vector<8x8xf32>
    "tpu.trace_start"() <{level = 10 : i32, message = "bnd,do->bno"}> : () -> ()
    %cst_111 = arith.constant dense<0.000000e+00> : vector<1x4x8xf32>
    %156 = tpu.matmul %146, %155, %cst_111 {dimension_numbers = #tpu.dot_dimension_numbers<[2], [0], [0, 1], [1], [0, 0, 0, 1, 1, 1], [], []>} : vector<1x4x8xf32>, vector<8x8xf32>, vector<1x4x8xf32> -> vector<1x4x8xf32>
    "tpu.trace_stop"() : () -> ()
    %157 = arith.addf %153, %156 : vector<1x4x8xf32>
    %158 = arith.addf %108, %157 : vector<1x4x8xf32>
    %c0_112 = arith.constant 0 : index
    %c0_113 = arith.constant 0 : index
    %159 = vector.load %arg13[%c0_112, %c0_113] : memref<1x8xf32, #tpu.memory_space<vmem>>, vector<1x8xf32>
    %160 = vector.shape_cast %159 : vector<1x8xf32> to vector<1x1x8xf32>
    %161 = vector.broadcast %160 : vector<1x1x8xf32> to vector<1x4x8xf32>
    %162 = arith.addf %158, %161 : vector<1x4x8xf32>
    %163 = math.tanh %162 : vector<1x4x8xf32>
    %164 = arith.mulf %138, %88 : vector<1x4x8xf32>
    %cst_114 = arith.constant 1.000000e+00 : f32
    %165 = vector.broadcast %cst_114 : f32 to vector<1x4x8xf32>
    %166 = arith.subf %165, %138 : vector<1x4x8xf32>
    %167 = arith.mulf %166, %163 : vector<1x4x8xf32>
    %168 = arith.addf %164, %167 : vector<1x4x8xf32>
    %c1_115 = arith.constant 1 : index
    %c0_116 = arith.constant 0 : index
    %c0_117 = arith.constant 0 : index
    %c0_118 = arith.constant 0 : index
    %169 = vector.load %arg17[%c1_115, %c0_116, %c0_117, %c0_118] : memref<2x1x4x8xf32, #tpu.memory_space<vmem>>, vector<1x1x4x8xf32>
    %170 = vector.shape_cast %169 : vector<1x1x4x8xf32> to vector<1x4x8xf32>
    %171 = vector.shape_cast %168 : vector<1x4x8xf32> to vector<1x1x4x8xf32>
    tpu.vector_store %arg17[%c1_115, %c0_116, %c0_117, %c0_118], %171 {strides = array<i32>} : memref<2x1x4x8xf32, #tpu.memory_space<vmem>>, vector<1x1x4x8xf32>,
    %c0_119 = arith.constant 0 : index
    %c0_120 = arith.constant 0 : index
    %172 = vector.load %arg14[%c0_119, %c0_120] : memref<8x1xf32, #tpu.memory_space<vmem>>, vector<8x1xf32>
    "tpu.trace_start"() <{level = 10 : i32, message = "bnu,uo->bno"}> : () -> ()
    %cst_121 = arith.constant dense<0.000000e+00> : vector<1x4x1xf32>
    %173 = tpu.matmul %168, %172, %cst_121 {dimension_numbers = #tpu.dot_dimension_numbers<[2], [0], [0, 1], [1], [0, 0, 0, 1, 1, 1], [], []>} : vector<1x4x8xf32>, vector<8x1xf32>, vector<1x4x1xf32> -> vector<1x4x1xf32>
    "tpu.trace_stop"() : () -> ()
    %c0_122 = arith.constant 0 : index
    %c0_123 = arith.constant 0 : index
    %174 = vector.load %arg15[%c0_122, %c0_123] : memref<1x1xf32, #tpu.memory_space<vmem>>, vector<1x1xf32>
    %175 = vector.shape_cast %174 : vector<1x1xf32> to vector<1x1x1xf32>
    %176 = vector.broadcast %175 : vector<1x1x1xf32> to vector<1x4x1xf32>
    %177 = arith.addf %173, %176 : vector<1x4x1xf32>
    %c0_124 = arith.constant 0 : index
    %c0_125 = arith.constant 0 : index
    %c0_126 = arith.constant 0 : index
    %178 = vector.load %arg16[%c0_124, %c0_125, %c0_126] : memref<1x4x1xf32, #tpu.memory_space<vmem>>, vector<1x4x1xf32>
    tpu.vector_store %arg16[%c0_124, %c0_125, %c0_126], %177 {strides = array<i32>} : memref<1x4x1xf32, #tpu.memory_space<vmem>>, vector<1x4x1xf32>,
    return
  }
  func.func @transform_0(%arg0: i32) -> (i32, i32, i32) {
    %c0_i32 = arith.constant 0 : i32
    %c0_i32_0 = arith.constant 0 : i32
    %c0_i32_1 = arith.constant 0 : i32
    return %arg0, %c0_i32, %c0_i32_0 : i32, i32, i32
  }
  func.func @transform_1(%arg0: i32) -> (i32, i32, i32, i32) {
    %c0_i32 = arith.constant 0 : i32
    %c0_i32_0 = arith.constant 0 : i32
    %c0_i32_1 = arith.constant 0 : i32
    %c0_i32_2 = arith.constant 0 : i32
    return %c0_i32, %arg0, %c0_i32_0, %c0_i32_1 : i32, i32, i32, i32
  }
  func.func @transform_2(%arg0: i32) -> (i32, i32) {
    %c0_i32 = arith.constant 0 : i32
    %c0_i32_0 = arith.constant 0 : i32
    %c0_i32_1 = arith.constant 0 : i32
    return %c0_i32, %c0_i32_0 : i32, i32
  }
  func.func @transform_3(%arg0: i32) -> (i32, i32, i32) {
    %c0_i32 = arith.constant 0 : i32
    %c0_i32_0 = arith.constant 0 : i32
    %c0_i32_1 = arith.constant 0 : i32
    %c0_i32_2 = arith.constant 0 : i32
    return %c0_i32, %c0_i32_0, %c0_i32_1 : i32, i32, i32
  }
  func.func @transform_4(%arg0: i32) -> (i32, i32, i32) {
    %c0_i32 = arith.constant 0 : i32
    %c0_i32_0 = arith.constant 0 : i32
    %c0_i32_1 = arith.constant 0 : i32
    %c0_i32_2 = arith.constant 0 : i32
    return %c0_i32, %c0_i32_0, %c0_i32_1 : i32, i32, i32
  }
  func.func @transform_5(%arg0: i32) -> (i32, i32, i32) {
    %c0_i32 = arith.constant 0 : i32
    %c0_i32_0 = arith.constant 0 : i32
    %c0_i32_1 = arith.constant 0 : i32
    %c0_i32_2 = arith.constant 0 : i32
    return %c0_i32, %c0_i32_0, %c0_i32_1 : i32, i32, i32
  }
  func.func @transform_6(%arg0: i32) -> (i32, i32) {
    %c0_i32 = arith.constant 0 : i32
    %c0_i32_0 = arith.constant 0 : i32
    %c0_i32_1 = arith.constant 0 : i32
    return %c0_i32, %c0_i32_0 : i32, i32
  }
  func.func @transform_7(%arg0: i32) -> (i32, i32) {
    %c0_i32 = arith.constant 0 : i32
    %c0_i32_0 = arith.constant 0 : i32
    %c0_i32_1 = arith.constant 0 : i32
    return %c0_i32, %c0_i32_0 : i32, i32
  }
  func.func @transform_8(%arg0: i32) -> (i32, i32, i32) {
    %c0_i32 = arith.constant 0 : i32
    %c0_i32_0 = arith.constant 0 : i32
    %c0_i32_1 = arith.constant 0 : i32
    %c0_i32_2 = arith.constant 0 : i32
    return %c0_i32, %c0_i32_0, %c0_i32_1 : i32, i32, i32
  }
  func.func @transform_9(%arg0: i32) -> (i32, i32, i32) {
    %c0_i32 = arith.constant 0 : i32
    %c0_i32_0 = arith.constant 0 : i32
    %c0_i32_1 = arith.constant 0 : i32
    %c0_i32_2 = arith.constant 0 : i32
    return %c0_i32, %c0_i32_0, %c0_i32_1 : i32, i32, i32
  }
  func.func @transform_10(%arg0: i32) -> (i32, i32, i32) {
    %c0_i32 = arith.constant 0 : i32
    %c0_i32_0 = arith.constant 0 : i32
    %c0_i32_1 = arith.constant 0 : i32
    %c0_i32_2 = arith.constant 0 : i32
    return %c0_i32, %c0_i32_0, %c0_i32_1 : i32, i32, i32
  }
  func.func @transform_11(%arg0: i32) -> (i32, i32) {
    %c0_i32 = arith.constant 0 : i32
    %c0_i32_0 = arith.constant 0 : i32
    %c0_i32_1 = arith.constant 0 : i32
    return %c0_i32, %c0_i32_0 : i32, i32
  }
  func.func @transform_12(%arg0: i32) -> (i32, i32) {
    %c0_i32 = arith.constant 0 : i32
    %c0_i32_0 = arith.constant 0 : i32
    %c0_i32_1 = arith.constant 0 : i32
    return %c0_i32, %c0_i32_0 : i32, i32
  }
  func.func @transform_13(%arg0: i32) -> (i32, i32) {
    %c0_i32 = arith.constant 0 : i32
    %c0_i32_0 = arith.constant 0 : i32
    %c0_i32_1 = arith.constant 0 : i32
    return %c0_i32, %c0_i32_0 : i32, i32
  }
  func.func @transform_14(%arg0: i32) -> (i32, i32) {
    %c0_i32 = arith.constant 0 : i32
    %c0_i32_0 = arith.constant 0 : i32
    %c0_i32_1 = arith.constant 0 : i32
    return %c0_i32, %c0_i32_0 : i32, i32
  }
  func.func @transform_15(%arg0: i32) -> (i32, i32, i32) {
    %c0_i32 = arith.constant 0 : i32
    %c0_i32_0 = arith.constant 0 : i32
    %c0_i32_1 = arith.constant 0 : i32
    return %arg0, %c0_i32, %c0_i32_0 : i32, i32, i32
  }
  func.func @transform_16(%arg0: i32) -> (i32, i32, i32, i32) {
    %c0_i32 = arith.constant 0 : i32
    %c0_i32_0 = arith.constant 0 : i32
    %c0_i32_1 = arith.constant 0 : i32
    %c0_i32_2 = arith.constant 0 : i32
    return %c0_i32, %arg0, %c0_i32_0, %c0_i32_1 : i32, i32, i32, i32
  }
}

</mosaic_0001>

<llo_original>
// kernel: _lambda_.1
$region0: #{_lambda_.1}
  #allocation0 [shape = 'u32[]', space=smem, size = 0x4, offset = 0x4, fixed_abs, tag = 'smem constant byte address 0x4 - core index']
  #allocation1 [shape = 'u32[144,128]{1,0:T(1,128)}', space=vmem, size = 0x12000, scoped, tag = 'internal scratch']
  #allocation2 [shape = 'f32[1,1]{1,0:T(1,128)S(1)}', space=vmem, size = 0x200, scoped, tag = 'scoped memory for _lambda_.1']
  %s0 = inlined_call_operand.vmem [shape: f32[2,4,1], index: 0, kind: input, shape index: {}]
  %s1 = inlined_call_operand.vmem [shape: f32[2,2,4,8], index: 1, kind: input, shape index: {}]
  %s2 = inlined_call_operand.vmem [shape: f32[4,4], index: 2, kind: input, shape index: {}]
  %s3 = inlined_call_operand.vmem [shape: f32[3,1,24], index: 3, kind: input, shape index: {}]
  %s4 = inlined_call_operand.vmem [shape: f32[3,8,16], index: 4, kind: input, shape index: {}]
  %s5 = inlined_call_operand.vmem [shape: f32[3,8,8], index: 5, kind: input, shape index: {}]
  %s6 = inlined_call_operand.vmem [shape: f32[1,16], index: 6, kind: input, shape index: {}]
  %s7 = inlined_call_operand.vmem [shape: f32[1,8], index: 7, kind: input, shape index: {}]
  %s8 = inlined_call_operand.vmem [shape: f32[3,8,24], index: 8, kind: input, shape index: {}]
  %s9 = inlined_call_operand.vmem [shape: f32[3,8,16], index: 9, kind: input, shape index: {}]
  %s10 = inlined_call_operand.vmem [shape: f32[3,8,8], index: 10, kind: input, shape index: {}]
  %s11 = inlined_call_operand.vmem [shape: f32[1,16], index: 11, kind: input, shape index: {}]
  %s12 = inlined_call_operand.vmem [shape: f32[1,8], index: 12, kind: input, shape index: {}]
  %s13 = inlined_call_operand.vmem [shape: f32[8,1], index: 13, kind: input, shape index: {}]
  %s14 = inlined_call_operand.<no memory space> [shape: f32[1,1], index: 14, kind: input, shape index: {}]
  %s15 = inlined_call_operand.vmem [shape: f32[2,4,1], index: 15, kind: output, shape index: {0}]
  %s16 = inlined_call_operand.vmem [shape: f32[2,2,4,8], index: 16, kind: output, shape index: {1}]
  %17 = xla_tuple %s15, %s16
  %s18 = sld [smem:[#allocation0]]
  $region179: #{_lambda_.1} parent=0
    _
  %s20 = ssub.s32 1, %s18
  %s21 = scalar_select 0, %s20, %s18
  %v22 = vstv %s14
  %23 = vst [vmem:[#allocation2] sm:$0x1] %v22
  $region1: #{_lambda_.1} parent=0
    #allocation3 [shape = 'u8[8192]{0}', space=vmem, size = 0x2000, scoped, tag = 'input window, operand 1']
    #allocation4 [shape = 'u8[8192]{0}', space=vmem, size = 0x2000, scoped, tag = 'output window, operand 1']
    loop: start=0, step=1, limit=4
    $region2: #{_lambda_.1} parent=1 // loop_pre_header
      _
    $region3: #{_lambda_.1} parent=1 // loop_header
      %s25 = sphi 0, %s29
      %p26 = scmp.ge.s32.totalorder %s25, 4
      %s35 = sphi 0, %s37
      %s38 = sphi 0, %s35
      %s39 = sphi 0, %s38
      %s55 = sphi 0, %s39
      %s61 = sphi 0, %s63
      %s64 = sphi 0, %s61
      %s65 = sphi 0, %s64
      %s81 = sphi 0, %s65
      %s85 = sphi 0, %s85
      %s87 = sphi 0, %s85
      %s88 = sphi 0, %s87
      %s102 = sphi 0, %s88
      %s106 = sphi 0, %s106
      %s108 = sphi 0, %s106
      %s109 = sphi 0, %s108
      %s123 = sphi 0, %s109
      %s127 = sphi 0, %s127
      %s129 = sphi 0, %s127
      %s130 = sphi 0, %s129
      %s144 = sphi 0, %s130
      %s148 = sphi 0, %s148
      %s150 = sphi 0, %s148
      %s151 = sphi 0, %s150
      %s165 = sphi 0, %s151
      %s169 = sphi 0, %s169
      %s171 = sphi 0, %s169
      %s172 = sphi 0, %s171
      %s186 = sphi 0, %s172
      %s190 = sphi 0, %s190
      %s192 = sphi 0, %s190
      %s193 = sphi 0, %s192
      %s207 = sphi 0, %s193
      %s211 = sphi 0, %s211
      %s213 = sphi 0, %s211
      %s214 = sphi 0, %s213
      %s228 = sphi 0, %s214
      %s232 = sphi 0, %s232
      %s234 = sphi 0, %s232
      %s235 = sphi 0, %s234
      %s249 = sphi 0, %s235
      %s253 = sphi 0, %s253
      %s255 = sphi 0, %s253
      %s256 = sphi 0, %s255
      %s270 = sphi 0, %s256
      %s274 = sphi 0, %s274
      %s276 = sphi 0, %s274
      %s277 = sphi 0, %s276
      %s291 = sphi 0, %s277
      %s295 = sphi 0, %s295
      %s297 = sphi 0, %s295
      %s298 = sphi 0, %s297
      %s312 = sphi 0, %s298
      %s316 = sphi 0, %s316
      %s318 = sphi 0, %s316
      %s319 = sphi 0, %s318
      %s333 = sphi 0, %s319
      %s337 = sphi 0, %s337
      %s339 = sphi 0, %s337
      %s340 = sphi 0, %s339
      %s354 = sphi 0, %s340
      %s360 = sphi 0, %s362
      %s363 = sphi 0, %s360
      %s364 = sphi 0, %s363
      %s380 = sphi 0, %s364
      %s386 = sphi 0, %s388
      %s389 = sphi 0, %s386
      %s390 = sphi 0, %s389
      %s406 = sphi 0, %s390
    $region4: #{_lambda_.1} parent=1 // loop_header_branch
      %28 = sbr.rel (%p26) target = $region8
    $region5: #{_lambda_.1} parent=1 // loop_body
      %s30 = ssub.s32 %s25, 1
      %s31 = ssub.s32 %s25, 2
      %s32 = sadd.s32 %s25, 1
      %s33 = ssub.s32 %s25, %s32
      %p34 = scmp.eq.s32.totalorder %s33, 0
      %s36 = sadd.s32 %s35, 1
      %s37 = scalar_select %p34, %s35, %s36
      %p40 = pneg %p34
      %p41 = scmp.eq.s32.totalorder %s25, 1
      %p42 = por %p40, %p41
      %p43 = scmp.ne.s32.totalorder %s35, %s38
      %p44 = scmp.eq.s32.totalorder %s25, 0
      %p45 = por %p43, %p44
      %p46 = scmp.ne.s32.totalorder %s35, %s38
      %p47 = scmp.eq.s32.totalorder %s30, 1
      %p48 = por %p46, %p47
      %p49 = scmp.ne.s32.totalorder %s38, %s39
      %p50 = scmp.eq.s32.totalorder %s30, 0
      %p51 = por %p49, %p50
      %p52 = scmp.ne.s32.totalorder %s38, %s39
      %p53 = scmp.eq.s32.totalorder %s31, 1
      %p54 = por %p52, %p53
      %p56 = scmp.ne.s32.totalorder %s39, %s55
      %p57 = scmp.eq.s32.totalorder %s31, 0
      %p58 = por %p56, %p57
      %s59 = ssub.s32 %s25, %s32
      %p60 = scmp.eq.s32.totalorder %s59, 0
      %s62 = sadd.s32 %s61, 1
      %s63 = scalar_select %p60, %s61, %s62
      %p66 = pneg %p60
      %p67 = scmp.eq.s32.totalorder %s25, 1
      %p68 = por %p66, %p67
      %p69 = scmp.ne.s32.totalorder %s61, %s64
      %p70 = scmp.eq.s32.totalorder %s25, 0
      %p71 = por %p69, %p70
      %p72 = scmp.ne.s32.totalorder %s61, %s64
      %p73 = scmp.eq.s32.totalorder %s30, 1
      %p74 = por %p72, %p73
      %p75 = scmp.ne.s32.totalorder %s64, %s65
      %p76 = scmp.eq.s32.totalorder %s30, 0
      %p77 = por %p75, %p76
      %p78 = scmp.ne.s32.totalorder %s64, %s65
      %p79 = scmp.eq.s32.totalorder %s31, 1
      %p80 = por %p78, %p79
      %p82 = scmp.ne.s32.totalorder %s65, %s81
      %p83 = scmp.eq.s32.totalorder %s31, 0
      %p84 = por %p82, %p83
      %s86 = sadd.s32 %s85, 1
      %p89 = scmp.eq.s32.totalorder %s25, 1
      %p90 = scmp.ne.s32.totalorder %s85, %s87
      %p91 = scmp.eq.s32.totalorder %s25, 0
      %p92 = por %p90, %p91
      %p93 = scmp.ne.s32.totalorder %s85, %s87
      %p94 = scmp.eq.s32.totalorder %s30, 1
      %p95 = por %p93, %p94
      %p96 = scmp.ne.s32.totalorder %s87, %s88
      %p97 = scmp.eq.s32.totalorder %s30, 0
      %p98 = por %p96, %p97
      %p99 = scmp.ne.s32.totalorder %s87, %s88
      %p100 = scmp.eq.s32.totalorder %s31, 1
      %p101 = por %p99, %p100
      %p103 = scmp.ne.s32.totalorder %s88, %s102
      %p104 = scmp.eq.s32.totalorder %s31, 0
      %p105 = por %p103, %p104
      %s107 = sadd.s32 %s106, 1
      %p110 = scmp.eq.s32.totalorder %s25, 1
      %p111 = scmp.ne.s32.totalorder %s106, %s108
      %p112 = scmp.eq.s32.totalorder %s25, 0
      %p113 = por %p111, %p112
      %p114 = scmp.ne.s32.totalorder %s106, %s108
      %p115 = scmp.eq.s32.totalorder %s30, 1
      %p116 = por %p114, %p115
      %p117 = scmp.ne.s32.totalorder %s108, %s109
      %p118 = scmp.eq.s32.totalorder %s30, 0
      %p119 = por %p117, %p118
      %p120 = scmp.ne.s32.totalorder %s108, %s109
      %p121 = scmp.eq.s32.totalorder %s31, 1
      %p122 = por %p120, %p121
      %p124 = scmp.ne.s32.totalorder %s109, %s123
      %p125 = scmp.eq.s32.totalorder %s31, 0
      %p126 = por %p124, %p125
      %s128 = sadd.s32 %s127, 1
      %p131 = scmp.eq.s32.totalorder %s25, 1
      %p132 = scmp.ne.s32.totalorder %s127, %s129
      %p133 = scmp.eq.s32.totalorder %s25, 0
      %p134 = por %p132, %p133
      %p135 = scmp.ne.s32.totalorder %s127, %s129
      %p136 = scmp.eq.s32.totalorder %s30, 1
      %p137 = por %p135, %p136
      %p138 = scmp.ne.s32.totalorder %s129, %s130
      %p139 = scmp.eq.s32.totalorder %s30, 0
      %p140 = por %p138, %p139
      %p141 = scmp.ne.s32.totalorder %s129, %s130
      %p142 = scmp.eq.s32.totalorder %s31, 1
      %p143 = por %p141, %p142
      %p145 = scmp.ne.s32.totalorder %s130, %s144
      %p146 = scmp.eq.s32.totalorder %s31, 0
      %p147 = por %p145, %p146
      %s149 = sadd.s32 %s148, 1
      %p152 = scmp.eq.s32.totalorder %s25, 1
      %p153 = scmp.ne.s32.totalorder %s148, %s150
      %p154 = scmp.eq.s32.totalorder %s25, 0
      %p155 = por %p153, %p154
      %p156 = scmp.ne.s32.totalorder %s148, %s150
      %p157 = scmp.eq.s32.totalorder %s30, 1
      %p158 = por %p156, %p157
      %p159 = scmp.ne.s32.totalorder %s150, %s151
      %p160 = scmp.eq.s32.totalorder %s30, 0
      %p161 = por %p159, %p160
      %p162 = scmp.ne.s32.totalorder %s150, %s151
      %p163 = scmp.eq.s32.totalorder %s31, 1
      %p164 = por %p162, %p163
      %p166 = scmp.ne.s32.totalorder %s151, %s165
      %p167 = scmp.eq.s32.totalorder %s31, 0
      %p168 = por %p166, %p167
      %s170 = sadd.s32 %s169, 1
      %p173 = scmp.eq.s32.totalorder %s25, 1
      %p174 = scmp.ne.s32.totalorder %s169, %s171
      %p175 = scmp.eq.s32.totalorder %s25, 0
      %p176 = por %p174, %p175
      %p177 = scmp.ne.s32.totalorder %s169, %s171
      %p178 = scmp.eq.s32.totalorder %s30, 1
      %p179 = por %p177, %p178
      %p180 = scmp.ne.s32.totalorder %s171, %s172
      %p181 = scmp.eq.s32.totalorder %s30, 0
      %p182 = por %p180, %p181
      %p183 = scmp.ne.s32.totalorder %s171, %s172
      %p184 = scmp.eq.s32.totalorder %s31, 1
      %p185 = por %p183, %p184
      %p187 = scmp.ne.s32.totalorder %s172, %s186
      %p188 = scmp.eq.s32.totalorder %s31, 0
      %p189 = por %p187, %p188
      %s191 = sadd.s32 %s190, 1
      %p194 = scmp.eq.s32.totalorder %s25, 1
      %p195 = scmp.ne.s32.totalorder %s190, %s192
      %p196 = scmp.eq.s32.totalorder %s25, 0
      %p197 = por %p195, %p196
      %p198 = scmp.ne.s32.totalorder %s190, %s192
      %p199 = scmp.eq.s32.totalorder %s30, 1
      %p200 = por %p198, %p199
      %p201 = scmp.ne.s32.totalorder %s192, %s193
      %p202 = scmp.eq.s32.totalorder %s30, 0
      %p203 = por %p201, %p202
      %p204 = scmp.ne.s32.totalorder %s192, %s193
      %p205 = scmp.eq.s32.totalorder %s31, 1
      %p206 = por %p204, %p205
      %p208 = scmp.ne.s32.totalorder %s193, %s207
      %p209 = scmp.eq.s32.totalorder %s31, 0
      %p210 = por %p208, %p209
      %s212 = sadd.s32 %s211, 1
      %p215 = scmp.eq.s32.totalorder %s25, 1
      %p216 = scmp.ne.s32.totalorder %s211, %s213
      %p217 = scmp.eq.s32.totalorder %s25, 0
      %p218 = por %p216, %p217
      %p219 = scmp.ne.s32.totalorder %s211, %s213
      %p220 = scmp.eq.s32.totalorder %s30, 1
      %p221 = por %p219, %p220
      %p222 = scmp.ne.s32.totalorder %s213, %s214
      %p223 = scmp.eq.s32.totalorder %s30, 0
      %p224 = por %p222, %p223
      %p225 = scmp.ne.s32.totalorder %s213, %s214
      %p226 = scmp.eq.s32.totalorder %s31, 1
      %p227 = por %p225, %p226
      %p229 = scmp.ne.s32.totalorder %s214, %s228
      %p230 = scmp.eq.s32.totalorder %s31, 0
      %p231 = por %p229, %p230
      %s233 = sadd.s32 %s232, 1
      %p236 = scmp.eq.s32.totalorder %s25, 1
      %p237 = scmp.ne.s32.totalorder %s232, %s234
      %p238 = scmp.eq.s32.totalorder %s25, 0
      %p239 = por %p237, %p238
      %p240 = scmp.ne.s32.totalorder %s232, %s234
      %p241 = scmp.eq.s32.totalorder %s30, 1
      %p242 = por %p240, %p241
      %p243 = scmp.ne.s32.totalorder %s234, %s235
      %p244 = scmp.eq.s32.totalorder %s30, 0
      %p245 = por %p243, %p244
      %p246 = scmp.ne.s32.totalorder %s234, %s235
      %p247 = scmp.eq.s32.totalorder %s31, 1
      %p248 = por %p246, %p247
      %p250 = scmp.ne.s32.totalorder %s235, %s249
      %p251 = scmp.eq.s32.totalorder %s31, 0
      %p252 = por %p250, %p251
      %s254 = sadd.s32 %s253, 1
      %p257 = scmp.eq.s32.totalorder %s25, 1
      %p258 = scmp.ne.s32.totalorder %s253, %s255
      %p259 = scmp.eq.s32.totalorder %s25, 0
      %p260 = por %p258, %p259
      %p261 = scmp.ne.s32.totalorder %s253, %s255
      %p262 = scmp.eq.s32.totalorder %s30, 1
      %p263 = por %p261, %p262
      %p264 = scmp.ne.s32.totalorder %s255, %s256
      %p265 = scmp.eq.s32.totalorder %s30, 0
      %p266 = por %p264, %p265
      %p267 = scmp.ne.s32.totalorder %s255, %s256
      %p268 = scmp.eq.s32.totalorder %s31, 1
      %p269 = por %p267, %p268
      %p271 = scmp.ne.s32.totalorder %s256, %s270
      %p272 = scmp.eq.s32.totalorder %s31, 0
      %p273 = por %p271, %p272
      %s275 = sadd.s32 %s274, 1
      %p278 = scmp.eq.s32.totalorder %s25, 1
      %p279 = scmp.ne.s32.totalorder %s274, %s276
      %p280 = scmp.eq.s32.totalorder %s25, 0
      %p281 = por %p279, %p280
      %p282 = scmp.ne.s32.totalorder %s274, %s276
      %p283 = scmp.eq.s32.totalorder %s30, 1
      %p284 = por %p282, %p283
      %p285 = scmp.ne.s32.totalorder %s276, %s277
      %p286 = scmp.eq.s32.totalorder %s30, 0
      %p287 = por %p285, %p286
      %p288 = scmp.ne.s32.totalorder %s276, %s277
      %p289 = scmp.eq.s32.totalorder %s31, 1
      %p290 = por %p288, %p289
      %p292 = scmp.ne.s32.totalorder %s277, %s291
      %p293 = scmp.eq.s32.totalorder %s31, 0
      %p294 = por %p292, %p293
      %s296 = sadd.s32 %s295, 1
      %p299 = scmp.eq.s32.totalorder %s25, 1
      %p300 = scmp.ne.s32.totalorder %s295, %s297
      %p301 = scmp.eq.s32.totalorder %s25, 0
      %p302 = por %p300, %p301
      %p303 = scmp.ne.s32.totalorder %s295, %s297
      %p304 = scmp.eq.s32.totalorder %s30, 1
      %p305 = por %p303, %p304
      %p306 = scmp.ne.s32.totalorder %s297, %s298
      %p307 = scmp.eq.s32.totalorder %s30, 0
      %p308 = por %p306, %p307
      %p309 = scmp.ne.s32.totalorder %s297, %s298
      %p310 = scmp.eq.s32.totalorder %s31, 1
      %p311 = por %p309, %p310
      %p313 = scmp.ne.s32.totalorder %s298, %s312
      %p314 = scmp.eq.s32.totalorder %s31, 0
      %p315 = por %p313, %p314
      %s317 = sadd.s32 %s316, 1
      %p320 = scmp.eq.s32.totalorder %s25, 1
      %p321 = scmp.ne.s32.totalorder %s316, %s318
      %p322 = scmp.eq.s32.totalorder %s25, 0
      %p323 = por %p321, %p322
      %p324 = scmp.ne.s32.totalorder %s316, %s318
      %p325 = scmp.eq.s32.totalorder %s30, 1
      %p326 = por %p324, %p325
      %p327 = scmp.ne.s32.totalorder %s318, %s319
      %p328 = scmp.eq.s32.totalorder %s30, 0
      %p329 = por %p327, %p328
      %p330 = scmp.ne.s32.totalorder %s318, %s319
      %p331 = scmp.eq.s32.totalorder %s31, 1
      %p332 = por %p330, %p331
      %p334 = scmp.ne.s32.totalorder %s319, %s333
      %p335 = scmp.eq.s32.totalorder %s31, 0
      %p336 = por %p334, %p335
      %s338 = sadd.s32 %s337, 1
      %p341 = scmp.eq.s32.totalorder %s25, 1
      %p342 = scmp.ne.s32.totalorder %s337, %s339
      %p343 = scmp.eq.s32.totalorder %s25, 0
      %p344 = por %p342, %p343
      %p345 = scmp.ne.s32.totalorder %s337, %s339
      %p346 = scmp.eq.s32.totalorder %s30, 1
      %p347 = por %p345, %p346
      %p348 = scmp.ne.s32.totalorder %s339, %s340
      %p349 = scmp.eq.s32.totalorder %s30, 0
      %p350 = por %p348, %p349
      %p351 = scmp.ne.s32.totalorder %s339, %s340
      %p352 = scmp.eq.s32.totalorder %s31, 1
      %p353 = por %p351, %p352
      %p355 = scmp.ne.s32.totalorder %s340, %s354
      %p356 = scmp.eq.s32.totalorder %s31, 0
      %p357 = por %p355, %p356
      %s358 = ssub.s32 %s25, %s32
      %p359 = scmp.eq.s32.totalorder %s358, 0
      %s361 = sadd.s32 %s360, 1
      %s362 = scalar_select %p359, %s360, %s361
      %p365 = pneg %p359
      %p366 = scmp.eq.s32.totalorder %s25, 1
      %p367 = por %p365, %p366
      %p368 = scmp.ne.s32.totalorder %s360, %s363
      %p369 = scmp.eq.s32.totalorder %s25, 0
      %p370 = por %p368, %p369
      %p371 = scmp.ne.s32.totalorder %s360, %s363
      %p372 = scmp.eq.s32.totalorder %s30, 1
      %p373 = por %p371, %p372
      %p374 = scmp.ne.s32.totalorder %s363, %s364
      %p375 = scmp.eq.s32.totalorder %s30, 0
      %p376 = por %p374, %p375
      %p377 = scmp.ne.s32.totalorder %s363, %s364
      %p378 = scmp.eq.s32.totalorder %s31, 1
      %p379 = por %p377, %p378
      %p381 = scmp.ne.s32.totalorder %s364, %s380
      %p382 = scmp.eq.s32.totalorder %s31, 0
      %p383 = por %p381, %p382
      %s384 = ssub.s32 %s25, %s32
      %p385 = scmp.eq.s32.totalorder %s384, 0
      %s387 = sadd.s32 %s386, 1
      %s388 = scalar_select %p385, %s386, %s387
      %p391 = pneg %p385
      %p392 = scmp.eq.s32.totalorder %s25, 1
      %p393 = por %p391, %p392
      %p394 = scmp.ne.s32.totalorder %s386, %s389
      %p395 = scmp.eq.s32.totalorder %s25, 0
      %p396 = por %p394, %p395
      %p397 = scmp.ne.s32.totalorder %s386, %s389
      %p398 = scmp.eq.s32.totalorder %s30, 1
      %p399 = por %p397, %p398
      %p400 = scmp.ne.s32.totalorder %s389, %s390
      %p401 = scmp.eq.s32.totalorder %s30, 0
      %p402 = por %p400, %p401
      %p403 = scmp.ne.s32.totalorder %s389, %s390
      %p404 = scmp.eq.s32.totalorder %s31, 1
      %p405 = por %p403, %p404
      %p407 = scmp.ne.s32.totalorder %s390, %s406
      %p408 = scmp.eq.s32.totalorder %s31, 0
      %p409 = por %p407, %p408
      %p410 = scmp.le.s32.totalorder 1, %s25
      %p411 = scmp.lt.s32.totalorder %s25, 3
      %p412 = pnand %p410, %p411
      %p413 = pneg %p412
      // Predicated region
      $region9: #{_lambda_.1} parent=5 // pred_check
        _
      $region10: #{_lambda_.1} parent=5 // pred_check_branch
        %415 = sbr.rel (%p412) target = $region12
      $region11: #{_lambda_.1} parent=5 // pred_region
        %s416 = ssub.s32 %s25, 1
        // Predicated region
        $region13: #{_lambda_.1} parent=11 // pred_check
          %p417 = pneg %p98
        $region14: #{_lambda_.1} parent=11 // pred_check_branch
          %419 = sbr.rel (%p417) target = $region16
        $region15: #{_lambda_.1} parent=11 // pred_region
          _
        $region16: #{_lambda_.1} parent=11 // pred_fallthru
          _
        // Predicated region
        $region17: #{_lambda_.1} parent=11 // pred_check
          %p420 = pneg %p119
        $region18: #{_lambda_.1} parent=11 // pred_check_branch
          %422 = sbr.rel (%p420) target = $region20
        $region19: #{_lambda_.1} parent=11 // pred_region
          _
        $region20: #{_lambda_.1} parent=11 // pred_fallthru
          _
        // Predicated region
        $region21: #{_lambda_.1} parent=11 // pred_check
          %p423 = pneg %p140
        $region22: #{_lambda_.1} parent=11 // pred_check_branch
          %425 = sbr.rel (%p423) target = $region24
        $region23: #{_lambda_.1} parent=11 // pred_region
          _
        $region24: #{_lambda_.1} parent=11 // pred_fallthru
          _
        // Predicated region
        $region25: #{_lambda_.1} parent=11 // pred_check
          %p426 = pneg %p161
        $region26: #{_lambda_.1} parent=11 // pred_check_branch
          %428 = sbr.rel (%p426) target = $region28
        $region27: #{_lambda_.1} parent=11 // pred_region
          _
        $region28: #{_lambda_.1} parent=11 // pred_fallthru
          _
        // Predicated region
        $region29: #{_lambda_.1} parent=11 // pred_check
          %p429 = pneg %p182
        $region30: #{_lambda_.1} parent=11 // pred_check_branch
          %431 = sbr.rel (%p429) target = $region32
        $region31: #{_lambda_.1} parent=11 // pred_region
          _
        $region32: #{_lambda_.1} parent=11 // pred_fallthru
          _
        // Predicated region
        $region33: #{_lambda_.1} parent=11 // pred_check
          %p432 = pneg %p203
        $region34: #{_lambda_.1} parent=11 // pred_check_branch
          %434 = sbr.rel (%p432) target = $region36
        $region35: #{_lambda_.1} parent=11 // pred_region
          _
        $region36: #{_lambda_.1} parent=11 // pred_fallthru
          _
        // Predicated region
        $region37: #{_lambda_.1} parent=11 // pred_check
          %p435 = pneg %p224
        $region38: #{_lambda_.1} parent=11 // pred_check_branch
          %437 = sbr.rel (%p435) target = $region40
        $region39: #{_lambda_.1} parent=11 // pred_region
          _
        $region40: #{_lambda_.1} parent=11 // pred_fallthru
          _
        // Predicated region
        $region41: #{_lambda_.1} parent=11 // pred_check
          %p438 = pneg %p245
        $region42: #{_lambda_.1} parent=11 // pred_check_branch
          %440 = sbr.rel (%p438) target = $region44
        $region43: #{_lambda_.1} parent=11 // pred_region
          _
        $region44: #{_lambda_.1} parent=11 // pred_fallthru
          _
        // Predicated region
        $region45: #{_lambda_.1} parent=11 // pred_check
          %p441 = pneg %p266
        $region46: #{_lambda_.1} parent=11 // pred_check_branch
          %443 = sbr.rel (%p441) target = $region48
        $region47: #{_lambda_.1} parent=11 // pred_region
          _
        $region48: #{_lambda_.1} parent=11 // pred_fallthru
          _
        // Predicated region
        $region49: #{_lambda_.1} parent=11 // pred_check
          %p444 = pneg %p287
        $region50: #{_lambda_.1} parent=11 // pred_check_branch
          %446 = sbr.rel (%p444) target = $region52
        $region51: #{_lambda_.1} parent=11 // pred_region
          _
        $region52: #{_lambda_.1} parent=11 // pred_fallthru
          _
        // Predicated region
        $region53: #{_lambda_.1} parent=11 // pred_check
          %p447 = pneg %p308
        $region54: #{_lambda_.1} parent=11 // pred_check_branch
          %449 = sbr.rel (%p447) target = $region56
        $region55: #{_lambda_.1} parent=11 // pred_region
          _
        $region56: #{_lambda_.1} parent=11 // pred_fallthru
          _
        // Predicated region
        $region57: #{_lambda_.1} parent=11 // pred_check
          %p450 = pneg %p329
        $region58: #{_lambda_.1} parent=11 // pred_check_branch
          %452 = sbr.rel (%p450) target = $region60
        $region59: #{_lambda_.1} parent=11 // pred_region
          _
        $region60: #{_lambda_.1} parent=11 // pred_fallthru
          _
        // Predicated region
        $region61: #{_lambda_.1} parent=11 // pred_check
          %p453 = pneg %p350
        $region62: #{_lambda_.1} parent=11 // pred_check_branch
          %455 = sbr.rel (%p453) target = $region64
        $region63: #{_lambda_.1} parent=11 // pred_region
          _
        $region64: #{_lambda_.1} parent=11 // pred_fallthru
          _
      $region12: #{_lambda_.1} parent=5 // pred_fallthru
        _
      %p456 = scmp.lt.s32.totalorder %s25, 2
      // Predicated region
      $region65: #{_lambda_.1} parent=5 // pred_check
        %p457 = pneg %p456
      $region66: #{_lambda_.1} parent=5 // pred_check_branch
        %459 = sbr.rel (%p457) target = $region68
      $region67: #{_lambda_.1} parent=5 // pred_region
        // Predicated region
        $region69: #{_lambda_.1} parent=67 // pred_check
          %p460 = pneg %p45
        $region70: #{_lambda_.1} parent=67 // pred_check_branch
          %462 = sbr.rel (%p460) target = $region72
        $region71: #{_lambda_.1} parent=67 // pred_region
          %p463 = scmp.lt.s32.totalorder %s25, 1
          %s464 = scalar_select %p463, %s25, 1
          %s465 = smul.addr %s464, 4
          %s466 = scalar_lea.vmem %s0, %s465
        $region72: #{_lambda_.1} parent=67 // pred_fallthru
          _
        // Predicated region
        $region73: #{_lambda_.1} parent=67 // pred_check
          %p467 = pneg %p71
        $region74: #{_lambda_.1} parent=67 // pred_check_branch
          %469 = sbr.rel (%p467) target = $region76
        $region75: #{_lambda_.1} parent=67 // pred_region
          %s470 = sand.u32 %s61, 1
          %s471 = sand.u32 %s61, 1
          %s472 = smul.addr %s471, 8
          %s473 = scalar_lea.vmem [#allocation3], %s472
          %s474 = smul.addr %s25, 4
          %s475 = scalar_lea.vmem %s1, %s474
          // Predicated region
          $region77: #{_lambda_.1} parent=75 // pred_check
            _
          $region78: #{_lambda_.1} parent=75 // pred_check_branch
            %477 = sbr.rel (0) target = $region80
          $region79: #{_lambda_.1} parent=75 // pred_region
            // Predicated region
            $region81: #{_lambda_.1} parent=79 // pred_check
              _
            $region82: #{_lambda_.1} parent=79 // pred_check_branch
              %479 = sbr.rel target = $region84
            $region83: #{_lambda_.1} parent=79 // pred_region
              // Predicated region
              $region96: #{_lambda_.1} parent=83 // pred_check
                _
              $region97: #{_lambda_.1} parent=83 // pred_check_branch
                %496 = sbr.rel (0) target = $region99
              $region98: #{_lambda_.1} parent=83 // pred_region
                loop: start=0, step=1, limit=1
                $region100: #{_lambda_.1} parent=98 // loop_pre_header
                  _
                $region101: #{_lambda_.1} parent=98 // loop_header
                  %s498 = sphi 0, %s502
                  %p499 = scmp.ge.s32.totalorder %s498, 1
                  %s503 = sphi %s475, %s475
                  %s504 = sphi %s473, %s473
                $region102: #{_lambda_.1} parent=98 // loop_header_branch
                  %501 = sbr.rel (%p499) target = $region106
                $region103: #{_lambda_.1} parent=98 // loop_body
                  _
                $region104: #{_lambda_.1} parent=98 // loop_footer
                  %s502 = sadd.s32 1, %s498
                $region105: #{_lambda_.1} parent=98 // loop_footer_branch
                  %497 = sbr.rel target = $region101
                $region106: #{_lambda_.1} parent=98 // loop_exit
                  _
                loop: start=0, step=1, limit=1
                $region107: #{_lambda_.1} parent=98 // loop_pre_header
                  _
                $region108: #{_lambda_.1} parent=98 // loop_header
                  %s507 = sphi 0, %s511
                  %p508 = scmp.ge.s32.totalorder %s507, 1
                  %s512 = sphi %s475, %s475
                  %s513 = sphi %s473, %s473
                $region109: #{_lambda_.1} parent=98 // loop_header_branch
                  %510 = sbr.rel (%p508) target = $region113
                $region110: #{_lambda_.1} parent=98 // loop_body
                  %v514 = vld [vmem:[%s512] sm:$0xf]
                  %515 = vst [vmem:[%s513] sm:$0xf] %v514
                  %v516 = vld [vmem:[%s512 + $0x8] sm:$0xf]
                  %517 = vst [vmem:[%s513 + $0x4] sm:$0xf] %v516
                $region111: #{_lambda_.1} parent=98 // loop_footer
                  %s511 = sadd.s32 1, %s507
                $region112: #{_lambda_.1} parent=98 // loop_footer_branch
                  %506 = sbr.rel target = $region108
                $region113: #{_lambda_.1} parent=98 // loop_exit
                  _
              $region99: #{_lambda_.1} parent=83 // pred_fallthru
                _
            $region84: #{_lambda_.1} parent=79 // pred_fallthru
              _
            // Predicated region
            $region85: #{_lambda_.1} parent=79 // pred_check
              _
            $region86: #{_lambda_.1} parent=79 // pred_check_branch
              %481 = sbr.rel (0) target = $region88
            $region87: #{_lambda_.1} parent=79 // pred_region
              loop: start=0, step=1, limit=1
              $region89: #{_lambda_.1} parent=87 // loop_pre_header
                _
              $region90: #{_lambda_.1} parent=87 // loop_header
                %s484 = sphi 0, %s488
                %p485 = scmp.ge.s32.totalorder %s484, 1
                %s489 = sphi %s475, %s475
                %s490 = sphi %s473, %s473
              $region91: #{_lambda_.1} parent=87 // loop_header_branch
                %487 = sbr.rel (%p485) target = $region95
              $region92: #{_lambda_.1} parent=87 // loop_body
                %v491 = vld [vmem:[%s489] sm:$0xf]
                %492 = vst [vmem:[%s490] sm:$0xf] %v491
                %v493 = vld [vmem:[%s489 + $0x8] sm:$0xf]
                %494 = vst [vmem:[%s490 + $0x4] sm:$0xf] %v493
              $region93: #{_lambda_.1} parent=87 // loop_footer
                %s488 = sadd.s32 1, %s484
              $region94: #{_lambda_.1} parent=87 // loop_footer_branch
                %483 = sbr.rel target = $region90
              $region95: #{_lambda_.1} parent=87 // loop_exit
                _
            $region88: #{_lambda_.1} parent=79 // pred_fallthru
              _
          $region80: #{_lambda_.1} parent=75 // pred_fallthru
            _
          %518 = vnop
        $region76: #{_lambda_.1} parent=67 // pred_fallthru
          _
      $region68: #{_lambda_.1} parent=5 // pred_fallthru
        _
      %p519 = scmp.le.s32.totalorder 1, %s25
      %p520 = scmp.lt.s32.totalorder %s25, 3
      %p521 = pnand %p519, %p520
      %p522 = pneg %p521
      // Predicated region
      $region114: #{_lambda_.1} parent=5 // pred_check
        _
      $region115: #{_lambda_.1} parent=5 // pred_check_branch
        %524 = sbr.rel (%p521) target = $region117
      $region116: #{_lambda_.1} parent=5 // pred_region
        %s525 = ssub.s32 %s25, 1
        %s526 = sand.u32 %s64, 1
        %s527 = sand.u32 %s64, 1
        %s528 = smul.addr %s527, 8
        %s529 = scalar_lea.vmem [#allocation3], %s528
        // Predicated region
        $region118: #{_lambda_.1} parent=116 // pred_check
          %p530 = pneg %p77
        $region119: #{_lambda_.1} parent=116 // pred_check_branch
          %532 = sbr.rel (%p530) target = $region121
        $region120: #{_lambda_.1} parent=116 // pred_region
          _
        $region121: #{_lambda_.1} parent=116 // pred_fallthru
          _
        %p533 = scmp.lt.s32.totalorder %s30, 1
        %s534 = scalar_select %p533, %s30, 1
        %s535 = smul.addr %s534, 4
        %s536 = scalar_lea.vmem %s0, %s535
        %p537 = pneg %p51
        %p538 = pneg %p48
        %s539 = sand.u32 %s64, 1
        %s540 = sand.u32 %s64, 1
        %s541 = smul.addr %s540, 8
        %s542 = scalar_lea.vmem [#allocation3], %s541
        %p543 = pneg %p77
        %p544 = pneg %p74
        %p545 = pneg %p98
        %p546 = pneg %p95
        %p547 = pneg %p119
        %p548 = pneg %p116
        %p549 = pneg %p140
        %p550 = pneg %p137
        %p551 = pneg %p161
        %p552 = pneg %p158
        %p553 = pneg %p182
        %p554 = pneg %p179
        %p555 = pneg %p203
        %p556 = pneg %p200
        %p557 = pneg %p224
        %p558 = pneg %p221
        %p559 = pneg %p245
        %p560 = pneg %p242
        %p561 = pneg %p266
        %p562 = pneg %p263
        %p563 = pneg %p287
        %p564 = pneg %p284
        %p565 = pneg %p308
        %p566 = pneg %p305
        %p567 = pneg %p329
        %p568 = pneg %p326
        %p569 = pneg %p350
        %p570 = pneg %p347
        %p571 = pneg %p376
        %p572 = pneg %p373
        %p573 = scmp.lt.s32.totalorder %s30, 1
        %s574 = scalar_select %p573, %s30, 1
        %s575 = smul.addr %s574, 4
        %s576 = scalar_lea.vmem %s15, %s575
        %p577 = pneg %p402
        %p578 = pneg %p399
        %s579 = sand.u32 %s389, 1
        %s580 = sand.u32 %s389, 1
        %s581 = smul.addr %s580, 8
        %s582 = scalar_lea.vmem [#allocation4], %s581
        %p583 = scmp.lt.s32.totalorder %s30, 1
        %s584 = scalar_select %p583, %s30, 1
        %s585 = smul.addr %s584, 4
        %s586 = scalar_lea.vmem %s0, %s585
        %p587 = scmp.lt.s32.totalorder %s30, 1
        %s588 = scalar_select %p587, %s30, 1
        %s589 = smul.addr %s588, 4
        %s590 = scalar_lea.vmem %s15, %s589
        %v591 = vld [vmem:[%s2] sm:$0xf]
        %v592 = vld [vmem:[%s586] sm:$0xf]
        %v593 = vld [vmem:[%s529] sm:$0xf]
        %594 = vxpose.xlu0.b32.start [1/16] %v592, 128
        %595 = vxpose.xlu0.b32.cont [2/16] 0.0, 128
        %596 = vxpose.xlu0.b32.cont [3/16] 0.0, 128
        %597 = vxpose.xlu0.b32.cont [4/16] 0.0, 128
        %598 = vxpose.xlu0.b32.cont [5/16] 0.0, 128
        %599 = vxpose.xlu0.b32.cont [6/16] 0.0, 128
        %600 = vxpose.xlu0.b32.cont [7/16] 0.0, 128
        %601 = vxpose.xlu0.b32.cont [8/16] 0.0, 128
        %602 = vxpose.xlu0.b32.cont [9/16] 0.0, 128
        %603 = vxpose.xlu0.b32.cont [10/16] 0.0, 128
        %604 = vxpose.xlu0.b32.cont [11/16] 0.0, 128
        %605 = vxpose.xlu0.b32.cont [12/16] 0.0, 128
        %606 = vxpose.xlu0.b32.cont [13/16] 0.0, 128
        %607 = vxpose.xlu0.b32.cont [14/16] 0.0, 128
        %608 = vxpose.xlu0.b32.cont [15/16] 0.0, 128
        %609 = vxpose.xlu0.b32.end [16/16] 0.0, 128
        %v610 = vpop.trf.xlu0
        %v611 = vpop.trf.xlu0
        %v612 = vpop.trf.xlu0
        %v613 = vpop.trf.xlu0
        %v614 = vpop.trf.xlu0
        %v615 = vpop.trf.xlu0
        %v616 = vpop.trf.xlu0
        %v617 = vpop.trf.xlu0
        %v618 = vpop.trf.xlu0
        %v619 = vpop.trf.xlu0
        %v620 = vpop.trf.xlu0
        %v621 = vpop.trf.xlu0
        %v622 = vpop.trf.xlu0
        %v623 = vpop.trf.xlu0
        %v624 = vpop.trf.xlu0
        %v625 = vpop.trf.xlu0
        %vm626 = vcmask 31744
        %v628 = vsel %vm626, %v610, 0
        %v631 = vsel %vm626, %v591, 0
        %633 = vmatprep.subr.mxu0 0.0
        %634 = vmatpush1.xpose.msra.mxu0 %v631
        %635 = vmatprep.subr.mxu0 0.0
        %636 = vmatpush1.xpose.msra.mxu0 0.0
        %637 = vmatprep.subr.mxu0 0.0
        %638 = vmatpush1.xpose.msra.mxu0 0.0
        %639 = vmatprep.subr.mxu0 0.0
        %640 = vmatpush1.xpose.msra.mxu0 0.0
        %641 = vmatprep.subr.mxu0 0.0
        %642 = vmatpush1.xpose.msra.mxu0 0.0
        %643 = vmatprep.subr.mxu0 0.0
        %644 = vmatpush1.xpose.msra.mxu0 0.0
        %645 = vmatprep.subr.mxu0 0.0
        %646 = vmatpush1.xpose.msra.mxu0 0.0
        %647 = vmatprep.subr.mxu0 0.0
        %648 = vmatpush1.xpose.msra.mxu0 0.0
        %649 = vmatprep.subr.mxu0 0.0
        %650 = vmatpush1.xpose.msra.mxu0 0.0
        %651 = vmatprep.subr.mxu0 0.0
        %652 = vmatpush1.xpose.msra.mxu0 0.0
        %653 = vmatprep.subr.mxu0 0.0
        %654 = vmatpush1.xpose.msra.mxu0 0.0
        %655 = vmatprep.subr.mxu0 0.0
        %656 = vmatpush1.xpose.msra.mxu0 0.0
        %657 = vmatprep.subr.mxu0 0.0
        %658 = vmatpush1.xpose.msra.mxu0 0.0
        %659 = vmatprep.subr.mxu0 0.0
        %660 = vmatpush1.xpose.msra.mxu0 0.0
        %661 = vmatprep.subr.mxu0 0.0
        %662 = vmatpush1.xpose.msra.mxu0 0.0
        %663 = vmatprep.subr.mxu0 0.0
        %664 = vmatpush1.xpose.msra.mxu0 0.0
        %665 = vmatprep.subr.mxu0 0.0
        %666 = vmatpush1.xpose.msra.mxu0 0.0
        %667 = vmatprep.subr.mxu0 0.0
        %668 = vmatpush1.xpose.msra.mxu0 0.0
        %669 = vmatprep.subr.mxu0 0.0
        %670 = vmatpush1.xpose.msra.mxu0 0.0
        %671 = vmatprep.subr.mxu0 0.0
        %672 = vmatpush1.xpose.msra.mxu0 0.0
        %673 = vmatprep.subr.mxu0 0.0
        %674 = vmatpush1.xpose.msra.mxu0 0.0
        %675 = vmatprep.subr.mxu0 0.0
        %676 = vmatpush1.xpose.msra.mxu0 0.0
        %677 = vmatprep.subr.mxu0 0.0
        %678 = vmatpush1.xpose.msra.mxu0 0.0
        %679 = vmatprep.subr.mxu0 0.0
        %680 = vmatpush1.xpose.msra.mxu0 0.0
        %681 = vmatprep.subr.mxu0 0.0
        %682 = vmatpush1.xpose.msra.mxu0 0.0
        %683 = vmatprep.subr.mxu0 0.0
        %684 = vmatpush1.xpose.msra.mxu0 0.0
        %685 = vmatprep.subr.mxu0 0.0
        %686 = vmatpush1.xpose.msra.mxu0 0.0
        %687 = vmatprep.subr.mxu0 0.0
        %688 = vmatpush1.xpose.msra.mxu0 0.0
        %689 = vmatprep.subr.mxu0 0.0
        %690 = vmatpush1.xpose.msra.mxu0 0.0
        %691 = vmatprep.subr.mxu0 0.0
        %692 = vmatpush1.xpose.msra.mxu0 0.0
        %693 = vmatprep.subr.mxu0 0.0
        %694 = vmatpush1.xpose.msra.mxu0 0.0
        %695 = vmatprep.subr.mxu0 0.0
        %696 = vmatpush1.xpose.msra.mxu0 0.0
        %697 = vmatprep.mubr.f32.mxu0 0.0
        %698 = vmatmul.mubr.f32.gmra.mrb[0].mxu0 %v628
        %v699 = vpop.f32.mrb[0].mxu0
        %v700 = vadd.f32 0.0, %v699
        %v701 = vpop.f32.mrb[0].mxu0
        %702 = vdwg.mxu0
        %703 = vxpose.xlu0.b32.start [1/16] %v700, 128
        %704 = vxpose.xlu0.b32.cont [2/16] 0.0, 128
        %705 = vxpose.xlu0.b32.cont [3/16] 0.0, 128
        %706 = vxpose.xlu0.b32.cont [4/16] 0.0, 128
        %707 = vxpose.xlu0.b32.cont [5/16] 0.0, 128
        %708 = vxpose.xlu0.b32.cont [6/16] 0.0, 128
        %709 = vxpose.xlu0.b32.cont [7/16] 0.0, 128
        %710 = vxpose.xlu0.b32.cont [8/16] 0.0, 128
        %711 = vxpose.xlu0.b32.cont [9/16] 0.0, 128
        %712 = vxpose.xlu0.b32.cont [10/16] 0.0, 128
        %713 = vxpose.xlu0.b32.cont [11/16] 0.0, 128
        %714 = vxpose.xlu0.b32.cont [12/16] 0.0, 128
        %715 = vxpose.xlu0.b32.cont [13/16] 0.0, 128
        %716 = vxpose.xlu0.b32.cont [14/16] 0.0, 128
        %717 = vxpose.xlu0.b32.cont [15/16] 0.0, 128
        %718 = vxpose.xlu0.b32.end [16/16] 0.0, 128
        %v719 = vpop.trf.xlu0
        %v720 = vpop.trf.xlu0
        %v721 = vpop.trf.xlu0
        %v722 = vpop.trf.xlu0
        %v723 = vpop.trf.xlu0
        %v724 = vpop.trf.xlu0
        %v725 = vpop.trf.xlu0
        %v726 = vpop.trf.xlu0
        %v727 = vpop.trf.xlu0
        %v728 = vpop.trf.xlu0
        %v729 = vpop.trf.xlu0
        %v730 = vpop.trf.xlu0
        %v731 = vpop.trf.xlu0
        %v732 = vpop.trf.xlu0
        %v733 = vpop.trf.xlu0
        %v734 = vpop.trf.xlu0
        %v736 = vsel %vm626, %v700, 0
        %738 = vmatprep.subr.mxu0 0.0
        %739 = vmatpush1.xpose.msra.mxu0 %v631
        %740 = vmatprep.subr.mxu0 0.0
        %741 = vmatpush1.xpose.msra.mxu0 0.0
        %742 = vmatprep.subr.mxu0 0.0
        %743 = vmatpush1.xpose.msra.mxu0 0.0
        %744 = vmatprep.subr.mxu0 0.0
        %745 = vmatpush1.xpose.msra.mxu0 0.0
        %746 = vmatprep.subr.mxu0 0.0
        %747 = vmatpush1.xpose.msra.mxu0 0.0
        %748 = vmatprep.subr.mxu0 0.0
        %749 = vmatpush1.xpose.msra.mxu0 0.0
        %750 = vmatprep.subr.mxu0 0.0
        %751 = vmatpush1.xpose.msra.mxu0 0.0
        %752 = vmatprep.subr.mxu0 0.0
        %753 = vmatpush1.xpose.msra.mxu0 0.0
        %754 = vmatprep.subr.mxu0 0.0
        %755 = vmatpush1.xpose.msra.mxu0 0.0
        %756 = vmatprep.subr.mxu0 0.0
        %757 = vmatpush1.xpose.msra.mxu0 0.0
        %758 = vmatprep.subr.mxu0 0.0
        %759 = vmatpush1.xpose.msra.mxu0 0.0
        %760 = vmatprep.subr.mxu0 0.0
        %761 = vmatpush1.xpose.msra.mxu0 0.0
        %762 = vmatprep.subr.mxu0 0.0
        %763 = vmatpush1.xpose.msra.mxu0 0.0
        %764 = vmatprep.subr.mxu0 0.0
        %765 = vmatpush1.xpose.msra.mxu0 0.0
        %766 = vmatprep.subr.mxu0 0.0
        %767 = vmatpush1.xpose.msra.mxu0 0.0
        %768 = vmatprep.subr.mxu0 0.0
        %769 = vmatpush1.xpose.msra.mxu0 0.0
        %770 = vmatprep.subr.mxu0 0.0
        %771 = vmatpush1.xpose.msra.mxu0 0.0
        %772 = vmatprep.subr.mxu0 0.0
        %773 = vmatpush1.xpose.msra.mxu0 0.0
        %774 = vmatprep.subr.mxu0 0.0
        %775 = vmatpush1.xpose.msra.mxu0 0.0
        %776 = vmatprep.subr.mxu0 0.0
        %777 = vmatpush1.xpose.msra.mxu0 0.0
        %778 = vmatprep.subr.mxu0 0.0
        %779 = vmatpush1.xpose.msra.mxu0 0.0
        %780 = vmatprep.subr.mxu0 0.0
        %781 = vmatpush1.xpose.msra.mxu0 0.0
        %782 = vmatprep.subr.mxu0 0.0
        %783 = vmatpush1.xpose.msra.mxu0 0.0
        %784 = vmatprep.subr.mxu0 0.0
        %785 = vmatpush1.xpose.msra.mxu0 0.0
        %786 = vmatprep.subr.mxu0 0.0
        %787 = vmatpush1.xpose.msra.mxu0 0.0
        %788 = vmatprep.subr.mxu0 0.0
        %789 = vmatpush1.xpose.msra.mxu0 0.0
        %790 = vmatprep.subr.mxu0 0.0
        %791 = vmatpush1.xpose.msra.mxu0 0.0
        %792 = vmatprep.subr.mxu0 0.0
        %793 = vmatpush1.xpose.msra.mxu0 0.0
        %794 = vmatprep.subr.mxu0 0.0
        %795 = vmatpush1.xpose.msra.mxu0 0.0
        %796 = vmatprep.subr.mxu0 0.0
        %797 = vmatpush1.xpose.msra.mxu0 0.0
        %798 = vmatprep.subr.mxu0 0.0
        %799 = vmatpush1.xpose.msra.mxu0 0.0
        %800 = vmatprep.subr.mxu0 0.0
        %801 = vmatpush1.xpose.msra.mxu0 0.0
        %802 = vmatprep.mubr.f32.mxu0 0.0
        %803 = vmatmul.mubr.f32.gmra.mrb[0].mxu0 %v736
        %v804 = vpop.f32.mrb[0].mxu0
        %v805 = vadd.f32 0.0, %v804
        %v806 = vpop.f32.mrb[0].mxu0
        %807 = vdwg.mxu0
        %808 = vxpose.xlu0.b32.start [1/16] %v805, 128
        %809 = vxpose.xlu0.b32.cont [2/16] 0.0, 128
        %810 = vxpose.xlu0.b32.cont [3/16] 0.0, 128
        %811 = vxpose.xlu0.b32.cont [4/16] 0.0, 128
        %812 = vxpose.xlu0.b32.cont [5/16] 0.0, 128
        %813 = vxpose.xlu0.b32.cont [6/16] 0.0, 128
        %814 = vxpose.xlu0.b32.cont [7/16] 0.0, 128
        %815 = vxpose.xlu0.b32.cont [8/16] 0.0, 128
        %816 = vxpose.xlu0.b32.cont [9/16] 0.0, 128
        %817 = vxpose.xlu0.b32.cont [10/16] 0.0, 128
        %818 = vxpose.xlu0.b32.cont [11/16] 0.0, 128
        %819 = vxpose.xlu0.b32.cont [12/16] 0.0, 128
        %820 = vxpose.xlu0.b32.cont [13/16] 0.0, 128
        %821 = vxpose.xlu0.b32.cont [14/16] 0.0, 128
        %822 = vxpose.xlu0.b32.cont [15/16] 0.0, 128
        %823 = vxpose.xlu0.b32.end [16/16] 0.0, 128
        %v824 = vpop.trf.xlu0
        %v825 = vpop.trf.xlu0
        %v826 = vpop.trf.xlu0
        %v827 = vpop.trf.xlu0
        %v828 = vpop.trf.xlu0
        %v829 = vpop.trf.xlu0
        %v830 = vpop.trf.xlu0
        %v831 = vpop.trf.xlu0
        %v832 = vpop.trf.xlu0
        %v833 = vpop.trf.xlu0
        %v834 = vpop.trf.xlu0
        %v835 = vpop.trf.xlu0
        %v836 = vpop.trf.xlu0
        %v837 = vpop.trf.xlu0
        %v838 = vpop.trf.xlu0
        %v839 = vpop.trf.xlu0
        %v840 = vmul.f32 %v824, 2.0
        %v841 = vsub.f32 %v840, %v592
        %v842 = vld [vmem:[%s3] sm:$0x1]
        %s843 = scalar_lea.vmem %s3, 1
        %v844 = vld [vmem:[%s843] sm:$0x1]
        %vm845 = vcmask 7168
        %v847 = vsel %vm845, %v719, 0
        %vm849 = vcmask 1040384
        %v851 = vsel %vm849, %v844, 0
        %853 = vmatprep.subr.mxu0 0.0
        %854 = vmatpush1.msra.mxu0 %v851
        %855 = vmatprep.subr.mxu0 0.0
        %856 = vmatpush1.msra.mxu0 0.0
        %857 = vmatprep.subr.mxu0 0.0
        %858 = vmatpush1.msra.mxu0 0.0
        %859 = vmatprep.subr.mxu0 0.0
        %860 = vmatpush1.msra.mxu0 0.0
        %861 = vmatprep.subr.mxu0 0.0
        %862 = vmatpush1.msra.mxu0 0.0
        %863 = vmatprep.subr.mxu0 0.0
        %864 = vmatpush1.msra.mxu0 0.0
        %865 = vmatprep.subr.mxu0 0.0
        %866 = vmatpush1.msra.mxu0 0.0
        %867 = vmatprep.subr.mxu0 0.0
        %868 = vmatpush1.msra.mxu0 0.0
        %869 = vmatprep.subr.mxu0 0.0
        %870 = vmatpush1.msra.mxu0 0.0
        %871 = vmatprep.subr.mxu0 0.0
        %872 = vmatpush1.msra.mxu0 0.0
        %873 = vmatprep.subr.mxu0 0.0
        %874 = vmatpush1.msra.mxu0 0.0
        %875 = vmatprep.subr.mxu0 0.0
        %876 = vmatpush1.msra.mxu0 0.0
        %877 = vmatprep.subr.mxu0 0.0
        %878 = vmatpush1.msra.mxu0 0.0
        %879 = vmatprep.subr.mxu0 0.0
        %880 = vmatpush1.msra.mxu0 0.0
        %881 = vmatprep.subr.mxu0 0.0
        %882 = vmatpush1.msra.mxu0 0.0
        %883 = vmatprep.subr.mxu0 0.0
        %884 = vmatpush1.msra.mxu0 0.0
        %885 = vmatprep.subr.mxu0 0.0
        %886 = vmatpush1.msra.mxu0 0.0
        %887 = vmatprep.subr.mxu0 0.0
        %888 = vmatpush1.msra.mxu0 0.0
        %889 = vmatprep.subr.mxu0 0.0
        %890 = vmatpush1.msra.mxu0 0.0
        %891 = vmatprep.subr.mxu0 0.0
        %892 = vmatpush1.msra.mxu0 0.0
        %893 = vmatprep.subr.mxu0 0.0
        %894 = vmatpush1.msra.mxu0 0.0
        %895 = vmatprep.subr.mxu0 0.0
        %896 = vmatpush1.msra.mxu0 0.0
        %897 = vmatprep.subr.mxu0 0.0
        %898 = vmatpush1.msra.mxu0 0.0
        %899 = vmatprep.subr.mxu0 0.0
        %900 = vmatpush1.msra.mxu0 0.0
        %901 = vmatprep.subr.mxu0 0.0
        %902 = vmatpush1.msra.mxu0 0.0
        %903 = vmatprep.subr.mxu0 0.0
        %904 = vmatpush1.msra.mxu0 0.0
        %905 = vmatprep.subr.mxu0 0.0
        %906 = vmatpush1.msra.mxu0 0.0
        %907 = vmatprep.subr.mxu0 0.0
        %908 = vmatpush1.msra.mxu0 0.0
        %909 = vmatprep.subr.mxu0 0.0
        %910 = vmatpush1.msra.mxu0 0.0
        %911 = vmatprep.subr.mxu0 0.0
        %912 = vmatpush1.msra.mxu0 0.0
        %913 = vmatprep.subr.mxu0 0.0
        %914 = vmatpush1.msra.mxu0 0.0
        %915 = vmatprep.subr.mxu0 0.0
        %916 = vmatpush1.msra.mxu0 0.0
        %917 = vmatprep.mubr.f32.mxu0 0.0
        %918 = vmatmul.mubr.f32.gmra.mrb[0].mxu0 %v847
        %v919 = vpop.f32.mrb[0].mxu0
        %v920 = vadd.f32 0.0, %v919
        %v921 = vpop.f32.mrb[0].mxu0
        %922 = vdwg.mxu0
        %v924 = vsel %vm845, %v592, 0
        %v927 = vsel %vm849, %v842, 0
        %929 = vmatprep.subr.mxu0 0.0
        %930 = vmatpush1.msra.mxu0 %v927
        %931 = vmatprep.subr.mxu0 0.0
        %932 = vmatpush1.msra.mxu0 0.0
        %933 = vmatprep.subr.mxu0 0.0
        %934 = vmatpush1.msra.mxu0 0.0
        %935 = vmatprep.subr.mxu0 0.0
        %936 = vmatpush1.msra.mxu0 0.0
        %937 = vmatprep.subr.mxu0 0.0
        %938 = vmatpush1.msra.mxu0 0.0
        %939 = vmatprep.subr.mxu0 0.0
        %940 = vmatpush1.msra.mxu0 0.0
        %941 = vmatprep.subr.mxu0 0.0
        %942 = vmatpush1.msra.mxu0 0.0
        %943 = vmatprep.subr.mxu0 0.0
        %944 = vmatpush1.msra.mxu0 0.0
        %945 = vmatprep.subr.mxu0 0.0
        %946 = vmatpush1.msra.mxu0 0.0
        %947 = vmatprep.subr.mxu0 0.0
        %948 = vmatpush1.msra.mxu0 0.0
        %949 = vmatprep.subr.mxu0 0.0
        %950 = vmatpush1.msra.mxu0 0.0
        %951 = vmatprep.subr.mxu0 0.0
        %952 = vmatpush1.msra.mxu0 0.0
        %953 = vmatprep.subr.mxu0 0.0
        %954 = vmatpush1.msra.mxu0 0.0
        %955 = vmatprep.subr.mxu0 0.0
        %956 = vmatpush1.msra.mxu0 0.0
        %957 = vmatprep.subr.mxu0 0.0
        %958 = vmatpush1.msra.mxu0 0.0
        %959 = vmatprep.subr.mxu0 0.0
        %960 = vmatpush1.msra.mxu0 0.0
        %961 = vmatprep.subr.mxu0 0.0
        %962 = vmatpush1.msra.mxu0 0.0
        %963 = vmatprep.subr.mxu0 0.0
        %964 = vmatpush1.msra.mxu0 0.0
        %965 = vmatprep.subr.mxu0 0.0
        %966 = vmatpush1.msra.mxu0 0.0
        %967 = vmatprep.subr.mxu0 0.0
        %968 = vmatpush1.msra.mxu0 0.0
        %969 = vmatprep.subr.mxu0 0.0
        %970 = vmatpush1.msra.mxu0 0.0
        %971 = vmatprep.subr.mxu0 0.0
        %972 = vmatpush1.msra.mxu0 0.0
        %973 = vmatprep.subr.mxu0 0.0
        %974 = vmatpush1.msra.mxu0 0.0
        %975 = vmatprep.subr.mxu0 0.0
        %976 = vmatpush1.msra.mxu0 0.0
        %977 = vmatprep.subr.mxu0 0.0
        %978 = vmatpush1.msra.mxu0 0.0
        %979 = vmatprep.subr.mxu0 0.0
        %980 = vmatpush1.msra.mxu0 0.0
        %981 = vmatprep.subr.mxu0 0.0
        %982 = vmatpush1.msra.mxu0 0.0
        %983 = vmatprep.subr.mxu0 0.0
        %984 = vmatpush1.msra.mxu0 0.0
        %985 = vmatprep.subr.mxu0 0.0
        %986 = vmatpush1.msra.mxu0 0.0
        %987 = vmatprep.subr.mxu0 0.0
        %988 = vmatpush1.msra.mxu0 0.0
        %989 = vmatprep.subr.mxu0 0.0
        %990 = vmatpush1.msra.mxu0 0.0
        %991 = vmatprep.subr.mxu0 0.0
        %992 = vmatpush1.msra.mxu0 0.0
        %993 = vmatprep.mubr.f32.mxu0 0.0
        %994 = vmatmul.mubr.f32.gmra.mrb[0].mxu0 %v924
        %v995 = vpop.f32.mrb[0].mxu0
        %v996 = vadd.f32 %v920, %v995
        %v997 = vpop.f32.mrb[0].mxu0
        %998 = vdwg.mxu0
        %s999 = scalar_lea.vmem %s3, 2
        %v1000 = vld [vmem:[%s999] sm:$0x1]
        %v1002 = vsel %vm845, %v841, 0
        %v1005 = vsel %vm849, %v1000, 0
        %1007 = vmatprep.subr.mxu0 0.0
        %1008 = vmatpush1.msra.mxu0 %v1005
        %1009 = vmatprep.subr.mxu0 0.0
        %1010 = vmatpush1.msra.mxu0 0.0
        %1011 = vmatprep.subr.mxu0 0.0
        %1012 = vmatpush1.msra.mxu0 0.0
        %1013 = vmatprep.subr.mxu0 0.0
        %1014 = vmatpush1.msra.mxu0 0.0
        %1015 = vmatprep.subr.mxu0 0.0
        %1016 = vmatpush1.msra.mxu0 0.0
        %1017 = vmatprep.subr.mxu0 0.0
        %1018 = vmatpush1.msra.mxu0 0.0
        %1019 = vmatprep.subr.mxu0 0.0
        %1020 = vmatpush1.msra.mxu0 0.0
        %1021 = vmatprep.subr.mxu0 0.0
        %1022 = vmatpush1.msra.mxu0 0.0
        %1023 = vmatprep.subr.mxu0 0.0
        %1024 = vmatpush1.msra.mxu0 0.0
        %1025 = vmatprep.subr.mxu0 0.0
        %1026 = vmatpush1.msra.mxu0 0.0
        %1027 = vmatprep.subr.mxu0 0.0
        %1028 = vmatpush1.msra.mxu0 0.0
        %1029 = vmatprep.subr.mxu0 0.0
        %1030 = vmatpush1.msra.mxu0 0.0
        %1031 = vmatprep.subr.mxu0 0.0
        %1032 = vmatpush1.msra.mxu0 0.0
        %1033 = vmatprep.subr.mxu0 0.0
        %1034 = vmatpush1.msra.mxu0 0.0
        %1035 = vmatprep.subr.mxu0 0.0
        %1036 = vmatpush1.msra.mxu0 0.0
        %1037 = vmatprep.subr.mxu0 0.0
        %1038 = vmatpush1.msra.mxu0 0.0
        %1039 = vmatprep.subr.mxu0 0.0
        %1040 = vmatpush1.msra.mxu0 0.0
        %1041 = vmatprep.subr.mxu0 0.0
        %1042 = vmatpush1.msra.mxu0 0.0
        %1043 = vmatprep.subr.mxu0 0.0
        %1044 = vmatpush1.msra.mxu0 0.0
        %1045 = vmatprep.subr.mxu0 0.0
        %1046 = vmatpush1.msra.mxu0 0.0
        %1047 = vmatprep.subr.mxu0 0.0
        %1048 = vmatpush1.msra.mxu0 0.0
        %1049 = vmatprep.subr.mxu0 0.0
        %1050 = vmatpush1.msra.mxu0 0.0
        %1051 = vmatprep.subr.mxu0 0.0
        %1052 = vmatpush1.msra.mxu0 0.0
        %1053 = vmatprep.subr.mxu0 0.0
        %1054 = vmatpush1.msra.mxu0 0.0
        %1055 = vmatprep.subr.mxu0 0.0
        %1056 = vmatpush1.msra.mxu0 0.0
        %1057 = vmatprep.subr.mxu0 0.0
        %1058 = vmatpush1.msra.mxu0 0.0
        %1059 = vmatprep.subr.mxu0 0.0
        %1060 = vmatpush1.msra.mxu0 0.0
        %1061 = vmatprep.subr.mxu0 0.0
        %1062 = vmatpush1.msra.mxu0 0.0
        %1063 = vmatprep.subr.mxu0 0.0
        %1064 = vmatpush1.msra.mxu0 0.0
        %1065 = vmatprep.subr.mxu0 0.0
        %1066 = vmatpush1.msra.mxu0 0.0
        %1067 = vmatprep.subr.mxu0 0.0
        %1068 = vmatpush1.msra.mxu0 0.0
        %1069 = vmatprep.subr.mxu0 0.0
        %1070 = vmatpush1.msra.mxu0 0.0
        %1071 = vmatprep.mubr.f32.mxu0 0.0
        %1072 = vmatmul.mubr.f32.gmra.mrb[0].mxu0 %v1002
        %v1073 = vpop.f32.mrb[0].mxu0
        %v1074 = vadd.f32 0.0, %v1073
        %v1075 = vpop.f32.mrb[0].mxu0
        %1076 = vdwg.mxu0
        %v1077 = vadd.f32 %v996, %v1074
        %1078 = vxpose.xlu0.b32.start [1/16] %v593, 128
        %1079 = vxpose.xlu0.b32.cont [2/16] 0.0, 128
        %1080 = vxpose.xlu0.b32.cont [3/16] 0.0, 128
        %1081 = vxpose.xlu0.b32.cont [4/16] 0.0, 128
        %1082 = vxpose.xlu0.b32.cont [5/16] 0.0, 128
        %1083 = vxpose.xlu0.b32.cont [6/16] 0.0, 128
        %1084 = vxpose.xlu0.b32.cont [7/16] 0.0, 128
        %1085 = vxpose.xlu0.b32.cont [8/16] 0.0, 128
        %1086 = vxpose.xlu0.b32.cont [9/16] 0.0, 128
        %1087 = vxpose.xlu0.b32.cont [10/16] 0.0, 128
        %1088 = vxpose.xlu0.b32.cont [11/16] 0.0, 128
        %1089 = vxpose.xlu0.b32.cont [12/16] 0.0, 128
        %1090 = vxpose.xlu0.b32.cont [13/16] 0.0, 128
        %1091 = vxpose.xlu0.b32.cont [14/16] 0.0, 128
        %1092 = vxpose.xlu0.b32.cont [15/16] 0.0, 128
        %1093 = vxpose.xlu0.b32.end [16/16] 0.0, 128
        %v1094 = vpop.trf.xlu0
        %v1095 = vpop.trf.xlu0
        %v1096 = vpop.trf.xlu0
        %v1097 = vpop.trf.xlu0
        %v1098 = vpop.trf.xlu0
        %v1099 = vpop.trf.xlu0
        %v1100 = vpop.trf.xlu0
        %v1101 = vpop.trf.xlu0
        %v1102 = vpop.trf.xlu0
        %v1103 = vpop.trf.xlu0
        %v1104 = vpop.trf.xlu0
        %v1105 = vpop.trf.xlu0
        %v1106 = vpop.trf.xlu0
        %v1107 = vpop.trf.xlu0
        %v1108 = vpop.trf.xlu0
        %v1109 = vpop.trf.xlu0
        %v1111 = vsel %vm626, %v1094, 0
        %1113 = vmatprep.subr.mxu0 0.0
        %1114 = vmatpush1.xpose.msra.mxu0 %v631
        %1115 = vmatprep.subr.mxu0 0.0
        %1116 = vmatpush1.xpose.msra.mxu0 0.0
        %1117 = vmatprep.subr.mxu0 0.0
        %1118 = vmatpush1.xpose.msra.mxu0 0.0
        %1119 = vmatprep.subr.mxu0 0.0
        %1120 = vmatpush1.xpose.msra.mxu0 0.0
        %1121 = vmatprep.subr.mxu0 0.0
        %1122 = vmatpush1.xpose.msra.mxu0 0.0
        %1123 = vmatprep.subr.mxu0 0.0
        %1124 = vmatpush1.xpose.msra.mxu0 0.0
        %1125 = vmatprep.subr.mxu0 0.0
        %1126 = vmatpush1.xpose.msra.mxu0 0.0
        %1127 = vmatprep.subr.mxu0 0.0
        %1128 = vmatpush1.xpose.msra.mxu0 0.0
        %1129 = vmatprep.subr.mxu0 0.0
        %1130 = vmatpush1.xpose.msra.mxu0 0.0
        %1131 = vmatprep.subr.mxu0 0.0
        %1132 = vmatpush1.xpose.msra.mxu0 0.0
        %1133 = vmatprep.subr.mxu0 0.0
        %1134 = vmatpush1.xpose.msra.mxu0 0.0
        %1135 = vmatprep.subr.mxu0 0.0
        %1136 = vmatpush1.xpose.msra.mxu0 0.0
        %1137 = vmatprep.subr.mxu0 0.0
        %1138 = vmatpush1.xpose.msra.mxu0 0.0
        %1139 = vmatprep.subr.mxu0 0.0
        %1140 = vmatpush1.xpose.msra.mxu0 0.0
        %1141 = vmatprep.subr.mxu0 0.0
        %1142 = vmatpush1.xpose.msra.mxu0 0.0
        %1143 = vmatprep.subr.mxu0 0.0
        %1144 = vmatpush1.xpose.msra.mxu0 0.0
        %1145 = vmatprep.subr.mxu0 0.0
        %1146 = vmatpush1.xpose.msra.mxu0 0.0
        %1147 = vmatprep.subr.mxu0 0.0
        %1148 = vmatpush1.xpose.msra.mxu0 0.0
        %1149 = vmatprep.subr.mxu0 0.0
        %1150 = vmatpush1.xpose.msra.mxu0 0.0
        %1151 = vmatprep.subr.mxu0 0.0
        %1152 = vmatpush1.xpose.msra.mxu0 0.0
        %1153 = vmatprep.subr.mxu0 0.0
        %1154 = vmatpush1.xpose.msra.mxu0 0.0
        %1155 = vmatprep.subr.mxu0 0.0
        %1156 = vmatpush1.xpose.msra.mxu0 0.0
        %1157 = vmatprep.subr.mxu0 0.0
        %1158 = vmatpush1.xpose.msra.mxu0 0.0
        %1159 = vmatprep.subr.mxu0 0.0
        %1160 = vmatpush1.xpose.msra.mxu0 0.0
        %1161 = vmatprep.subr.mxu0 0.0
        %1162 = vmatpush1.xpose.msra.mxu0 0.0
        %1163 = vmatprep.subr.mxu0 0.0
        %1164 = vmatpush1.xpose.msra.mxu0 0.0
        %1165 = vmatprep.subr.mxu0 0.0
        %1166 = vmatpush1.xpose.msra.mxu0 0.0
        %1167 = vmatprep.subr.mxu0 0.0
        %1168 = vmatpush1.xpose.msra.mxu0 0.0
        %1169 = vmatprep.subr.mxu0 0.0
        %1170 = vmatpush1.xpose.msra.mxu0 0.0
        %1171 = vmatprep.subr.mxu0 0.0
        %1172 = vmatpush1.xpose.msra.mxu0 0.0
        %1173 = vmatprep.subr.mxu0 0.0
        %1174 = vmatpush1.xpose.msra.mxu0 0.0
        %1175 = vmatprep.subr.mxu0 0.0
        %1176 = vmatpush1.xpose.msra.mxu0 0.0
        %1177 = vmatprep.mubr.f32.mxu0 0.0
        %1178 = vmatmul.mubr.f32.gmra.mrb[0].mxu0 %v1111
        %v1179 = vpop.f32.mrb[0].mxu0
        %v1180 = vadd.f32 0.0, %v1179
        %v1181 = vpop.f32.mrb[0].mxu0
        %1182 = vdwg.mxu0
        %1183 = vxpose.xlu0.b32.start [1/16] %v1180, 128
        %1184 = vxpose.xlu0.b32.cont [2/16] 0.0, 128
        %1185 = vxpose.xlu0.b32.cont [3/16] 0.0, 128
        %1186 = vxpose.xlu0.b32.cont [4/16] 0.0, 128
        %1187 = vxpose.xlu0.b32.cont [5/16] 0.0, 128
        %1188 = vxpose.xlu0.b32.cont [6/16] 0.0, 128
        %1189 = vxpose.xlu0.b32.cont [7/16] 0.0, 128
        %1190 = vxpose.xlu0.b32.cont [8/16] 0.0, 128
        %1191 = vxpose.xlu0.b32.cont [9/16] 0.0, 128
        %1192 = vxpose.xlu0.b32.cont [10/16] 0.0, 128
        %1193 = vxpose.xlu0.b32.cont [11/16] 0.0, 128
        %1194 = vxpose.xlu0.b32.cont [12/16] 0.0, 128
        %1195 = vxpose.xlu0.b32.cont [13/16] 0.0, 128
        %1196 = vxpose.xlu0.b32.cont [14/16] 0.0, 128
        %1197 = vxpose.xlu0.b32.cont [15/16] 0.0, 128
        %1198 = vxpose.xlu0.b32.end [16/16] 0.0, 128
        %v1199 = vpop.trf.xlu0
        %v1200 = vpop.trf.xlu0
        %v1201 = vpop.trf.xlu0
        %v1202 = vpop.trf.xlu0
        %v1203 = vpop.trf.xlu0
        %v1204 = vpop.trf.xlu0
        %v1205 = vpop.trf.xlu0
        %v1206 = vpop.trf.xlu0
        %v1207 = vpop.trf.xlu0
        %v1208 = vpop.trf.xlu0
        %v1209 = vpop.trf.xlu0
        %v1210 = vpop.trf.xlu0
        %v1211 = vpop.trf.xlu0
        %v1212 = vpop.trf.xlu0
        %v1213 = vpop.trf.xlu0
        %v1214 = vpop.trf.xlu0
        %v1216 = vsel %vm626, %v1180, 0
        %1218 = vmatprep.subr.mxu0 0.0
        %1219 = vmatpush1.xpose.msra.mxu0 %v631
        %1220 = vmatprep.subr.mxu0 0.0
        %1221 = vmatpush1.xpose.msra.mxu0 0.0
        %1222 = vmatprep.subr.mxu0 0.0
        %1223 = vmatpush1.xpose.msra.mxu0 0.0
        %1224 = vmatprep.subr.mxu0 0.0
        %1225 = vmatpush1.xpose.msra.mxu0 0.0
        %1226 = vmatprep.subr.mxu0 0.0
        %1227 = vmatpush1.xpose.msra.mxu0 0.0
        %1228 = vmatprep.subr.mxu0 0.0
        %1229 = vmatpush1.xpose.msra.mxu0 0.0
        %1230 = vmatprep.subr.mxu0 0.0
        %1231 = vmatpush1.xpose.msra.mxu0 0.0
        %1232 = vmatprep.subr.mxu0 0.0
        %1233 = vmatpush1.xpose.msra.mxu0 0.0
        %1234 = vmatprep.subr.mxu0 0.0
        %1235 = vmatpush1.xpose.msra.mxu0 0.0
        %1236 = vmatprep.subr.mxu0 0.0
        %1237 = vmatpush1.xpose.msra.mxu0 0.0
        %1238 = vmatprep.subr.mxu0 0.0
        %1239 = vmatpush1.xpose.msra.mxu0 0.0
        %1240 = vmatprep.subr.mxu0 0.0
        %1241 = vmatpush1.xpose.msra.mxu0 0.0
        %1242 = vmatprep.subr.mxu0 0.0
        %1243 = vmatpush1.xpose.msra.mxu0 0.0
        %1244 = vmatprep.subr.mxu0 0.0
        %1245 = vmatpush1.xpose.msra.mxu0 0.0
        %1246 = vmatprep.subr.mxu0 0.0
        %1247 = vmatpush1.xpose.msra.mxu0 0.0
        %1248 = vmatprep.subr.mxu0 0.0
        %1249 = vmatpush1.xpose.msra.mxu0 0.0
        %1250 = vmatprep.subr.mxu0 0.0
        %1251 = vmatpush1.xpose.msra.mxu0 0.0
        %1252 = vmatprep.subr.mxu0 0.0
        %1253 = vmatpush1.xpose.msra.mxu0 0.0
        %1254 = vmatprep.subr.mxu0 0.0
        %1255 = vmatpush1.xpose.msra.mxu0 0.0
        %1256 = vmatprep.subr.mxu0 0.0
        %1257 = vmatpush1.xpose.msra.mxu0 0.0
        %1258 = vmatprep.subr.mxu0 0.0
        %1259 = vmatpush1.xpose.msra.mxu0 0.0
        %1260 = vmatprep.subr.mxu0 0.0
        %1261 = vmatpush1.xpose.msra.mxu0 0.0
        %1262 = vmatprep.subr.mxu0 0.0
        %1263 = vmatpush1.xpose.msra.mxu0 0.0
        %1264 = vmatprep.subr.mxu0 0.0
        %1265 = vmatpush1.xpose.msra.mxu0 0.0
        %1266 = vmatprep.subr.mxu0 0.0
        %1267 = vmatpush1.xpose.msra.mxu0 0.0
        %1268 = vmatprep.subr.mxu0 0.0
        %1269 = vmatpush1.xpose.msra.mxu0 0.0
        %1270 = vmatprep.subr.mxu0 0.0
        %1271 = vmatpush1.xpose.msra.mxu0 0.0
        %1272 = vmatprep.subr.mxu0 0.0
        %1273 = vmatpush1.xpose.msra.mxu0 0.0
        %1274 = vmatprep.subr.mxu0 0.0
        %1275 = vmatpush1.xpose.msra.mxu0 0.0
        %1276 = vmatprep.subr.mxu0 0.0
        %1277 = vmatpush1.xpose.msra.mxu0 0.0
        %1278 = vmatprep.subr.mxu0 0.0
        %1279 = vmatpush1.xpose.msra.mxu0 0.0
        %1280 = vmatprep.subr.mxu0 0.0
        %1281 = vmatpush1.xpose.msra.mxu0 0.0
        %1282 = vmatprep.mubr.f32.mxu0 0.0
        %1283 = vmatmul.mubr.f32.gmra.mrb[0].mxu0 %v1216
        %v1284 = vpop.f32.mrb[0].mxu0
        %v1285 = vadd.f32 0.0, %v1284
        %v1286 = vpop.f32.mrb[0].mxu0
        %1287 = vdwg.mxu0
        %1288 = vxpose.xlu0.b32.start [1/16] %v1285, 128
        %1289 = vxpose.xlu0.b32.cont [2/16] 0.0, 128
        %1290 = vxpose.xlu0.b32.cont [3/16] 0.0, 128
        %1291 = vxpose.xlu0.b32.cont [4/16] 0.0, 128
        %1292 = vxpose.xlu0.b32.cont [5/16] 0.0, 128
        %1293 = vxpose.xlu0.b32.cont [6/16] 0.0, 128
        %1294 = vxpose.xlu0.b32.cont [7/16] 0.0, 128
        %1295 = vxpose.xlu0.b32.cont [8/16] 0.0, 128
        %1296 = vxpose.xlu0.b32.cont [9/16] 0.0, 128
        %1297 = vxpose.xlu0.b32.cont [10/16] 0.0, 128
        %1298 = vxpose.xlu0.b32.cont [11/16] 0.0, 128
        %1299 = vxpose.xlu0.b32.cont [12/16] 0.0, 128
        %1300 = vxpose.xlu0.b32.cont [13/16] 0.0, 128
        %1301 = vxpose.xlu0.b32.cont [14/16] 0.0, 128
        %1302 = vxpose.xlu0.b32.cont [15/16] 0.0, 128
        %1303 = vxpose.xlu0.b32.end [16/16] 0.0, 128
        %v1304 = vpop.trf.xlu0
        %v1305 = vpop.trf.xlu0
        %v1306 = vpop.trf.xlu0
        %v1307 = vpop.trf.xlu0
        %v1308 = vpop.trf.xlu0
        %v1309 = vpop.trf.xlu0
        %v1310 = vpop.trf.xlu0
        %v1311 = vpop.trf.xlu0
        %v1312 = vpop.trf.xlu0
        %v1313 = vpop.trf.xlu0
        %v1314 = vpop.trf.xlu0
        %v1315 = vpop.trf.xlu0
        %v1316 = vpop.trf.xlu0
        %v1317 = vpop.trf.xlu0
        %v1318 = vpop.trf.xlu0
        %v1319 = vpop.trf.xlu0
        %v1320 = vmul.f32 %v1304, 2.0
        %v1321 = vsub.f32 %v1320, %v593
        %v1322 = vld [vmem:[%s4] sm:$0xff]
        %s1323 = scalar_lea.vmem %s4, 8
        %v1324 = vld [vmem:[%s1323] sm:$0xff]
        %vm1325 = vcmask 64512
        %v1327 = vsel %vm1325, %v1199, 0
        %1329 = vmatprep.subr.mxu0 0.0
        %1330 = vmatpush1.msra.mxu0 %v1324
        %1331 = vmatprep.subr.mxu0 0.0
        %1332 = vmatpush1.msra.mxu0 0.0
        %1333 = vmatprep.subr.mxu0 0.0
        %1334 = vmatpush1.msra.mxu0 0.0
        %1335 = vmatprep.subr.mxu0 0.0
        %1336 = vmatpush1.msra.mxu0 0.0
        %1337 = vmatprep.subr.mxu0 0.0
        %1338 = vmatpush1.msra.mxu0 0.0
        %1339 = vmatprep.subr.mxu0 0.0
        %1340 = vmatpush1.msra.mxu0 0.0
        %1341 = vmatprep.subr.mxu0 0.0
        %1342 = vmatpush1.msra.mxu0 0.0
        %1343 = vmatprep.subr.mxu0 0.0
        %1344 = vmatpush1.msra.mxu0 0.0
        %1345 = vmatprep.subr.mxu0 0.0
        %1346 = vmatpush1.msra.mxu0 0.0
        %1347 = vmatprep.subr.mxu0 0.0
        %1348 = vmatpush1.msra.mxu0 0.0
        %1349 = vmatprep.subr.mxu0 0.0
        %1350 = vmatpush1.msra.mxu0 0.0
        %1351 = vmatprep.subr.mxu0 0.0
        %1352 = vmatpush1.msra.mxu0 0.0
        %1353 = vmatprep.subr.mxu0 0.0
        %1354 = vmatpush1.msra.mxu0 0.0
        %1355 = vmatprep.subr.mxu0 0.0
        %1356 = vmatpush1.msra.mxu0 0.0
        %1357 = vmatprep.subr.mxu0 0.0
        %1358 = vmatpush1.msra.mxu0 0.0
        %1359 = vmatprep.subr.mxu0 0.0
        %1360 = vmatpush1.msra.mxu0 0.0
        %1361 = vmatprep.subr.mxu0 0.0
        %1362 = vmatpush1.msra.mxu0 0.0
        %1363 = vmatprep.subr.mxu0 0.0
        %1364 = vmatpush1.msra.mxu0 0.0
        %1365 = vmatprep.subr.mxu0 0.0
        %1366 = vmatpush1.msra.mxu0 0.0
        %1367 = vmatprep.subr.mxu0 0.0
        %1368 = vmatpush1.msra.mxu0 0.0
        %1369 = vmatprep.subr.mxu0 0.0
        %1370 = vmatpush1.msra.mxu0 0.0
        %1371 = vmatprep.subr.mxu0 0.0
        %1372 = vmatpush1.msra.mxu0 0.0
        %1373 = vmatprep.subr.mxu0 0.0
        %1374 = vmatpush1.msra.mxu0 0.0
        %1375 = vmatprep.subr.mxu0 0.0
        %1376 = vmatpush1.msra.mxu0 0.0
        %1377 = vmatprep.subr.mxu0 0.0
        %1378 = vmatpush1.msra.mxu0 0.0
        %1379 = vmatprep.subr.mxu0 0.0
        %1380 = vmatpush1.msra.mxu0 0.0
        %1381 = vmatprep.subr.mxu0 0.0
        %1382 = vmatpush1.msra.mxu0 0.0
        %1383 = vmatprep.subr.mxu0 0.0
        %1384 = vmatpush1.msra.mxu0 0.0
        %1385 = vmatprep.subr.mxu0 0.0
        %1386 = vmatpush1.msra.mxu0 0.0
        %1387 = vmatprep.subr.mxu0 0.0
        %1388 = vmatpush1.msra.mxu0 0.0
        %1389 = vmatprep.subr.mxu0 0.0
        %1390 = vmatpush1.msra.mxu0 0.0
        %1391 = vmatprep.subr.mxu0 0.0
        %1392 = vmatpush1.msra.mxu0 0.0
        %1393 = vmatprep.mubr.f32.mxu0 0.0
        %1394 = vmatmul.mubr.f32.gmra.mrb[0].mxu0 %v1327
        %v1395 = vpop.f32.mrb[0].mxu0
        %v1396 = vadd.f32 0.0, %v1395
        %v1397 = vpop.f32.mrb[0].mxu0
        %1398 = vdwg.mxu0
        %v1400 = vsel %vm1325, %v593, 0
        %1402 = vmatprep.subr.mxu0 0.0
        %1403 = vmatpush1.msra.mxu0 %v1322
        %1404 = vmatprep.subr.mxu0 0.0
        %1405 = vmatpush1.msra.mxu0 0.0
        %1406 = vmatprep.subr.mxu0 0.0
        %1407 = vmatpush1.msra.mxu0 0.0
        %1408 = vmatprep.subr.mxu0 0.0
        %1409 = vmatpush1.msra.mxu0 0.0
        %1410 = vmatprep.subr.mxu0 0.0
        %1411 = vmatpush1.msra.mxu0 0.0
        %1412 = vmatprep.subr.mxu0 0.0
        %1413 = vmatpush1.msra.mxu0 0.0
        %1414 = vmatprep.subr.mxu0 0.0
        %1415 = vmatpush1.msra.mxu0 0.0
        %1416 = vmatprep.subr.mxu0 0.0
        %1417 = vmatpush1.msra.mxu0 0.0
        %1418 = vmatprep.subr.mxu0 0.0
        %1419 = vmatpush1.msra.mxu0 0.0
        %1420 = vmatprep.subr.mxu0 0.0
        %1421 = vmatpush1.msra.mxu0 0.0
        %1422 = vmatprep.subr.mxu0 0.0
        %1423 = vmatpush1.msra.mxu0 0.0
        %1424 = vmatprep.subr.mxu0 0.0
        %1425 = vmatpush1.msra.mxu0 0.0
        %1426 = vmatprep.subr.mxu0 0.0
        %1427 = vmatpush1.msra.mxu0 0.0
        %1428 = vmatprep.subr.mxu0 0.0
        %1429 = vmatpush1.msra.mxu0 0.0
        %1430 = vmatprep.subr.mxu0 0.0
        %1431 = vmatpush1.msra.mxu0 0.0
        %1432 = vmatprep.subr.mxu0 0.0
        %1433 = vmatpush1.msra.mxu0 0.0
        %1434 = vmatprep.subr.mxu0 0.0
        %1435 = vmatpush1.msra.mxu0 0.0
        %1436 = vmatprep.subr.mxu0 0.0
        %1437 = vmatpush1.msra.mxu0 0.0
        %1438 = vmatprep.subr.mxu0 0.0
        %1439 = vmatpush1.msra.mxu0 0.0
        %1440 = vmatprep.subr.mxu0 0.0
        %1441 = vmatpush1.msra.mxu0 0.0
        %1442 = vmatprep.subr.mxu0 0.0
        %1443 = vmatpush1.msra.mxu0 0.0
        %1444 = vmatprep.subr.mxu0 0.0
        %1445 = vmatpush1.msra.mxu0 0.0
        %1446 = vmatprep.subr.mxu0 0.0
        %1447 = vmatpush1.msra.mxu0 0.0
        %1448 = vmatprep.subr.mxu0 0.0
        %1449 = vmatpush1.msra.mxu0 0.0
        %1450 = vmatprep.subr.mxu0 0.0
        %1451 = vmatpush1.msra.mxu0 0.0
        %1452 = vmatprep.subr.mxu0 0.0
        %1453 = vmatpush1.msra.mxu0 0.0
        %1454 = vmatprep.subr.mxu0 0.0
        %1455 = vmatpush1.msra.mxu0 0.0
        %1456 = vmatprep.subr.mxu0 0.0
        %1457 = vmatpush1.msra.mxu0 0.0
        %1458 = vmatprep.subr.mxu0 0.0
        %1459 = vmatpush1.msra.mxu0 0.0
        %1460 = vmatprep.subr.mxu0 0.0
        %1461 = vmatpush1.msra.mxu0 0.0
        %1462 = vmatprep.subr.mxu0 0.0
        %1463 = vmatpush1.msra.mxu0 0.0
        %1464 = vmatprep.subr.mxu0 0.0
        %1465 = vmatpush1.msra.mxu0 0.0
        %1466 = vmatprep.mubr.f32.mxu0 0.0
        %1467 = vmatmul.mubr.f32.gmra.mrb[0].mxu0 %v1400
        %v1468 = vpop.f32.mrb[0].mxu0
        %v1469 = vadd.f32 %v1396, %v1468
        %v1470 = vpop.f32.mrb[0].mxu0
        %1471 = vdwg.mxu0
        %s1472 = scalar_lea.vmem %s4, 16
        %v1473 = vld [vmem:[%s1472] sm:$0xff]
        %v1475 = vsel %vm1325, %v1321, 0
        %1477 = vmatprep.subr.mxu0 0.0
        %1478 = vmatpush1.msra.mxu0 %v1473
        %1479 = vmatprep.subr.mxu0 0.0
        %1480 = vmatpush1.msra.mxu0 0.0
        %1481 = vmatprep.subr.mxu0 0.0
        %1482 = vmatpush1.msra.mxu0 0.0
        %1483 = vmatprep.subr.mxu0 0.0
        %1484 = vmatpush1.msra.mxu0 0.0
        %1485 = vmatprep.subr.mxu0 0.0
        %1486 = vmatpush1.msra.mxu0 0.0
        %1487 = vmatprep.subr.mxu0 0.0
        %1488 = vmatpush1.msra.mxu0 0.0
        %1489 = vmatprep.subr.mxu0 0.0
        %1490 = vmatpush1.msra.mxu0 0.0
        %1491 = vmatprep.subr.mxu0 0.0
        %1492 = vmatpush1.msra.mxu0 0.0
        %1493 = vmatprep.subr.mxu0 0.0
        %1494 = vmatpush1.msra.mxu0 0.0
        %1495 = vmatprep.subr.mxu0 0.0
        %1496 = vmatpush1.msra.mxu0 0.0
        %1497 = vmatprep.subr.mxu0 0.0
        %1498 = vmatpush1.msra.mxu0 0.0
        %1499 = vmatprep.subr.mxu0 0.0
        %1500 = vmatpush1.msra.mxu0 0.0
        %1501 = vmatprep.subr.mxu0 0.0
        %1502 = vmatpush1.msra.mxu0 0.0
        %1503 = vmatprep.subr.mxu0 0.0
        %1504 = vmatpush1.msra.mxu0 0.0
        %1505 = vmatprep.subr.mxu0 0.0
        %1506 = vmatpush1.msra.mxu0 0.0
        %1507 = vmatprep.subr.mxu0 0.0
        %1508 = vmatpush1.msra.mxu0 0.0
        %1509 = vmatprep.subr.mxu0 0.0
        %1510 = vmatpush1.msra.mxu0 0.0
        %1511 = vmatprep.subr.mxu0 0.0
        %1512 = vmatpush1.msra.mxu0 0.0
        %1513 = vmatprep.subr.mxu0 0.0
        %1514 = vmatpush1.msra.mxu0 0.0
        %1515 = vmatprep.subr.mxu0 0.0
        %1516 = vmatpush1.msra.mxu0 0.0
        %1517 = vmatprep.subr.mxu0 0.0
        %1518 = vmatpush1.msra.mxu0 0.0
        %1519 = vmatprep.subr.mxu0 0.0
        %1520 = vmatpush1.msra.mxu0 0.0
        %1521 = vmatprep.subr.mxu0 0.0
        %1522 = vmatpush1.msra.mxu0 0.0
        %1523 = vmatprep.subr.mxu0 0.0
        %1524 = vmatpush1.msra.mxu0 0.0
        %1525 = vmatprep.subr.mxu0 0.0
        %1526 = vmatpush1.msra.mxu0 0.0
        %1527 = vmatprep.subr.mxu0 0.0
        %1528 = vmatpush1.msra.mxu0 0.0
        %1529 = vmatprep.subr.mxu0 0.0
        %1530 = vmatpush1.msra.mxu0 0.0
        %1531 = vmatprep.subr.mxu0 0.0
        %1532 = vmatpush1.msra.mxu0 0.0
        %1533 = vmatprep.subr.mxu0 0.0
        %1534 = vmatpush1.msra.mxu0 0.0
        %1535 = vmatprep.subr.mxu0 0.0
        %1536 = vmatpush1.msra.mxu0 0.0
        %1537 = vmatprep.subr.mxu0 0.0
        %1538 = vmatpush1.msra.mxu0 0.0
        %1539 = vmatprep.subr.mxu0 0.0
        %1540 = vmatpush1.msra.mxu0 0.0
        %1541 = vmatprep.mubr.f32.mxu0 0.0
        %1542 = vmatmul.mubr.f32.gmra.mrb[0].mxu0 %v1475
        %v1543 = vpop.f32.mrb[0].mxu0
        %v1544 = vadd.f32 0.0, %v1543
        %v1545 = vpop.f32.mrb[0].mxu0
        %1546 = vdwg.mxu0
        %v1547 = vadd.f32 %v1469, %v1544
        %v1548 = vadd.f32 %v1077, %v1547
        %v1549 = vld [vmem:[%s6] sm:$0x1]
        %v1551 = vlaneseq
        %v1552 = vshrl.u32 %v1551, 7
        %v1553 = vsub.s32 0, %v1552
        %v1554 = vrot.slane %v1549, %v1553
        %v1556 = vadd.f32 %v1548, %v1554
        %v1557 = vxor.u32 %v1556, 2147483648
        %v1558 = vmul.f32 %v1557, 1.442695
        %v1559 = vpow.pop %v1558
        %v1560 = vadd.f32 %v1559, 1.0
        %v1561 = vrcp.pop %v1560
        %v1562 = vmul.f32 1.0, %v1561
        %v1563 = vmul.f32 %v1562, %v593
        %1564 = vxpose.xlu0.b32.start [1/16] %v1563, 128
        %1565 = vxpose.xlu0.b32.cont [2/16] 0.0, 128
        %1566 = vxpose.xlu0.b32.cont [3/16] 0.0, 128
        %1567 = vxpose.xlu0.b32.cont [4/16] 0.0, 128
        %1568 = vxpose.xlu0.b32.cont [5/16] 0.0, 128
        %1569 = vxpose.xlu0.b32.cont [6/16] 0.0, 128
        %1570 = vxpose.xlu0.b32.cont [7/16] 0.0, 128
        %1571 = vxpose.xlu0.b32.cont [8/16] 0.0, 128
        %1572 = vxpose.xlu0.b32.cont [9/16] 0.0, 128
        %1573 = vxpose.xlu0.b32.cont [10/16] 0.0, 128
        %1574 = vxpose.xlu0.b32.cont [11/16] 0.0, 128
        %1575 = vxpose.xlu0.b32.cont [12/16] 0.0, 128
        %1576 = vxpose.xlu0.b32.cont [13/16] 0.0, 128
        %1577 = vxpose.xlu0.b32.cont [14/16] 0.0, 128
        %1578 = vxpose.xlu0.b32.cont [15/16] 0.0, 128
        %1579 = vxpose.xlu0.b32.end [16/16] 0.0, 128
        %v1580 = vpop.trf.xlu0
        %v1581 = vpop.trf.xlu0
        %v1582 = vpop.trf.xlu0
        %v1583 = vpop.trf.xlu0
        %v1584 = vpop.trf.xlu0
        %v1585 = vpop.trf.xlu0
        %v1586 = vpop.trf.xlu0
        %v1587 = vpop.trf.xlu0
        %v1588 = vpop.trf.xlu0
        %v1589 = vpop.trf.xlu0
        %v1590 = vpop.trf.xlu0
        %v1591 = vpop.trf.xlu0
        %v1592 = vpop.trf.xlu0
        %v1593 = vpop.trf.xlu0
        %v1594 = vpop.trf.xlu0
        %v1595 = vpop.trf.xlu0
        %v1597 = vsel %vm626, %v1580, 0
        %1599 = vmatprep.subr.mxu0 0.0
        %1600 = vmatpush1.xpose.msra.mxu0 %v631
        %1601 = vmatprep.subr.mxu0 0.0
        %1602 = vmatpush1.xpose.msra.mxu0 0.0
        %1603 = vmatprep.subr.mxu0 0.0
        %1604 = vmatpush1.xpose.msra.mxu0 0.0
        %1605 = vmatprep.subr.mxu0 0.0
        %1606 = vmatpush1.xpose.msra.mxu0 0.0
        %1607 = vmatprep.subr.mxu0 0.0
        %1608 = vmatpush1.xpose.msra.mxu0 0.0
        %1609 = vmatprep.subr.mxu0 0.0
        %1610 = vmatpush1.xpose.msra.mxu0 0.0
        %1611 = vmatprep.subr.mxu0 0.0
        %1612 = vmatpush1.xpose.msra.mxu0 0.0
        %1613 = vmatprep.subr.mxu0 0.0
        %1614 = vmatpush1.xpose.msra.mxu0 0.0
        %1615 = vmatprep.subr.mxu0 0.0
        %1616 = vmatpush1.xpose.msra.mxu0 0.0
        %1617 = vmatprep.subr.mxu0 0.0
        %1618 = vmatpush1.xpose.msra.mxu0 0.0
        %1619 = vmatprep.subr.mxu0 0.0
        %1620 = vmatpush1.xpose.msra.mxu0 0.0
        %1621 = vmatprep.subr.mxu0 0.0
        %1622 = vmatpush1.xpose.msra.mxu0 0.0
        %1623 = vmatprep.subr.mxu0 0.0
        %1624 = vmatpush1.xpose.msra.mxu0 0.0
        %1625 = vmatprep.subr.mxu0 0.0
        %1626 = vmatpush1.xpose.msra.mxu0 0.0
        %1627 = vmatprep.subr.mxu0 0.0
        %1628 = vmatpush1.xpose.msra.mxu0 0.0
        %1629 = vmatprep.subr.mxu0 0.0
        %1630 = vmatpush1.xpose.msra.mxu0 0.0
        %1631 = vmatprep.subr.mxu0 0.0
        %1632 = vmatpush1.xpose.msra.mxu0 0.0
        %1633 = vmatprep.subr.mxu0 0.0
        %1634 = vmatpush1.xpose.msra.mxu0 0.0
        %1635 = vmatprep.subr.mxu0 0.0
        %1636 = vmatpush1.xpose.msra.mxu0 0.0
        %1637 = vmatprep.subr.mxu0 0.0
        %1638 = vmatpush1.xpose.msra.mxu0 0.0
        %1639 = vmatprep.subr.mxu0 0.0
        %1640 = vmatpush1.xpose.msra.mxu0 0.0
        %1641 = vmatprep.subr.mxu0 0.0
        %1642 = vmatpush1.xpose.msra.mxu0 0.0
        %1643 = vmatprep.subr.mxu0 0.0
        %1644 = vmatpush1.xpose.msra.mxu0 0.0
        %1645 = vmatprep.subr.mxu0 0.0
        %1646 = vmatpush1.xpose.msra.mxu0 0.0
        %1647 = vmatprep.subr.mxu0 0.0
        %1648 = vmatpush1.xpose.msra.mxu0 0.0
        %1649 = vmatprep.subr.mxu0 0.0
        %1650 = vmatpush1.xpose.msra.mxu0 0.0
        %1651 = vmatprep.subr.mxu0 0.0
        %1652 = vmatpush1.xpose.msra.mxu0 0.0
        %1653 = vmatprep.subr.mxu0 0.0
        %1654 = vmatpush1.xpose.msra.mxu0 0.0
        %1655 = vmatprep.subr.mxu0 0.0
        %1656 = vmatpush1.xpose.msra.mxu0 0.0
        %1657 = vmatprep.subr.mxu0 0.0
        %1658 = vmatpush1.xpose.msra.mxu0 0.0
        %1659 = vmatprep.subr.mxu0 0.0
        %1660 = vmatpush1.xpose.msra.mxu0 0.0
        %1661 = vmatprep.subr.mxu0 0.0
        %1662 = vmatpush1.xpose.msra.mxu0 0.0
        %1663 = vmatprep.mubr.f32.mxu0 0.0
        %1664 = vmatmul.mubr.f32.gmra.mrb[0].mxu0 %v1597
        %v1665 = vpop.f32.mrb[0].mxu0
        %v1666 = vadd.f32 0.0, %v1665
        %v1667 = vpop.f32.mrb[0].mxu0
        %1668 = vdwg.mxu0
        %1669 = vxpose.xlu0.b32.start [1/16] %v1666, 128
        %1670 = vxpose.xlu0.b32.cont [2/16] 0.0, 128
        %1671 = vxpose.xlu0.b32.cont [3/16] 0.0, 128
        %1672 = vxpose.xlu0.b32.cont [4/16] 0.0, 128
        %1673 = vxpose.xlu0.b32.cont [5/16] 0.0, 128
        %1674 = vxpose.xlu0.b32.cont [6/16] 0.0, 128
        %1675 = vxpose.xlu0.b32.cont [7/16] 0.0, 128
        %1676 = vxpose.xlu0.b32.cont [8/16] 0.0, 128
        %1677 = vxpose.xlu0.b32.cont [9/16] 0.0, 128
        %1678 = vxpose.xlu0.b32.cont [10/16] 0.0, 128
        %1679 = vxpose.xlu0.b32.cont [11/16] 0.0, 128
        %1680 = vxpose.xlu0.b32.cont [12/16] 0.0, 128
        %1681 = vxpose.xlu0.b32.cont [13/16] 0.0, 128
        %1682 = vxpose.xlu0.b32.cont [14/16] 0.0, 128
        %1683 = vxpose.xlu0.b32.cont [15/16] 0.0, 128
        %1684 = vxpose.xlu0.b32.end [16/16] 0.0, 128
        %v1685 = vpop.trf.xlu0
        %v1686 = vpop.trf.xlu0
        %v1687 = vpop.trf.xlu0
        %v1688 = vpop.trf.xlu0
        %v1689 = vpop.trf.xlu0
        %v1690 = vpop.trf.xlu0
        %v1691 = vpop.trf.xlu0
        %v1692 = vpop.trf.xlu0
        %v1693 = vpop.trf.xlu0
        %v1694 = vpop.trf.xlu0
        %v1695 = vpop.trf.xlu0
        %v1696 = vpop.trf.xlu0
        %v1697 = vpop.trf.xlu0
        %v1698 = vpop.trf.xlu0
        %v1699 = vpop.trf.xlu0
        %v1700 = vpop.trf.xlu0
        %v1702 = vsel %vm626, %v1666, 0
        %1704 = vmatprep.subr.mxu0 0.0
        %1705 = vmatpush1.xpose.msra.mxu0 %v631
        %1706 = vmatprep.subr.mxu0 0.0
        %1707 = vmatpush1.xpose.msra.mxu0 0.0
        %1708 = vmatprep.subr.mxu0 0.0
        %1709 = vmatpush1.xpose.msra.mxu0 0.0
        %1710 = vmatprep.subr.mxu0 0.0
        %1711 = vmatpush1.xpose.msra.mxu0 0.0
        %1712 = vmatprep.subr.mxu0 0.0
        %1713 = vmatpush1.xpose.msra.mxu0 0.0
        %1714 = vmatprep.subr.mxu0 0.0
        %1715 = vmatpush1.xpose.msra.mxu0 0.0
        %1716 = vmatprep.subr.mxu0 0.0
        %1717 = vmatpush1.xpose.msra.mxu0 0.0
        %1718 = vmatprep.subr.mxu0 0.0
        %1719 = vmatpush1.xpose.msra.mxu0 0.0
        %1720 = vmatprep.subr.mxu0 0.0
        %1721 = vmatpush1.xpose.msra.mxu0 0.0
        %1722 = vmatprep.subr.mxu0 0.0
        %1723 = vmatpush1.xpose.msra.mxu0 0.0
        %1724 = vmatprep.subr.mxu0 0.0
        %1725 = vmatpush1.xpose.msra.mxu0 0.0
        %1726 = vmatprep.subr.mxu0 0.0
        %1727 = vmatpush1.xpose.msra.mxu0 0.0
        %1728 = vmatprep.subr.mxu0 0.0
        %1729 = vmatpush1.xpose.msra.mxu0 0.0
        %1730 = vmatprep.subr.mxu0 0.0
        %1731 = vmatpush1.xpose.msra.mxu0 0.0
        %1732 = vmatprep.subr.mxu0 0.0
        %1733 = vmatpush1.xpose.msra.mxu0 0.0
        %1734 = vmatprep.subr.mxu0 0.0
        %1735 = vmatpush1.xpose.msra.mxu0 0.0
        %1736 = vmatprep.subr.mxu0 0.0
        %1737 = vmatpush1.xpose.msra.mxu0 0.0
        %1738 = vmatprep.subr.mxu0 0.0
        %1739 = vmatpush1.xpose.msra.mxu0 0.0
        %1740 = vmatprep.subr.mxu0 0.0
        %1741 = vmatpush1.xpose.msra.mxu0 0.0
        %1742 = vmatprep.subr.mxu0 0.0
        %1743 = vmatpush1.xpose.msra.mxu0 0.0
        %1744 = vmatprep.subr.mxu0 0.0
        %1745 = vmatpush1.xpose.msra.mxu0 0.0
        %1746 = vmatprep.subr.mxu0 0.0
        %1747 = vmatpush1.xpose.msra.mxu0 0.0
        %1748 = vmatprep.subr.mxu0 0.0
        %1749 = vmatpush1.xpose.msra.mxu0 0.0
        %1750 = vmatprep.subr.mxu0 0.0
        %1751 = vmatpush1.xpose.msra.mxu0 0.0
        %1752 = vmatprep.subr.mxu0 0.0
        %1753 = vmatpush1.xpose.msra.mxu0 0.0
        %1754 = vmatprep.subr.mxu0 0.0
        %1755 = vmatpush1.xpose.msra.mxu0 0.0
        %1756 = vmatprep.subr.mxu0 0.0
        %1757 = vmatpush1.xpose.msra.mxu0 0.0
        %1758 = vmatprep.subr.mxu0 0.0
        %1759 = vmatpush1.xpose.msra.mxu0 0.0
        %1760 = vmatprep.subr.mxu0 0.0
        %1761 = vmatpush1.xpose.msra.mxu0 0.0
        %1762 = vmatprep.subr.mxu0 0.0
        %1763 = vmatpush1.xpose.msra.mxu0 0.0
        %1764 = vmatprep.subr.mxu0 0.0
        %1765 = vmatpush1.xpose.msra.mxu0 0.0
        %1766 = vmatprep.subr.mxu0 0.0
        %1767 = vmatpush1.xpose.msra.mxu0 0.0
        %1768 = vmatprep.mubr.f32.mxu0 0.0
        %1769 = vmatmul.mubr.f32.gmra.mrb[0].mxu0 %v1702
        %v1770 = vpop.f32.mrb[0].mxu0
        %v1771 = vadd.f32 0.0, %v1770
        %v1772 = vpop.f32.mrb[0].mxu0
        %1773 = vdwg.mxu0
        %1774 = vxpose.xlu0.b32.start [1/16] %v1771, 128
        %1775 = vxpose.xlu0.b32.cont [2/16] 0.0, 128
        %1776 = vxpose.xlu0.b32.cont [3/16] 0.0, 128
        %1777 = vxpose.xlu0.b32.cont [4/16] 0.0, 128
        %1778 = vxpose.xlu0.b32.cont [5/16] 0.0, 128
        %1779 = vxpose.xlu0.b32.cont [6/16] 0.0, 128
        %1780 = vxpose.xlu0.b32.cont [7/16] 0.0, 128
        %1781 = vxpose.xlu0.b32.cont [8/16] 0.0, 128
        %1782 = vxpose.xlu0.b32.cont [9/16] 0.0, 128
        %1783 = vxpose.xlu0.b32.cont [10/16] 0.0, 128
        %1784 = vxpose.xlu0.b32.cont [11/16] 0.0, 128
        %1785 = vxpose.xlu0.b32.cont [12/16] 0.0, 128
        %1786 = vxpose.xlu0.b32.cont [13/16] 0.0, 128
        %1787 = vxpose.xlu0.b32.cont [14/16] 0.0, 128
        %1788 = vxpose.xlu0.b32.cont [15/16] 0.0, 128
        %1789 = vxpose.xlu0.b32.end [16/16] 0.0, 128
        %v1790 = vpop.trf.xlu0
        %v1791 = vpop.trf.xlu0
        %v1792 = vpop.trf.xlu0
        %v1793 = vpop.trf.xlu0
        %v1794 = vpop.trf.xlu0
        %v1795 = vpop.trf.xlu0
        %v1796 = vpop.trf.xlu0
        %v1797 = vpop.trf.xlu0
        %v1798 = vpop.trf.xlu0
        %v1799 = vpop.trf.xlu0
        %v1800 = vpop.trf.xlu0
        %v1801 = vpop.trf.xlu0
        %v1802 = vpop.trf.xlu0
        %v1803 = vpop.trf.xlu0
        %v1804 = vpop.trf.xlu0
        %v1805 = vpop.trf.xlu0
        %v1806 = vmul.f32 %v1790, 2.0
        %v1807 = vsub.f32 %v1806, %v1563
        %v1808 = vld [vmem:[%s5] sm:$0xff]
        %s1809 = scalar_lea.vmem %s5, 8
        %v1810 = vld [vmem:[%s1809] sm:$0xff]
        %v1812 = vsel %vm1325, %v1685, 0
        %1814 = vmatprep.subr.mxu0 0.0
        %1815 = vmatpush1.msra.mxu0 %v1810
        %1816 = vmatprep.subr.mxu0 0.0
        %1817 = vmatpush1.msra.mxu0 0.0
        %1818 = vmatprep.subr.mxu0 0.0
        %1819 = vmatpush1.msra.mxu0 0.0
        %1820 = vmatprep.subr.mxu0 0.0
        %1821 = vmatpush1.msra.mxu0 0.0
        %1822 = vmatprep.subr.mxu0 0.0
        %1823 = vmatpush1.msra.mxu0 0.0
        %1824 = vmatprep.subr.mxu0 0.0
        %1825 = vmatpush1.msra.mxu0 0.0
        %1826 = vmatprep.subr.mxu0 0.0
        %1827 = vmatpush1.msra.mxu0 0.0
        %1828 = vmatprep.subr.mxu0 0.0
        %1829 = vmatpush1.msra.mxu0 0.0
        %1830 = vmatprep.subr.mxu0 0.0
        %1831 = vmatpush1.msra.mxu0 0.0
        %1832 = vmatprep.subr.mxu0 0.0
        %1833 = vmatpush1.msra.mxu0 0.0
        %1834 = vmatprep.subr.mxu0 0.0
        %1835 = vmatpush1.msra.mxu0 0.0
        %1836 = vmatprep.subr.mxu0 0.0
        %1837 = vmatpush1.msra.mxu0 0.0
        %1838 = vmatprep.subr.mxu0 0.0
        %1839 = vmatpush1.msra.mxu0 0.0
        %1840 = vmatprep.subr.mxu0 0.0
        %1841 = vmatpush1.msra.mxu0 0.0
        %1842 = vmatprep.subr.mxu0 0.0
        %1843 = vmatpush1.msra.mxu0 0.0
        %1844 = vmatprep.subr.mxu0 0.0
        %1845 = vmatpush1.msra.mxu0 0.0
        %1846 = vmatprep.subr.mxu0 0.0
        %1847 = vmatpush1.msra.mxu0 0.0
        %1848 = vmatprep.subr.mxu0 0.0
        %1849 = vmatpush1.msra.mxu0 0.0
        %1850 = vmatprep.subr.mxu0 0.0
        %1851 = vmatpush1.msra.mxu0 0.0
        %1852 = vmatprep.subr.mxu0 0.0
        %1853 = vmatpush1.msra.mxu0 0.0
        %1854 = vmatprep.subr.mxu0 0.0
        %1855 = vmatpush1.msra.mxu0 0.0
        %1856 = vmatprep.subr.mxu0 0.0
        %1857 = vmatpush1.msra.mxu0 0.0
        %1858 = vmatprep.subr.mxu0 0.0
        %1859 = vmatpush1.msra.mxu0 0.0
        %1860 = vmatprep.subr.mxu0 0.0
        %1861 = vmatpush1.msra.mxu0 0.0
        %1862 = vmatprep.subr.mxu0 0.0
        %1863 = vmatpush1.msra.mxu0 0.0
        %1864 = vmatprep.subr.mxu0 0.0
        %1865 = vmatpush1.msra.mxu0 0.0
        %1866 = vmatprep.subr.mxu0 0.0
        %1867 = vmatpush1.msra.mxu0 0.0
        %1868 = vmatprep.subr.mxu0 0.0
        %1869 = vmatpush1.msra.mxu0 0.0
        %1870 = vmatprep.subr.mxu0 0.0
        %1871 = vmatpush1.msra.mxu0 0.0
        %1872 = vmatprep.subr.mxu0 0.0
        %1873 = vmatpush1.msra.mxu0 0.0
        %1874 = vmatprep.subr.mxu0 0.0
        %1875 = vmatpush1.msra.mxu0 0.0
        %1876 = vmatprep.subr.mxu0 0.0
        %1877 = vmatpush1.msra.mxu0 0.0
        %1878 = vmatprep.mubr.f32.mxu0 0.0
        %1879 = vmatmul.mubr.f32.gmra.mrb[0].mxu0 %v1812
        %v1880 = vpop.f32.mrb[0].mxu0
        %v1881 = vadd.f32 0.0, %v1880
        %v1882 = vpop.f32.mrb[0].mxu0
        %1883 = vdwg.mxu0
        %v1885 = vsel %vm1325, %v1563, 0
        %1887 = vmatprep.subr.mxu0 0.0
        %1888 = vmatpush1.msra.mxu0 %v1808
        %1889 = vmatprep.subr.mxu0 0.0
        %1890 = vmatpush1.msra.mxu0 0.0
        %1891 = vmatprep.subr.mxu0 0.0
        %1892 = vmatpush1.msra.mxu0 0.0
        %1893 = vmatprep.subr.mxu0 0.0
        %1894 = vmatpush1.msra.mxu0 0.0
        %1895 = vmatprep.subr.mxu0 0.0
        %1896 = vmatpush1.msra.mxu0 0.0
        %1897 = vmatprep.subr.mxu0 0.0
        %1898 = vmatpush1.msra.mxu0 0.0
        %1899 = vmatprep.subr.mxu0 0.0
        %1900 = vmatpush1.msra.mxu0 0.0
        %1901 = vmatprep.subr.mxu0 0.0
        %1902 = vmatpush1.msra.mxu0 0.0
        %1903 = vmatprep.subr.mxu0 0.0
        %1904 = vmatpush1.msra.mxu0 0.0
        %1905 = vmatprep.subr.mxu0 0.0
        %1906 = vmatpush1.msra.mxu0 0.0
        %1907 = vmatprep.subr.mxu0 0.0
        %1908 = vmatpush1.msra.mxu0 0.0
        %1909 = vmatprep.subr.mxu0 0.0
        %1910 = vmatpush1.msra.mxu0 0.0
        %1911 = vmatprep.subr.mxu0 0.0
        %1912 = vmatpush1.msra.mxu0 0.0
        %1913 = vmatprep.subr.mxu0 0.0
        %1914 = vmatpush1.msra.mxu0 0.0
        %1915 = vmatprep.subr.mxu0 0.0
        %1916 = vmatpush1.msra.mxu0 0.0
        %1917 = vmatprep.subr.mxu0 0.0
        %1918 = vmatpush1.msra.mxu0 0.0
        %1919 = vmatprep.subr.mxu0 0.0
        %1920 = vmatpush1.msra.mxu0 0.0
        %1921 = vmatprep.subr.mxu0 0.0
        %1922 = vmatpush1.msra.mxu0 0.0
        %1923 = vmatprep.subr.mxu0 0.0
        %1924 = vmatpush1.msra.mxu0 0.0
        %1925 = vmatprep.subr.mxu0 0.0
        %1926 = vmatpush1.msra.mxu0 0.0
        %1927 = vmatprep.subr.mxu0 0.0
        %1928 = vmatpush1.msra.mxu0 0.0
        %1929 = vmatprep.subr.mxu0 0.0
        %1930 = vmatpush1.msra.mxu0 0.0
        %1931 = vmatprep.subr.mxu0 0.0
        %1932 = vmatpush1.msra.mxu0 0.0
        %1933 = vmatprep.subr.mxu0 0.0
        %1934 = vmatpush1.msra.mxu0 0.0
        %1935 = vmatprep.subr.mxu0 0.0
        %1936 = vmatpush1.msra.mxu0 0.0
        %1937 = vmatprep.subr.mxu0 0.0
        %1938 = vmatpush1.msra.mxu0 0.0
        %1939 = vmatprep.subr.mxu0 0.0
        %1940 = vmatpush1.msra.mxu0 0.0
        %1941 = vmatprep.subr.mxu0 0.0
        %1942 = vmatpush1.msra.mxu0 0.0
        %1943 = vmatprep.subr.mxu0 0.0
        %1944 = vmatpush1.msra.mxu0 0.0
        %1945 = vmatprep.subr.mxu0 0.0
        %1946 = vmatpush1.msra.mxu0 0.0
        %1947 = vmatprep.subr.mxu0 0.0
        %1948 = vmatpush1.msra.mxu0 0.0
        %1949 = vmatprep.subr.mxu0 0.0
        %1950 = vmatpush1.msra.mxu0 0.0
        %1951 = vmatprep.mubr.f32.mxu0 0.0
        %1952 = vmatmul.mubr.f32.gmra.mrb[0].mxu0 %v1885
        %v1953 = vpop.f32.mrb[0].mxu0
        %v1954 = vadd.f32 %v1881, %v1953
        %v1955 = vpop.f32.mrb[0].mxu0
        %1956 = vdwg.mxu0
        %s1957 = scalar_lea.vmem %s5, 16
        %v1958 = vld [vmem:[%s1957] sm:$0xff]
        %v1960 = vsel %vm1325, %v1807, 0
        %1962 = vmatprep.subr.mxu0 0.0
        %1963 = vmatpush1.msra.mxu0 %v1958
        %1964 = vmatprep.subr.mxu0 0.0
        %1965 = vmatpush1.msra.mxu0 0.0
        %1966 = vmatprep.subr.mxu0 0.0
        %1967 = vmatpush1.msra.mxu0 0.0
        %1968 = vmatprep.subr.mxu0 0.0
        %1969 = vmatpush1.msra.mxu0 0.0
        %1970 = vmatprep.subr.mxu0 0.0
        %1971 = vmatpush1.msra.mxu0 0.0
        %1972 = vmatprep.subr.mxu0 0.0
        %1973 = vmatpush1.msra.mxu0 0.0
        %1974 = vmatprep.subr.mxu0 0.0
        %1975 = vmatpush1.msra.mxu0 0.0
        %1976 = vmatprep.subr.mxu0 0.0
        %1977 = vmatpush1.msra.mxu0 0.0
        %1978 = vmatprep.subr.mxu0 0.0
        %1979 = vmatpush1.msra.mxu0 0.0
        %1980 = vmatprep.subr.mxu0 0.0
        %1981 = vmatpush1.msra.mxu0 0.0
        %1982 = vmatprep.subr.mxu0 0.0
        %1983 = vmatpush1.msra.mxu0 0.0
        %1984 = vmatprep.subr.mxu0 0.0
        %1985 = vmatpush1.msra.mxu0 0.0
        %1986 = vmatprep.subr.mxu0 0.0
        %1987 = vmatpush1.msra.mxu0 0.0
        %1988 = vmatprep.subr.mxu0 0.0
        %1989 = vmatpush1.msra.mxu0 0.0
        %1990 = vmatprep.subr.mxu0 0.0
        %1991 = vmatpush1.msra.mxu0 0.0
        %1992 = vmatprep.subr.mxu0 0.0
        %1993 = vmatpush1.msra.mxu0 0.0
        %1994 = vmatprep.subr.mxu0 0.0
        %1995 = vmatpush1.msra.mxu0 0.0
        %1996 = vmatprep.subr.mxu0 0.0
        %1997 = vmatpush1.msra.mxu0 0.0
        %1998 = vmatprep.subr.mxu0 0.0
        %1999 = vmatpush1.msra.mxu0 0.0
        %2000 = vmatprep.subr.mxu0 0.0
        %2001 = vmatpush1.msra.mxu0 0.0
        %2002 = vmatprep.subr.mxu0 0.0
        %2003 = vmatpush1.msra.mxu0 0.0
        %2004 = vmatprep.subr.mxu0 0.0
        %2005 = vmatpush1.msra.mxu0 0.0
        %2006 = vmatprep.subr.mxu0 0.0
        %2007 = vmatpush1.msra.mxu0 0.0
        %2008 = vmatprep.subr.mxu0 0.0
        %2009 = vmatpush1.msra.mxu0 0.0
        %2010 = vmatprep.subr.mxu0 0.0
        %2011 = vmatpush1.msra.mxu0 0.0
        %2012 = vmatprep.subr.mxu0 0.0
        %2013 = vmatpush1.msra.mxu0 0.0
        %2014 = vmatprep.subr.mxu0 0.0
        %2015 = vmatpush1.msra.mxu0 0.0
        %2016 = vmatprep.subr.mxu0 0.0
        %2017 = vmatpush1.msra.mxu0 0.0
        %2018 = vmatprep.subr.mxu0 0.0
        %2019 = vmatpush1.msra.mxu0 0.0
        %2020 = vmatprep.subr.mxu0 0.0
        %2021 = vmatpush1.msra.mxu0 0.0
        %2022 = vmatprep.subr.mxu0 0.0
        %2023 = vmatpush1.msra.mxu0 0.0
        %2024 = vmatprep.subr.mxu0 0.0
        %2025 = vmatpush1.msra.mxu0 0.0
        %2026 = vmatprep.mubr.f32.mxu0 0.0
        %2027 = vmatmul.mubr.f32.gmra.mrb[0].mxu0 %v1960
        %v2028 = vpop.f32.mrb[0].mxu0
        %v2029 = vadd.f32 0.0, %v2028
        %v2030 = vpop.f32.mrb[0].mxu0
        %2031 = vdwg.mxu0
        %v2032 = vadd.f32 %v1954, %v2029
        %2034 = vrot.lane.b32.xlu0 %v2032, 16
        %v2035 = vpop.permute.xlu0 %2034
        %v2037 = vadd.f32 %v1077, %v2035
        %v2038 = vld [vmem:[%s7] sm:$0x1]
        %v2040 = vlaneseq
        %v2041 = vshrl.u32 %v2040, 7
        %v2042 = vsub.s32 0, %v2041
        %v2043 = vrot.slane %v2038, %v2042
        %2044 = vrot.lane.b32.xlu0 %v2043, 16
        %v2045 = vpop.permute.xlu0 %2044
        %v2047 = vadd.f32 %v2037, %v2045
        %v2048 = vtanh.pop %v2047
        %2049 = vrot.lane.b32.xlu0 %v593, 8
        %v2050 = vpop.permute.xlu0 %2049
        %v2052 = vmul.f32 %v1562, %v2050
        %v2053 = vsub.f32 1.0, %v1562
        %2055 = vrot.lane.b32.xlu0 %v2048, 120
        %v2056 = vpop.permute.xlu0 %2055
        %v2058 = vmul.f32 %v2053, %v2056
        %v2059 = vadd.f32 %v2052, %v2058
        %2061 = vrot.lane.b32.xlu0 %v2059, 120
        %v2062 = vpop.permute.xlu0 %2061
        %vm2064 = vcmask 60416
        %2065 = vst.msk [vmem:[%s582] sm:$0xf] %vm2064, %v2062
        %s2066 = scalar_lea.vmem %s529, 4 [#allocation3]
        %v2067 = vld [vmem:[%s2066] sm:$0xf]
        %2068 = vxpose.xlu0.b32.start [1/16] %v2062, 128
        %2069 = vxpose.xlu0.b32.cont [2/16] 0.0, 128
        %2070 = vxpose.xlu0.b32.cont [3/16] 0.0, 128
        %2071 = vxpose.xlu0.b32.cont [4/16] 0.0, 128
        %2072 = vxpose.xlu0.b32.cont [5/16] 0.0, 128
        %2073 = vxpose.xlu0.b32.cont [6/16] 0.0, 128
        %2074 = vxpose.xlu0.b32.cont [7/16] 0.0, 128
        %2075 = vxpose.xlu0.b32.cont [8/16] 0.0, 128
        %2076 = vxpose.xlu0.b32.cont [9/16] 0.0, 128
        %2077 = vxpose.xlu0.b32.cont [10/16] 0.0, 128
        %2078 = vxpose.xlu0.b32.cont [11/16] 0.0, 128
        %2079 = vxpose.xlu0.b32.cont [12/16] 0.0, 128
        %2080 = vxpose.xlu0.b32.cont [13/16] 0.0, 128
        %2081 = vxpose.xlu0.b32.cont [14/16] 0.0, 128
        %2082 = vxpose.xlu0.b32.cont [15/16] 0.0, 128
        %2083 = vxpose.xlu0.b32.end [16/16] 0.0, 128
        %v2084 = vpop.trf.xlu0
        %v2085 = vpop.trf.xlu0
        %v2086 = vpop.trf.xlu0
        %v2087 = vpop.trf.xlu0
        %v2088 = vpop.trf.xlu0
        %v2089 = vpop.trf.xlu0
        %v2090 = vpop.trf.xlu0
        %v2091 = vpop.trf.xlu0
        %v2092 = vpop.trf.xlu0
        %v2093 = vpop.trf.xlu0
        %v2094 = vpop.trf.xlu0
        %v2095 = vpop.trf.xlu0
        %v2096 = vpop.trf.xlu0
        %v2097 = vpop.trf.xlu0
        %v2098 = vpop.trf.xlu0
        %v2099 = vpop.trf.xlu0
        %v2101 = vsel %vm626, %v2084, 0
        %2103 = vmatprep.subr.mxu0 0.0
        %2104 = vmatpush1.xpose.msra.mxu0 %v631
        %2105 = vmatprep.subr.mxu0 0.0
        %2106 = vmatpush1.xpose.msra.mxu0 0.0
        %2107 = vmatprep.subr.mxu0 0.0
        %2108 = vmatpush1.xpose.msra.mxu0 0.0
        %2109 = vmatprep.subr.mxu0 0.0
        %2110 = vmatpush1.xpose.msra.mxu0 0.0
        %2111 = vmatprep.subr.mxu0 0.0
        %2112 = vmatpush1.xpose.msra.mxu0 0.0
        %2113 = vmatprep.subr.mxu0 0.0
        %2114 = vmatpush1.xpose.msra.mxu0 0.0
        %2115 = vmatprep.subr.mxu0 0.0
        %2116 = vmatpush1.xpose.msra.mxu0 0.0
        %2117 = vmatprep.subr.mxu0 0.0
        %2118 = vmatpush1.xpose.msra.mxu0 0.0
        %2119 = vmatprep.subr.mxu0 0.0
        %2120 = vmatpush1.xpose.msra.mxu0 0.0
        %2121 = vmatprep.subr.mxu0 0.0
        %2122 = vmatpush1.xpose.msra.mxu0 0.0
        %2123 = vmatprep.subr.mxu0 0.0
        %2124 = vmatpush1.xpose.msra.mxu0 0.0
        %2125 = vmatprep.subr.mxu0 0.0
        %2126 = vmatpush1.xpose.msra.mxu0 0.0
        %2127 = vmatprep.subr.mxu0 0.0
        %2128 = vmatpush1.xpose.msra.mxu0 0.0
        %2129 = vmatprep.subr.mxu0 0.0
        %2130 = vmatpush1.xpose.msra.mxu0 0.0
        %2131 = vmatprep.subr.mxu0 0.0
        %2132 = vmatpush1.xpose.msra.mxu0 0.0
        %2133 = vmatprep.subr.mxu0 0.0
        %2134 = vmatpush1.xpose.msra.mxu0 0.0
        %2135 = vmatprep.subr.mxu0 0.0
        %2136 = vmatpush1.xpose.msra.mxu0 0.0
        %2137 = vmatprep.subr.mxu0 0.0
        %2138 = vmatpush1.xpose.msra.mxu0 0.0
        %2139 = vmatprep.subr.mxu0 0.0
        %2140 = vmatpush1.xpose.msra.mxu0 0.0
        %2141 = vmatprep.subr.mxu0 0.0
        %2142 = vmatpush1.xpose.msra.mxu0 0.0
        %2143 = vmatprep.subr.mxu0 0.0
        %2144 = vmatpush1.xpose.msra.mxu0 0.0
        %2145 = vmatprep.subr.mxu0 0.0
        %2146 = vmatpush1.xpose.msra.mxu0 0.0
        %2147 = vmatprep.subr.mxu0 0.0
        %2148 = vmatpush1.xpose.msra.mxu0 0.0
        %2149 = vmatprep.subr.mxu0 0.0
        %2150 = vmatpush1.xpose.msra.mxu0 0.0
        %2151 = vmatprep.subr.mxu0 0.0
        %2152 = vmatpush1.xpose.msra.mxu0 0.0
        %2153 = vmatprep.subr.mxu0 0.0
        %2154 = vmatpush1.xpose.msra.mxu0 0.0
        %2155 = vmatprep.subr.mxu0 0.0
        %2156 = vmatpush1.xpose.msra.mxu0 0.0
        %2157 = vmatprep.subr.mxu0 0.0
        %2158 = vmatpush1.xpose.msra.mxu0 0.0
        %2159 = vmatprep.subr.mxu0 0.0
        %2160 = vmatpush1.xpose.msra.mxu0 0.0
        %2161 = vmatprep.subr.mxu0 0.0
        %2162 = vmatpush1.xpose.msra.mxu0 0.0
        %2163 = vmatprep.subr.mxu0 0.0
        %2164 = vmatpush1.xpose.msra.mxu0 0.0
        %2165 = vmatprep.subr.mxu0 0.0
        %2166 = vmatpush1.xpose.msra.mxu0 0.0
        %2167 = vmatprep.mubr.f32.mxu0 0.0
        %2168 = vmatmul.mubr.f32.gmra.mrb[0].mxu0 %v2101
        %v2169 = vpop.f32.mrb[0].mxu0
        %v2170 = vadd.f32 0.0, %v2169
        %v2171 = vpop.f32.mrb[0].mxu0
        %2172 = vdwg.mxu0
        %2173 = vxpose.xlu0.b32.start [1/16] %v2170, 128
        %2174 = vxpose.xlu0.b32.cont [2/16] 0.0, 128
        %2175 = vxpose.xlu0.b32.cont [3/16] 0.0, 128
        %2176 = vxpose.xlu0.b32.cont [4/16] 0.0, 128
        %2177 = vxpose.xlu0.b32.cont [5/16] 0.0, 128
        %2178 = vxpose.xlu0.b32.cont [6/16] 0.0, 128
        %2179 = vxpose.xlu0.b32.cont [7/16] 0.0, 128
        %2180 = vxpose.xlu0.b32.cont [8/16] 0.0, 128
        %2181 = vxpose.xlu0.b32.cont [9/16] 0.0, 128
        %2182 = vxpose.xlu0.b32.cont [10/16] 0.0, 128
        %2183 = vxpose.xlu0.b32.cont [11/16] 0.0, 128
        %2184 = vxpose.xlu0.b32.cont [12/16] 0.0, 128
        %2185 = vxpose.xlu0.b32.cont [13/16] 0.0, 128
        %2186 = vxpose.xlu0.b32.cont [14/16] 0.0, 128
        %2187 = vxpose.xlu0.b32.cont [15/16] 0.0, 128
        %2188 = vxpose.xlu0.b32.end [16/16] 0.0, 128
        %v2189 = vpop.trf.xlu0
        %v2190 = vpop.trf.xlu0
        %v2191 = vpop.trf.xlu0
        %v2192 = vpop.trf.xlu0
        %v2193 = vpop.trf.xlu0
        %v2194 = vpop.trf.xlu0
        %v2195 = vpop.trf.xlu0
        %v2196 = vpop.trf.xlu0
        %v2197 = vpop.trf.xlu0
        %v2198 = vpop.trf.xlu0
        %v2199 = vpop.trf.xlu0
        %v2200 = vpop.trf.xlu0
        %v2201 = vpop.trf.xlu0
        %v2202 = vpop.trf.xlu0
        %v2203 = vpop.trf.xlu0
        %v2204 = vpop.trf.xlu0
        %v2206 = vsel %vm626, %v2170, 0
        %2208 = vmatprep.subr.mxu0 0.0
        %2209 = vmatpush1.xpose.msra.mxu0 %v631
        %2210 = vmatprep.subr.mxu0 0.0
        %2211 = vmatpush1.xpose.msra.mxu0 0.0
        %2212 = vmatprep.subr.mxu0 0.0
        %2213 = vmatpush1.xpose.msra.mxu0 0.0
        %2214 = vmatprep.subr.mxu0 0.0
        %2215 = vmatpush1.xpose.msra.mxu0 0.0
        %2216 = vmatprep.subr.mxu0 0.0
        %2217 = vmatpush1.xpose.msra.mxu0 0.0
        %2218 = vmatprep.subr.mxu0 0.0
        %2219 = vmatpush1.xpose.msra.mxu0 0.0
        %2220 = vmatprep.subr.mxu0 0.0
        %2221 = vmatpush1.xpose.msra.mxu0 0.0
        %2222 = vmatprep.subr.mxu0 0.0
        %2223 = vmatpush1.xpose.msra.mxu0 0.0
        %2224 = vmatprep.subr.mxu0 0.0
        %2225 = vmatpush1.xpose.msra.mxu0 0.0
        %2226 = vmatprep.subr.mxu0 0.0
        %2227 = vmatpush1.xpose.msra.mxu0 0.0
        %2228 = vmatprep.subr.mxu0 0.0
        %2229 = vmatpush1.xpose.msra.mxu0 0.0
        %2230 = vmatprep.subr.mxu0 0.0
        %2231 = vmatpush1.xpose.msra.mxu0 0.0
        %2232 = vmatprep.subr.mxu0 0.0
        %2233 = vmatpush1.xpose.msra.mxu0 0.0
        %2234 = vmatprep.subr.mxu0 0.0
        %2235 = vmatpush1.xpose.msra.mxu0 0.0
        %2236 = vmatprep.subr.mxu0 0.0
        %2237 = vmatpush1.xpose.msra.mxu0 0.0
        %2238 = vmatprep.subr.mxu0 0.0
        %2239 = vmatpush1.xpose.msra.mxu0 0.0
        %2240 = vmatprep.subr.mxu0 0.0
        %2241 = vmatpush1.xpose.msra.mxu0 0.0
        %2242 = vmatprep.subr.mxu0 0.0
        %2243 = vmatpush1.xpose.msra.mxu0 0.0
        %2244 = vmatprep.subr.mxu0 0.0
        %2245 = vmatpush1.xpose.msra.mxu0 0.0
        %2246 = vmatprep.subr.mxu0 0.0
        %2247 = vmatpush1.xpose.msra.mxu0 0.0
        %2248 = vmatprep.subr.mxu0 0.0
        %2249 = vmatpush1.xpose.msra.mxu0 0.0
        %2250 = vmatprep.subr.mxu0 0.0
        %2251 = vmatpush1.xpose.msra.mxu0 0.0
        %2252 = vmatprep.subr.mxu0 0.0
        %2253 = vmatpush1.xpose.msra.mxu0 0.0
        %2254 = vmatprep.subr.mxu0 0.0
        %2255 = vmatpush1.xpose.msra.mxu0 0.0
        %2256 = vmatprep.subr.mxu0 0.0
        %2257 = vmatpush1.xpose.msra.mxu0 0.0
        %2258 = vmatprep.subr.mxu0 0.0
        %2259 = vmatpush1.xpose.msra.mxu0 0.0
        %2260 = vmatprep.subr.mxu0 0.0
        %2261 = vmatpush1.xpose.msra.mxu0 0.0
        %2262 = vmatprep.subr.mxu0 0.0
        %2263 = vmatpush1.xpose.msra.mxu0 0.0
        %2264 = vmatprep.subr.mxu0 0.0
        %2265 = vmatpush1.xpose.msra.mxu0 0.0
        %2266 = vmatprep.subr.mxu0 0.0
        %2267 = vmatpush1.xpose.msra.mxu0 0.0
        %2268 = vmatprep.subr.mxu0 0.0
        %2269 = vmatpush1.xpose.msra.mxu0 0.0
        %2270 = vmatprep.subr.mxu0 0.0
        %2271 = vmatpush1.xpose.msra.mxu0 0.0
        %2272 = vmatprep.mubr.f32.mxu0 0.0
        %2273 = vmatmul.mubr.f32.gmra.mrb[0].mxu0 %v2206
        %v2274 = vpop.f32.mrb[0].mxu0
        %v2275 = vadd.f32 0.0, %v2274
        %v2276 = vpop.f32.mrb[0].mxu0
        %2277 = vdwg.mxu0
        %2278 = vxpose.xlu0.b32.start [1/16] %v2275, 128
        %2279 = vxpose.xlu0.b32.cont [2/16] 0.0, 128
        %2280 = vxpose.xlu0.b32.cont [3/16] 0.0, 128
        %2281 = vxpose.xlu0.b32.cont [4/16] 0.0, 128
        %2282 = vxpose.xlu0.b32.cont [5/16] 0.0, 128
        %2283 = vxpose.xlu0.b32.cont [6/16] 0.0, 128
        %2284 = vxpose.xlu0.b32.cont [7/16] 0.0, 128
        %2285 = vxpose.xlu0.b32.cont [8/16] 0.0, 128
        %2286 = vxpose.xlu0.b32.cont [9/16] 0.0, 128
        %2287 = vxpose.xlu0.b32.cont [10/16] 0.0, 128
        %2288 = vxpose.xlu0.b32.cont [11/16] 0.0, 128
        %2289 = vxpose.xlu0.b32.cont [12/16] 0.0, 128
        %2290 = vxpose.xlu0.b32.cont [13/16] 0.0, 128
        %2291 = vxpose.xlu0.b32.cont [14/16] 0.0, 128
        %2292 = vxpose.xlu0.b32.cont [15/16] 0.0, 128
        %2293 = vxpose.xlu0.b32.end [16/16] 0.0, 128
        %v2294 = vpop.trf.xlu0
        %v2295 = vpop.trf.xlu0
        %v2296 = vpop.trf.xlu0
        %v2297 = vpop.trf.xlu0
        %v2298 = vpop.trf.xlu0
        %v2299 = vpop.trf.xlu0
        %v2300 = vpop.trf.xlu0
        %v2301 = vpop.trf.xlu0
        %v2302 = vpop.trf.xlu0
        %v2303 = vpop.trf.xlu0
        %v2304 = vpop.trf.xlu0
        %v2305 = vpop.trf.xlu0
        %v2306 = vpop.trf.xlu0
        %v2307 = vpop.trf.xlu0
        %v2308 = vpop.trf.xlu0
        %v2309 = vpop.trf.xlu0
        %v2310 = vmul.f32 %v2294, 2.0
        %v2311 = vsub.f32 %v2310, %v2062
        %v2312 = vld [vmem:[%s8] sm:$0xff]
        %s2313 = scalar_lea.vmem %s8, 8
        %v2314 = vld [vmem:[%s2313] sm:$0xff]
        %v2316 = vsel %vm1325, %v2189, 0
        %2318 = vmatprep.subr.mxu0 0.0
        %2319 = vmatpush1.msra.mxu0 %v2314
        %2320 = vmatprep.subr.mxu0 0.0
        %2321 = vmatpush1.msra.mxu0 0.0
        %2322 = vmatprep.subr.mxu0 0.0
        %2323 = vmatpush1.msra.mxu0 0.0
        %2324 = vmatprep.subr.mxu0 0.0
        %2325 = vmatpush1.msra.mxu0 0.0
        %2326 = vmatprep.subr.mxu0 0.0
        %2327 = vmatpush1.msra.mxu0 0.0
        %2328 = vmatprep.subr.mxu0 0.0
        %2329 = vmatpush1.msra.mxu0 0.0
        %2330 = vmatprep.subr.mxu0 0.0
        %2331 = vmatpush1.msra.mxu0 0.0
        %2332 = vmatprep.subr.mxu0 0.0
        %2333 = vmatpush1.msra.mxu0 0.0
        %2334 = vmatprep.subr.mxu0 0.0
        %2335 = vmatpush1.msra.mxu0 0.0
        %2336 = vmatprep.subr.mxu0 0.0
        %2337 = vmatpush1.msra.mxu0 0.0
        %2338 = vmatprep.subr.mxu0 0.0
        %2339 = vmatpush1.msra.mxu0 0.0
        %2340 = vmatprep.subr.mxu0 0.0
        %2341 = vmatpush1.msra.mxu0 0.0
        %2342 = vmatprep.subr.mxu0 0.0
        %2343 = vmatpush1.msra.mxu0 0.0
        %2344 = vmatprep.subr.mxu0 0.0
        %2345 = vmatpush1.msra.mxu0 0.0
        %2346 = vmatprep.subr.mxu0 0.0
        %2347 = vmatpush1.msra.mxu0 0.0
        %2348 = vmatprep.subr.mxu0 0.0
        %2349 = vmatpush1.msra.mxu0 0.0
        %2350 = vmatprep.subr.mxu0 0.0
        %2351 = vmatpush1.msra.mxu0 0.0
        %2352 = vmatprep.subr.mxu0 0.0
        %2353 = vmatpush1.msra.mxu0 0.0
        %2354 = vmatprep.subr.mxu0 0.0
        %2355 = vmatpush1.msra.mxu0 0.0
        %2356 = vmatprep.subr.mxu0 0.0
        %2357 = vmatpush1.msra.mxu0 0.0
        %2358 = vmatprep.subr.mxu0 0.0
        %2359 = vmatpush1.msra.mxu0 0.0
        %2360 = vmatprep.subr.mxu0 0.0
        %2361 = vmatpush1.msra.mxu0 0.0
        %2362 = vmatprep.subr.mxu0 0.0
        %2363 = vmatpush1.msra.mxu0 0.0
        %2364 = vmatprep.subr.mxu0 0.0
        %2365 = vmatpush1.msra.mxu0 0.0
        %2366 = vmatprep.subr.mxu0 0.0
        %2367 = vmatpush1.msra.mxu0 0.0
        %2368 = vmatprep.subr.mxu0 0.0
        %2369 = vmatpush1.msra.mxu0 0.0
        %2370 = vmatprep.subr.mxu0 0.0
        %2371 = vmatpush1.msra.mxu0 0.0
        %2372 = vmatprep.subr.mxu0 0.0
        %2373 = vmatpush1.msra.mxu0 0.0
        %2374 = vmatprep.subr.mxu0 0.0
        %2375 = vmatpush1.msra.mxu0 0.0
        %2376 = vmatprep.subr.mxu0 0.0
        %2377 = vmatpush1.msra.mxu0 0.0
        %2378 = vmatprep.subr.mxu0 0.0
        %2379 = vmatpush1.msra.mxu0 0.0
        %2380 = vmatprep.subr.mxu0 0.0
        %2381 = vmatpush1.msra.mxu0 0.0
        %2382 = vmatprep.mubr.f32.mxu0 0.0
        %2383 = vmatmul.mubr.f32.gmra.mrb[0].mxu0 %v2316
        %v2384 = vpop.f32.mrb[0].mxu0
        %v2385 = vadd.f32 0.0, %v2384
        %v2386 = vpop.f32.mrb[0].mxu0
        %2387 = vdwg.mxu0
        %v2388 = vsel %vm1325, %v2062, 0
        %2390 = vmatprep.subr.mxu0 0.0
        %2391 = vmatpush1.msra.mxu0 %v2312
        %2392 = vmatprep.subr.mxu0 0.0
        %2393 = vmatpush1.msra.mxu0 0.0
        %2394 = vmatprep.subr.mxu0 0.0
        %2395 = vmatpush1.msra.mxu0 0.0
        %2396 = vmatprep.subr.mxu0 0.0
        %2397 = vmatpush1.msra.mxu0 0.0
        %2398 = vmatprep.subr.mxu0 0.0
        %2399 = vmatpush1.msra.mxu0 0.0
        %2400 = vmatprep.subr.mxu0 0.0
        %2401 = vmatpush1.msra.mxu0 0.0
        %2402 = vmatprep.subr.mxu0 0.0
        %2403 = vmatpush1.msra.mxu0 0.0
        %2404 = vmatprep.subr.mxu0 0.0
        %2405 = vmatpush1.msra.mxu0 0.0
        %2406 = vmatprep.subr.mxu0 0.0
        %2407 = vmatpush1.msra.mxu0 0.0
        %2408 = vmatprep.subr.mxu0 0.0
        %2409 = vmatpush1.msra.mxu0 0.0
        %2410 = vmatprep.subr.mxu0 0.0
        %2411 = vmatpush1.msra.mxu0 0.0
        %2412 = vmatprep.subr.mxu0 0.0
        %2413 = vmatpush1.msra.mxu0 0.0
        %2414 = vmatprep.subr.mxu0 0.0
        %2415 = vmatpush1.msra.mxu0 0.0
        %2416 = vmatprep.subr.mxu0 0.0
        %2417 = vmatpush1.msra.mxu0 0.0
        %2418 = vmatprep.subr.mxu0 0.0
        %2419 = vmatpush1.msra.mxu0 0.0
        %2420 = vmatprep.subr.mxu0 0.0
        %2421 = vmatpush1.msra.mxu0 0.0
        %2422 = vmatprep.subr.mxu0 0.0
        %2423 = vmatpush1.msra.mxu0 0.0
        %2424 = vmatprep.subr.mxu0 0.0
        %2425 = vmatpush1.msra.mxu0 0.0
        %2426 = vmatprep.subr.mxu0 0.0
        %2427 = vmatpush1.msra.mxu0 0.0
        %2428 = vmatprep.subr.mxu0 0.0
        %2429 = vmatpush1.msra.mxu0 0.0
        %2430 = vmatprep.subr.mxu0 0.0
        %2431 = vmatpush1.msra.mxu0 0.0
        %2432 = vmatprep.subr.mxu0 0.0
        %2433 = vmatpush1.msra.mxu0 0.0
        %2434 = vmatprep.subr.mxu0 0.0
        %2435 = vmatpush1.msra.mxu0 0.0
        %2436 = vmatprep.subr.mxu0 0.0
        %2437 = vmatpush1.msra.mxu0 0.0
        %2438 = vmatprep.subr.mxu0 0.0
        %2439 = vmatpush1.msra.mxu0 0.0
        %2440 = vmatprep.subr.mxu0 0.0
        %2441 = vmatpush1.msra.mxu0 0.0
        %2442 = vmatprep.subr.mxu0 0.0
        %2443 = vmatpush1.msra.mxu0 0.0
        %2444 = vmatprep.subr.mxu0 0.0
        %2445 = vmatpush1.msra.mxu0 0.0
        %2446 = vmatprep.subr.mxu0 0.0
        %2447 = vmatpush1.msra.mxu0 0.0
        %2448 = vmatprep.subr.mxu0 0.0
        %2449 = vmatpush1.msra.mxu0 0.0
        %2450 = vmatprep.subr.mxu0 0.0
        %2451 = vmatpush1.msra.mxu0 0.0
        %2452 = vmatprep.subr.mxu0 0.0
        %2453 = vmatpush1.msra.mxu0 0.0
        %2454 = vmatprep.mubr.f32.mxu0 0.0
        %2455 = vmatmul.mubr.f32.gmra.mrb[0].mxu0 %v2388
        %v2456 = vpop.f32.mrb[0].mxu0
        %v2457 = vadd.f32 %v2385, %v2456
        %v2458 = vpop.f32.mrb[0].mxu0
        %2459 = vdwg.mxu0
        %s2460 = scalar_lea.vmem %s8, 16
        %v2461 = vld [vmem:[%s2460] sm:$0xff]
        %v2463 = vsel %vm1325, %v2311, 0
        %2465 = vmatprep.subr.mxu0 0.0
        %2466 = vmatpush1.msra.mxu0 %v2461
        %2467 = vmatprep.subr.mxu0 0.0
        %2468 = vmatpush1.msra.mxu0 0.0
        %2469 = vmatprep.subr.mxu0 0.0
        %2470 = vmatpush1.msra.mxu0 0.0
        %2471 = vmatprep.subr.mxu0 0.0
        %2472 = vmatpush1.msra.mxu0 0.0
        %2473 = vmatprep.subr.mxu0 0.0
        %2474 = vmatpush1.msra.mxu0 0.0
        %2475 = vmatprep.subr.mxu0 0.0
        %2476 = vmatpush1.msra.mxu0 0.0
        %2477 = vmatprep.subr.mxu0 0.0
        %2478 = vmatpush1.msra.mxu0 0.0
        %2479 = vmatprep.subr.mxu0 0.0
        %2480 = vmatpush1.msra.mxu0 0.0
        %2481 = vmatprep.subr.mxu0 0.0
        %2482 = vmatpush1.msra.mxu0 0.0
        %2483 = vmatprep.subr.mxu0 0.0
        %2484 = vmatpush1.msra.mxu0 0.0
        %2485 = vmatprep.subr.mxu0 0.0
        %2486 = vmatpush1.msra.mxu0 0.0
        %2487 = vmatprep.subr.mxu0 0.0
        %2488 = vmatpush1.msra.mxu0 0.0
        %2489 = vmatprep.subr.mxu0 0.0
        %2490 = vmatpush1.msra.mxu0 0.0
        %2491 = vmatprep.subr.mxu0 0.0
        %2492 = vmatpush1.msra.mxu0 0.0
        %2493 = vmatprep.subr.mxu0 0.0
        %2494 = vmatpush1.msra.mxu0 0.0
        %2495 = vmatprep.subr.mxu0 0.0
        %2496 = vmatpush1.msra.mxu0 0.0
        %2497 = vmatprep.subr.mxu0 0.0
        %2498 = vmatpush1.msra.mxu0 0.0
        %2499 = vmatprep.subr.mxu0 0.0
        %2500 = vmatpush1.msra.mxu0 0.0
        %2501 = vmatprep.subr.mxu0 0.0
        %2502 = vmatpush1.msra.mxu0 0.0
        %2503 = vmatprep.subr.mxu0 0.0
        %2504 = vmatpush1.msra.mxu0 0.0
        %2505 = vmatprep.subr.mxu0 0.0
        %2506 = vmatpush1.msra.mxu0 0.0
        %2507 = vmatprep.subr.mxu0 0.0
        %2508 = vmatpush1.msra.mxu0 0.0
        %2509 = vmatprep.subr.mxu0 0.0
        %2510 = vmatpush1.msra.mxu0 0.0
        %2511 = vmatprep.subr.mxu0 0.0
        %2512 = vmatpush1.msra.mxu0 0.0
        %2513 = vmatprep.subr.mxu0 0.0
        %2514 = vmatpush1.msra.mxu0 0.0
        %2515 = vmatprep.subr.mxu0 0.0
        %2516 = vmatpush1.msra.mxu0 0.0
        %2517 = vmatprep.subr.mxu0 0.0
        %2518 = vmatpush1.msra.mxu0 0.0
        %2519 = vmatprep.subr.mxu0 0.0
        %2520 = vmatpush1.msra.mxu0 0.0
        %2521 = vmatprep.subr.mxu0 0.0
        %2522 = vmatpush1.msra.mxu0 0.0
        %2523 = vmatprep.subr.mxu0 0.0
        %2524 = vmatpush1.msra.mxu0 0.0
        %2525 = vmatprep.subr.mxu0 0.0
        %2526 = vmatpush1.msra.mxu0 0.0
        %2527 = vmatprep.subr.mxu0 0.0
        %2528 = vmatpush1.msra.mxu0 0.0
        %2529 = vmatprep.mubr.f32.mxu0 0.0
        %2530 = vmatmul.mubr.f32.gmra.mrb[0].mxu0 %v2463
        %v2531 = vpop.f32.mrb[0].mxu0
        %v2532 = vadd.f32 0.0, %v2531
        %v2533 = vpop.f32.mrb[0].mxu0
        %2534 = vdwg.mxu0
        %v2535 = vadd.f32 %v2457, %v2532
        %2536 = vxpose.xlu0.b32.start [1/16] %v2067, 128
        %2537 = vxpose.xlu0.b32.cont [2/16] 0.0, 128
        %2538 = vxpose.xlu0.b32.cont [3/16] 0.0, 128
        %2539 = vxpose.xlu0.b32.cont [4/16] 0.0, 128
        %2540 = vxpose.xlu0.b32.cont [5/16] 0.0, 128
        %2541 = vxpose.xlu0.b32.cont [6/16] 0.0, 128
        %2542 = vxpose.xlu0.b32.cont [7/16] 0.0, 128
        %2543 = vxpose.xlu0.b32.cont [8/16] 0.0, 128
        %2544 = vxpose.xlu0.b32.cont [9/16] 0.0, 128
        %2545 = vxpose.xlu0.b32.cont [10/16] 0.0, 128
        %2546 = vxpose.xlu0.b32.cont [11/16] 0.0, 128
        %2547 = vxpose.xlu0.b32.cont [12/16] 0.0, 128
        %2548 = vxpose.xlu0.b32.cont [13/16] 0.0, 128
        %2549 = vxpose.xlu0.b32.cont [14/16] 0.0, 128
        %2550 = vxpose.xlu0.b32.cont [15/16] 0.0, 128
        %2551 = vxpose.xlu0.b32.end [16/16] 0.0, 128
        %v2552 = vpop.trf.xlu0
        %v2553 = vpop.trf.xlu0
        %v2554 = vpop.trf.xlu0
        %v2555 = vpop.trf.xlu0
        %v2556 = vpop.trf.xlu0
        %v2557 = vpop.trf.xlu0
        %v2558 = vpop.trf.xlu0
        %v2559 = vpop.trf.xlu0
        %v2560 = vpop.trf.xlu0
        %v2561 = vpop.trf.xlu0
        %v2562 = vpop.trf.xlu0
        %v2563 = vpop.trf.xlu0
        %v2564 = vpop.trf.xlu0
        %v2565 = vpop.trf.xlu0
        %v2566 = vpop.trf.xlu0
        %v2567 = vpop.trf.xlu0
        %v2569 = vsel %vm626, %v2552, 0
        %2571 = vmatprep.subr.mxu0 0.0
        %2572 = vmatpush1.xpose.msra.mxu0 %v631
        %2573 = vmatprep.subr.mxu0 0.0
        %2574 = vmatpush1.xpose.msra.mxu0 0.0
        %2575 = vmatprep.subr.mxu0 0.0
        %2576 = vmatpush1.xpose.msra.mxu0 0.0
        %2577 = vmatprep.subr.mxu0 0.0
        %2578 = vmatpush1.xpose.msra.mxu0 0.0
        %2579 = vmatprep.subr.mxu0 0.0
        %2580 = vmatpush1.xpose.msra.mxu0 0.0
        %2581 = vmatprep.subr.mxu0 0.0
        %2582 = vmatpush1.xpose.msra.mxu0 0.0
        %2583 = vmatprep.subr.mxu0 0.0
        %2584 = vmatpush1.xpose.msra.mxu0 0.0
        %2585 = vmatprep.subr.mxu0 0.0
        %2586 = vmatpush1.xpose.msra.mxu0 0.0
        %2587 = vmatprep.subr.mxu0 0.0
        %2588 = vmatpush1.xpose.msra.mxu0 0.0
        %2589 = vmatprep.subr.mxu0 0.0
        %2590 = vmatpush1.xpose.msra.mxu0 0.0
        %2591 = vmatprep.subr.mxu0 0.0
        %2592 = vmatpush1.xpose.msra.mxu0 0.0
        %2593 = vmatprep.subr.mxu0 0.0
        %2594 = vmatpush1.xpose.msra.mxu0 0.0
        %2595 = vmatprep.subr.mxu0 0.0
        %2596 = vmatpush1.xpose.msra.mxu0 0.0
        %2597 = vmatprep.subr.mxu0 0.0
        %2598 = vmatpush1.xpose.msra.mxu0 0.0
        %2599 = vmatprep.subr.mxu0 0.0
        %2600 = vmatpush1.xpose.msra.mxu0 0.0
        %2601 = vmatprep.subr.mxu0 0.0
        %2602 = vmatpush1.xpose.msra.mxu0 0.0
        %2603 = vmatprep.subr.mxu0 0.0
        %2604 = vmatpush1.xpose.msra.mxu0 0.0
        %2605 = vmatprep.subr.mxu0 0.0
        %2606 = vmatpush1.xpose.msra.mxu0 0.0
        %2607 = vmatprep.subr.mxu0 0.0
        %2608 = vmatpush1.xpose.msra.mxu0 0.0
        %2609 = vmatprep.subr.mxu0 0.0
        %2610 = vmatpush1.xpose.msra.mxu0 0.0
        %2611 = vmatprep.subr.mxu0 0.0
        %2612 = vmatpush1.xpose.msra.mxu0 0.0
        %2613 = vmatprep.subr.mxu0 0.0
        %2614 = vmatpush1.xpose.msra.mxu0 0.0
        %2615 = vmatprep.subr.mxu0 0.0
        %2616 = vmatpush1.xpose.msra.mxu0 0.0
        %2617 = vmatprep.subr.mxu0 0.0
        %2618 = vmatpush1.xpose.msra.mxu0 0.0
        %2619 = vmatprep.subr.mxu0 0.0
        %2620 = vmatpush1.xpose.msra.mxu0 0.0
        %2621 = vmatprep.subr.mxu0 0.0
        %2622 = vmatpush1.xpose.msra.mxu0 0.0
        %2623 = vmatprep.subr.mxu0 0.0
        %2624 = vmatpush1.xpose.msra.mxu0 0.0
        %2625 = vmatprep.subr.mxu0 0.0
        %2626 = vmatpush1.xpose.msra.mxu0 0.0
        %2627 = vmatprep.subr.mxu0 0.0
        %2628 = vmatpush1.xpose.msra.mxu0 0.0
        %2629 = vmatprep.subr.mxu0 0.0
        %2630 = vmatpush1.xpose.msra.mxu0 0.0
        %2631 = vmatprep.subr.mxu0 0.0
        %2632 = vmatpush1.xpose.msra.mxu0 0.0
        %2633 = vmatprep.subr.mxu0 0.0
        %2634 = vmatpush1.xpose.msra.mxu0 0.0
        %2635 = vmatprep.mubr.f32.mxu0 0.0
        %2636 = vmatmul.mubr.f32.gmra.mrb[0].mxu0 %v2569
        %v2637 = vpop.f32.mrb[0].mxu0
        %v2638 = vadd.f32 0.0, %v2637
        %v2639 = vpop.f32.mrb[0].mxu0
        %2640 = vdwg.mxu0
        %2641 = vxpose.xlu0.b32.start [1/16] %v2638, 128
        %2642 = vxpose.xlu0.b32.cont [2/16] 0.0, 128
        %2643 = vxpose.xlu0.b32.cont [3/16] 0.0, 128
        %2644 = vxpose.xlu0.b32.cont [4/16] 0.0, 128
        %2645 = vxpose.xlu0.b32.cont [5/16] 0.0, 128
        %2646 = vxpose.xlu0.b32.cont [6/16] 0.0, 128
        %2647 = vxpose.xlu0.b32.cont [7/16] 0.0, 128
        %2648 = vxpose.xlu0.b32.cont [8/16] 0.0, 128
        %2649 = vxpose.xlu0.b32.cont [9/16] 0.0, 128
        %2650 = vxpose.xlu0.b32.cont [10/16] 0.0, 128
        %2651 = vxpose.xlu0.b32.cont [11/16] 0.0, 128
        %2652 = vxpose.xlu0.b32.cont [12/16] 0.0, 128
        %2653 = vxpose.xlu0.b32.cont [13/16] 0.0, 128
        %2654 = vxpose.xlu0.b32.cont [14/16] 0.0, 128
        %2655 = vxpose.xlu0.b32.cont [15/16] 0.0, 128
        %2656 = vxpose.xlu0.b32.end [16/16] 0.0, 128
        %v2657 = vpop.trf.xlu0
        %v2658 = vpop.trf.xlu0
        %v2659 = vpop.trf.xlu0
        %v2660 = vpop.trf.xlu0
        %v2661 = vpop.trf.xlu0
        %v2662 = vpop.trf.xlu0
        %v2663 = vpop.trf.xlu0
        %v2664 = vpop.trf.xlu0
        %v2665 = vpop.trf.xlu0
        %v2666 = vpop.trf.xlu0
        %v2667 = vpop.trf.xlu0
        %v2668 = vpop.trf.xlu0
        %v2669 = vpop.trf.xlu0
        %v2670 = vpop.trf.xlu0
        %v2671 = vpop.trf.xlu0
        %v2672 = vpop.trf.xlu0
        %v2674 = vsel %vm626, %v2638, 0
        %2676 = vmatprep.subr.mxu0 0.0
        %2677 = vmatpush1.xpose.msra.mxu0 %v631
        %2678 = vmatprep.subr.mxu0 0.0
        %2679 = vmatpush1.xpose.msra.mxu0 0.0
        %2680 = vmatprep.subr.mxu0 0.0
        %2681 = vmatpush1.xpose.msra.mxu0 0.0
        %2682 = vmatprep.subr.mxu0 0.0
        %2683 = vmatpush1.xpose.msra.mxu0 0.0
        %2684 = vmatprep.subr.mxu0 0.0
        %2685 = vmatpush1.xpose.msra.mxu0 0.0
        %2686 = vmatprep.subr.mxu0 0.0
        %2687 = vmatpush1.xpose.msra.mxu0 0.0
        %2688 = vmatprep.subr.mxu0 0.0
        %2689 = vmatpush1.xpose.msra.mxu0 0.0
        %2690 = vmatprep.subr.mxu0 0.0
        %2691 = vmatpush1.xpose.msra.mxu0 0.0
        %2692 = vmatprep.subr.mxu0 0.0
        %2693 = vmatpush1.xpose.msra.mxu0 0.0
        %2694 = vmatprep.subr.mxu0 0.0
        %2695 = vmatpush1.xpose.msra.mxu0 0.0
        %2696 = vmatprep.subr.mxu0 0.0
        %2697 = vmatpush1.xpose.msra.mxu0 0.0
        %2698 = vmatprep.subr.mxu0 0.0
        %2699 = vmatpush1.xpose.msra.mxu0 0.0
        %2700 = vmatprep.subr.mxu0 0.0
        %2701 = vmatpush1.xpose.msra.mxu0 0.0
        %2702 = vmatprep.subr.mxu0 0.0
        %2703 = vmatpush1.xpose.msra.mxu0 0.0
        %2704 = vmatprep.subr.mxu0 0.0
        %2705 = vmatpush1.xpose.msra.mxu0 0.0
        %2706 = vmatprep.subr.mxu0 0.0
        %2707 = vmatpush1.xpose.msra.mxu0 0.0
        %2708 = vmatprep.subr.mxu0 0.0
        %2709 = vmatpush1.xpose.msra.mxu0 0.0
        %2710 = vmatprep.subr.mxu0 0.0
        %2711 = vmatpush1.xpose.msra.mxu0 0.0
        %2712 = vmatprep.subr.mxu0 0.0
        %2713 = vmatpush1.xpose.msra.mxu0 0.0
        %2714 = vmatprep.subr.mxu0 0.0
        %2715 = vmatpush1.xpose.msra.mxu0 0.0
        %2716 = vmatprep.subr.mxu0 0.0
        %2717 = vmatpush1.xpose.msra.mxu0 0.0
        %2718 = vmatprep.subr.mxu0 0.0
        %2719 = vmatpush1.xpose.msra.mxu0 0.0
        %2720 = vmatprep.subr.mxu0 0.0
        %2721 = vmatpush1.xpose.msra.mxu0 0.0
        %2722 = vmatprep.subr.mxu0 0.0
        %2723 = vmatpush1.xpose.msra.mxu0 0.0
        %2724 = vmatprep.subr.mxu0 0.0
        %2725 = vmatpush1.xpose.msra.mxu0 0.0
        %2726 = vmatprep.subr.mxu0 0.0
        %2727 = vmatpush1.xpose.msra.mxu0 0.0
        %2728 = vmatprep.subr.mxu0 0.0
        %2729 = vmatpush1.xpose.msra.mxu0 0.0
        %2730 = vmatprep.subr.mxu0 0.0
        %2731 = vmatpush1.xpose.msra.mxu0 0.0
        %2732 = vmatprep.subr.mxu0 0.0
        %2733 = vmatpush1.xpose.msra.mxu0 0.0
        %2734 = vmatprep.subr.mxu0 0.0
        %2735 = vmatpush1.xpose.msra.mxu0 0.0
        %2736 = vmatprep.subr.mxu0 0.0
        %2737 = vmatpush1.xpose.msra.mxu0 0.0
        %2738 = vmatprep.subr.mxu0 0.0
        %2739 = vmatpush1.xpose.msra.mxu0 0.0
        %2740 = vmatprep.mubr.f32.mxu0 0.0
        %2741 = vmatmul.mubr.f32.gmra.mrb[0].mxu0 %v2674
        %v2742 = vpop.f32.mrb[0].mxu0
        %v2743 = vadd.f32 0.0, %v2742
        %v2744 = vpop.f32.mrb[0].mxu0
        %2745 = vdwg.mxu0
        %2746 = vxpose.xlu0.b32.start [1/16] %v2743, 128
        %2747 = vxpose.xlu0.b32.cont [2/16] 0.0, 128
        %2748 = vxpose.xlu0.b32.cont [3/16] 0.0, 128
        %2749 = vxpose.xlu0.b32.cont [4/16] 0.0, 128
        %2750 = vxpose.xlu0.b32.cont [5/16] 0.0, 128
        %2751 = vxpose.xlu0.b32.cont [6/16] 0.0, 128
        %2752 = vxpose.xlu0.b32.cont [7/16] 0.0, 128
        %2753 = vxpose.xlu0.b32.cont [8/16] 0.0, 128
        %2754 = vxpose.xlu0.b32.cont [9/16] 0.0, 128
        %2755 = vxpose.xlu0.b32.cont [10/16] 0.0, 128
        %2756 = vxpose.xlu0.b32.cont [11/16] 0.0, 128
        %2757 = vxpose.xlu0.b32.cont [12/16] 0.0, 128
        %2758 = vxpose.xlu0.b32.cont [13/16] 0.0, 128
        %2759 = vxpose.xlu0.b32.cont [14/16] 0.0, 128
        %2760 = vxpose.xlu0.b32.cont [15/16] 0.0, 128
        %2761 = vxpose.xlu0.b32.end [16/16] 0.0, 128
        %v2762 = vpop.trf.xlu0
        %v2763 = vpop.trf.xlu0
        %v2764 = vpop.trf.xlu0
        %v2765 = vpop.trf.xlu0
        %v2766 = vpop.trf.xlu0
        %v2767 = vpop.trf.xlu0
        %v2768 = vpop.trf.xlu0
        %v2769 = vpop.trf.xlu0
        %v2770 = vpop.trf.xlu0
        %v2771 = vpop.trf.xlu0
        %v2772 = vpop.trf.xlu0
        %v2773 = vpop.trf.xlu0
        %v2774 = vpop.trf.xlu0
        %v2775 = vpop.trf.xlu0
        %v2776 = vpop.trf.xlu0
        %v2777 = vpop.trf.xlu0
        %v2778 = vmul.f32 %v2762, 2.0
        %v2779 = vsub.f32 %v2778, %v2067
        %v2780 = vld [vmem:[%s9] sm:$0xff]
        %s2781 = scalar_lea.vmem %s9, 8
        %v2782 = vld [vmem:[%s2781] sm:$0xff]
        %v2784 = vsel %vm1325, %v2657, 0
        %2786 = vmatprep.subr.mxu0 0.0
        %2787 = vmatpush1.msra.mxu0 %v2782
        %2788 = vmatprep.subr.mxu0 0.0
        %2789 = vmatpush1.msra.mxu0 0.0
        %2790 = vmatprep.subr.mxu0 0.0
        %2791 = vmatpush1.msra.mxu0 0.0
        %2792 = vmatprep.subr.mxu0 0.0
        %2793 = vmatpush1.msra.mxu0 0.0
        %2794 = vmatprep.subr.mxu0 0.0
        %2795 = vmatpush1.msra.mxu0 0.0
        %2796 = vmatprep.subr.mxu0 0.0
        %2797 = vmatpush1.msra.mxu0 0.0
        %2798 = vmatprep.subr.mxu0 0.0
        %2799 = vmatpush1.msra.mxu0 0.0
        %2800 = vmatprep.subr.mxu0 0.0
        %2801 = vmatpush1.msra.mxu0 0.0
        %2802 = vmatprep.subr.mxu0 0.0
        %2803 = vmatpush1.msra.mxu0 0.0
        %2804 = vmatprep.subr.mxu0 0.0
        %2805 = vmatpush1.msra.mxu0 0.0
        %2806 = vmatprep.subr.mxu0 0.0
        %2807 = vmatpush1.msra.mxu0 0.0
        %2808 = vmatprep.subr.mxu0 0.0
        %2809 = vmatpush1.msra.mxu0 0.0
        %2810 = vmatprep.subr.mxu0 0.0
        %2811 = vmatpush1.msra.mxu0 0.0
        %2812 = vmatprep.subr.mxu0 0.0
        %2813 = vmatpush1.msra.mxu0 0.0
        %2814 = vmatprep.subr.mxu0 0.0
        %2815 = vmatpush1.msra.mxu0 0.0
        %2816 = vmatprep.subr.mxu0 0.0
        %2817 = vmatpush1.msra.mxu0 0.0
        %2818 = vmatprep.subr.mxu0 0.0
        %2819 = vmatpush1.msra.mxu0 0.0
        %2820 = vmatprep.subr.mxu0 0.0
        %2821 = vmatpush1.msra.mxu0 0.0
        %2822 = vmatprep.subr.mxu0 0.0
        %2823 = vmatpush1.msra.mxu0 0.0
        %2824 = vmatprep.subr.mxu0 0.0
        %2825 = vmatpush1.msra.mxu0 0.0
        %2826 = vmatprep.subr.mxu0 0.0
        %2827 = vmatpush1.msra.mxu0 0.0
        %2828 = vmatprep.subr.mxu0 0.0
        %2829 = vmatpush1.msra.mxu0 0.0
        %2830 = vmatprep.subr.mxu0 0.0
        %2831 = vmatpush1.msra.mxu0 0.0
        %2832 = vmatprep.subr.mxu0 0.0
        %2833 = vmatpush1.msra.mxu0 0.0
        %2834 = vmatprep.subr.mxu0 0.0
        %2835 = vmatpush1.msra.mxu0 0.0
        %2836 = vmatprep.subr.mxu0 0.0
        %2837 = vmatpush1.msra.mxu0 0.0
        %2838 = vmatprep.subr.mxu0 0.0
        %2839 = vmatpush1.msra.mxu0 0.0
        %2840 = vmatprep.subr.mxu0 0.0
        %2841 = vmatpush1.msra.mxu0 0.0
        %2842 = vmatprep.subr.mxu0 0.0
        %2843 = vmatpush1.msra.mxu0 0.0
        %2844 = vmatprep.subr.mxu0 0.0
        %2845 = vmatpush1.msra.mxu0 0.0
        %2846 = vmatprep.subr.mxu0 0.0
        %2847 = vmatpush1.msra.mxu0 0.0
        %2848 = vmatprep.subr.mxu0 0.0
        %2849 = vmatpush1.msra.mxu0 0.0
        %2850 = vmatprep.mubr.f32.mxu0 0.0
        %2851 = vmatmul.mubr.f32.gmra.mrb[0].mxu0 %v2784
        %v2852 = vpop.f32.mrb[0].mxu0
        %v2853 = vadd.f32 0.0, %v2852
        %v2854 = vpop.f32.mrb[0].mxu0
        %2855 = vdwg.mxu0
        %v2857 = vsel %vm1325, %v2067, 0
        %2859 = vmatprep.subr.mxu0 0.0
        %2860 = vmatpush1.msra.mxu0 %v2780
        %2861 = vmatprep.subr.mxu0 0.0
        %2862 = vmatpush1.msra.mxu0 0.0
        %2863 = vmatprep.subr.mxu0 0.0
        %2864 = vmatpush1.msra.mxu0 0.0
        %2865 = vmatprep.subr.mxu0 0.0
        %2866 = vmatpush1.msra.mxu0 0.0
        %2867 = vmatprep.subr.mxu0 0.0
        %2868 = vmatpush1.msra.mxu0 0.0
        %2869 = vmatprep.subr.mxu0 0.0
        %2870 = vmatpush1.msra.mxu0 0.0
        %2871 = vmatprep.subr.mxu0 0.0
        %2872 = vmatpush1.msra.mxu0 0.0
        %2873 = vmatprep.subr.mxu0 0.0
        %2874 = vmatpush1.msra.mxu0 0.0
        %2875 = vmatprep.subr.mxu0 0.0
        %2876 = vmatpush1.msra.mxu0 0.0
        %2877 = vmatprep.subr.mxu0 0.0
        %2878 = vmatpush1.msra.mxu0 0.0
        %2879 = vmatprep.subr.mxu0 0.0
        %2880 = vmatpush1.msra.mxu0 0.0
        %2881 = vmatprep.subr.mxu0 0.0
        %2882 = vmatpush1.msra.mxu0 0.0
        %2883 = vmatprep.subr.mxu0 0.0
        %2884 = vmatpush1.msra.mxu0 0.0
        %2885 = vmatprep.subr.mxu0 0.0
        %2886 = vmatpush1.msra.mxu0 0.0
        %2887 = vmatprep.subr.mxu0 0.0
        %2888 = vmatpush1.msra.mxu0 0.0
        %2889 = vmatprep.subr.mxu0 0.0
        %2890 = vmatpush1.msra.mxu0 0.0
        %2891 = vmatprep.subr.mxu0 0.0
        %2892 = vmatpush1.msra.mxu0 0.0
        %2893 = vmatprep.subr.mxu0 0.0
        %2894 = vmatpush1.msra.mxu0 0.0
        %2895 = vmatprep.subr.mxu0 0.0
        %2896 = vmatpush1.msra.mxu0 0.0
        %2897 = vmatprep.subr.mxu0 0.0
        %2898 = vmatpush1.msra.mxu0 0.0
        %2899 = vmatprep.subr.mxu0 0.0
        %2900 = vmatpush1.msra.mxu0 0.0
        %2901 = vmatprep.subr.mxu0 0.0
        %2902 = vmatpush1.msra.mxu0 0.0
        %2903 = vmatprep.subr.mxu0 0.0
        %2904 = vmatpush1.msra.mxu0 0.0
        %2905 = vmatprep.subr.mxu0 0.0
        %2906 = vmatpush1.msra.mxu0 0.0
        %2907 = vmatprep.subr.mxu0 0.0
        %2908 = vmatpush1.msra.mxu0 0.0
        %2909 = vmatprep.subr.mxu0 0.0
        %2910 = vmatpush1.msra.mxu0 0.0
        %2911 = vmatprep.subr.mxu0 0.0
        %2912 = vmatpush1.msra.mxu0 0.0
        %2913 = vmatprep.subr.mxu0 0.0
        %2914 = vmatpush1.msra.mxu0 0.0
        %2915 = vmatprep.subr.mxu0 0.0
        %2916 = vmatpush1.msra.mxu0 0.0
        %2917 = vmatprep.subr.mxu0 0.0
        %2918 = vmatpush1.msra.mxu0 0.0
        %2919 = vmatprep.subr.mxu0 0.0
        %2920 = vmatpush1.msra.mxu0 0.0
        %2921 = vmatprep.subr.mxu0 0.0
        %2922 = vmatpush1.msra.mxu0 0.0
        %2923 = vmatprep.mubr.f32.mxu0 0.0
        %2924 = vmatmul.mubr.f32.gmra.mrb[0].mxu0 %v2857
        %v2925 = vpop.f32.mrb[0].mxu0
        %v2926 = vadd.f32 %v2853, %v2925
        %v2927 = vpop.f32.mrb[0].mxu0
        %2928 = vdwg.mxu0
        %s2929 = scalar_lea.vmem %s9, 16
        %v2930 = vld [vmem:[%s2929] sm:$0xff]
        %v2932 = vsel %vm1325, %v2779, 0
        %2934 = vmatprep.subr.mxu0 0.0
        %2935 = vmatpush1.msra.mxu0 %v2930
        %2936 = vmatprep.subr.mxu0 0.0
        %2937 = vmatpush1.msra.mxu0 0.0
        %2938 = vmatprep.subr.mxu0 0.0
        %2939 = vmatpush1.msra.mxu0 0.0
        %2940 = vmatprep.subr.mxu0 0.0
        %2941 = vmatpush1.msra.mxu0 0.0
        %2942 = vmatprep.subr.mxu0 0.0
        %2943 = vmatpush1.msra.mxu0 0.0
        %2944 = vmatprep.subr.mxu0 0.0
        %2945 = vmatpush1.msra.mxu0 0.0
        %2946 = vmatprep.subr.mxu0 0.0
        %2947 = vmatpush1.msra.mxu0 0.0
        %2948 = vmatprep.subr.mxu0 0.0
        %2949 = vmatpush1.msra.mxu0 0.0
        %2950 = vmatprep.subr.mxu0 0.0
        %2951 = vmatpush1.msra.mxu0 0.0
        %2952 = vmatprep.subr.mxu0 0.0
        %2953 = vmatpush1.msra.mxu0 0.0
        %2954 = vmatprep.subr.mxu0 0.0
        %2955 = vmatpush1.msra.mxu0 0.0
        %2956 = vmatprep.subr.mxu0 0.0
        %2957 = vmatpush1.msra.mxu0 0.0
        %2958 = vmatprep.subr.mxu0 0.0
        %2959 = vmatpush1.msra.mxu0 0.0
        %2960 = vmatprep.subr.mxu0 0.0
        %2961 = vmatpush1.msra.mxu0 0.0
        %2962 = vmatprep.subr.mxu0 0.0
        %2963 = vmatpush1.msra.mxu0 0.0
        %2964 = vmatprep.subr.mxu0 0.0
        %2965 = vmatpush1.msra.mxu0 0.0
        %2966 = vmatprep.subr.mxu0 0.0
        %2967 = vmatpush1.msra.mxu0 0.0
        %2968 = vmatprep.subr.mxu0 0.0
        %2969 = vmatpush1.msra.mxu0 0.0
        %2970 = vmatprep.subr.mxu0 0.0
        %2971 = vmatpush1.msra.mxu0 0.0
        %2972 = vmatprep.subr.mxu0 0.0
        %2973 = vmatpush1.msra.mxu0 0.0
        %2974 = vmatprep.subr.mxu0 0.0
        %2975 = vmatpush1.msra.mxu0 0.0
        %2976 = vmatprep.subr.mxu0 0.0
        %2977 = vmatpush1.msra.mxu0 0.0
        %2978 = vmatprep.subr.mxu0 0.0
        %2979 = vmatpush1.msra.mxu0 0.0
        %2980 = vmatprep.subr.mxu0 0.0
        %2981 = vmatpush1.msra.mxu0 0.0
        %2982 = vmatprep.subr.mxu0 0.0
        %2983 = vmatpush1.msra.mxu0 0.0
        %2984 = vmatprep.subr.mxu0 0.0
        %2985 = vmatpush1.msra.mxu0 0.0
        %2986 = vmatprep.subr.mxu0 0.0
        %2987 = vmatpush1.msra.mxu0 0.0
        %2988 = vmatprep.subr.mxu0 0.0
        %2989 = vmatpush1.msra.mxu0 0.0
        %2990 = vmatprep.subr.mxu0 0.0
        %2991 = vmatpush1.msra.mxu0 0.0
        %2992 = vmatprep.subr.mxu0 0.0
        %2993 = vmatpush1.msra.mxu0 0.0
        %2994 = vmatprep.subr.mxu0 0.0
        %2995 = vmatpush1.msra.mxu0 0.0
        %2996 = vmatprep.subr.mxu0 0.0
        %2997 = vmatpush1.msra.mxu0 0.0
        %2998 = vmatprep.mubr.f32.mxu0 0.0
        %2999 = vmatmul.mubr.f32.gmra.mrb[0].mxu0 %v2932
        %v3000 = vpop.f32.mrb[0].mxu0
        %v3001 = vadd.f32 0.0, %v3000
        %v3002 = vpop.f32.mrb[0].mxu0
        %3003 = vdwg.mxu0
        %v3004 = vadd.f32 %v2926, %v3001
        %v3005 = vadd.f32 %v2535, %v3004
        %v3006 = vld [vmem:[%s11] sm:$0x1]
        %v3008 = vlaneseq
        %v3009 = vshrl.u32 %v3008, 7
        %v3010 = vsub.s32 0, %v3009
        %v3011 = vrot.slane %v3006, %v3010
        %v3013 = vadd.f32 %v3005, %v3011
        %v3014 = vxor.u32 %v3013, 2147483648
        %v3015 = vmul.f32 %v3014, 1.442695
        %v3016 = vpow.pop %v3015
        %v3017 = vadd.f32 %v3016, 1.0
        %v3018 = vrcp.pop %v3017
        %v3019 = vmul.f32 1.0, %v3018
        %v3020 = vmul.f32 %v3019, %v2067
        %3021 = vxpose.xlu0.b32.start [1/16] %v3020, 128
        %3022 = vxpose.xlu0.b32.cont [2/16] 0.0, 128
        %3023 = vxpose.xlu0.b32.cont [3/16] 0.0, 128
        %3024 = vxpose.xlu0.b32.cont [4/16] 0.0, 128
        %3025 = vxpose.xlu0.b32.cont [5/16] 0.0, 128
        %3026 = vxpose.xlu0.b32.cont [6/16] 0.0, 128
        %3027 = vxpose.xlu0.b32.cont [7/16] 0.0, 128
        %3028 = vxpose.xlu0.b32.cont [8/16] 0.0, 128
        %3029 = vxpose.xlu0.b32.cont [9/16] 0.0, 128
        %3030 = vxpose.xlu0.b32.cont [10/16] 0.0, 128
        %3031 = vxpose.xlu0.b32.cont [11/16] 0.0, 128
        %3032 = vxpose.xlu0.b32.cont [12/16] 0.0, 128
        %3033 = vxpose.xlu0.b32.cont [13/16] 0.0, 128
        %3034 = vxpose.xlu0.b32.cont [14/16] 0.0, 128
        %3035 = vxpose.xlu0.b32.cont [15/16] 0.0, 128
        %3036 = vxpose.xlu0.b32.end [16/16] 0.0, 128
        %v3037 = vpop.trf.xlu0
        %v3038 = vpop.trf.xlu0
        %v3039 = vpop.trf.xlu0
        %v3040 = vpop.trf.xlu0
        %v3041 = vpop.trf.xlu0
        %v3042 = vpop.trf.xlu0
        %v3043 = vpop.trf.xlu0
        %v3044 = vpop.trf.xlu0
        %v3045 = vpop.trf.xlu0
        %v3046 = vpop.trf.xlu0
        %v3047 = vpop.trf.xlu0
        %v3048 = vpop.trf.xlu0
        %v3049 = vpop.trf.xlu0
        %v3050 = vpop.trf.xlu0
        %v3051 = vpop.trf.xlu0
        %v3052 = vpop.trf.xlu0
        %v3054 = vsel %vm626, %v3037, 0
        %3056 = vmatprep.subr.mxu0 0.0
        %3057 = vmatpush1.xpose.msra.mxu0 %v631
        %3058 = vmatprep.subr.mxu0 0.0
        %3059 = vmatpush1.xpose.msra.mxu0 0.0
        %3060 = vmatprep.subr.mxu0 0.0
        %3061 = vmatpush1.xpose.msra.mxu0 0.0
        %3062 = vmatprep.subr.mxu0 0.0
        %3063 = vmatpush1.xpose.msra.mxu0 0.0
        %3064 = vmatprep.subr.mxu0 0.0
        %3065 = vmatpush1.xpose.msra.mxu0 0.0
        %3066 = vmatprep.subr.mxu0 0.0
        %3067 = vmatpush1.xpose.msra.mxu0 0.0
        %3068 = vmatprep.subr.mxu0 0.0
        %3069 = vmatpush1.xpose.msra.mxu0 0.0
        %3070 = vmatprep.subr.mxu0 0.0
        %3071 = vmatpush1.xpose.msra.mxu0 0.0
        %3072 = vmatprep.subr.mxu0 0.0
        %3073 = vmatpush1.xpose.msra.mxu0 0.0
        %3074 = vmatprep.subr.mxu0 0.0
        %3075 = vmatpush1.xpose.msra.mxu0 0.0
        %3076 = vmatprep.subr.mxu0 0.0
        %3077 = vmatpush1.xpose.msra.mxu0 0.0
        %3078 = vmatprep.subr.mxu0 0.0
        %3079 = vmatpush1.xpose.msra.mxu0 0.0
        %3080 = vmatprep.subr.mxu0 0.0
        %3081 = vmatpush1.xpose.msra.mxu0 0.0
        %3082 = vmatprep.subr.mxu0 0.0
        %3083 = vmatpush1.xpose.msra.mxu0 0.0
        %3084 = vmatprep.subr.mxu0 0.0
        %3085 = vmatpush1.xpose.msra.mxu0 0.0
        %3086 = vmatprep.subr.mxu0 0.0
        %3087 = vmatpush1.xpose.msra.mxu0 0.0
        %3088 = vmatprep.subr.mxu0 0.0
        %3089 = vmatpush1.xpose.msra.mxu0 0.0
        %3090 = vmatprep.subr.mxu0 0.0
        %3091 = vmatpush1.xpose.msra.mxu0 0.0
        %3092 = vmatprep.subr.mxu0 0.0
        %3093 = vmatpush1.xpose.msra.mxu0 0.0
        %3094 = vmatprep.subr.mxu0 0.0
        %3095 = vmatpush1.xpose.msra.mxu0 0.0
        %3096 = vmatprep.subr.mxu0 0.0
        %3097 = vmatpush1.xpose.msra.mxu0 0.0
        %3098 = vmatprep.subr.mxu0 0.0
        %3099 = vmatpush1.xpose.msra.mxu0 0.0
        %3100 = vmatprep.subr.mxu0 0.0
        %3101 = vmatpush1.xpose.msra.mxu0 0.0
        %3102 = vmatprep.subr.mxu0 0.0
        %3103 = vmatpush1.xpose.msra.mxu0 0.0
        %3104 = vmatprep.subr.mxu0 0.0
        %3105 = vmatpush1.xpose.msra.mxu0 0.0
        %3106 = vmatprep.subr.mxu0 0.0
        %3107 = vmatpush1.xpose.msra.mxu0 0.0
        %3108 = vmatprep.subr.mxu0 0.0
        %3109 = vmatpush1.xpose.msra.mxu0 0.0
        %3110 = vmatprep.subr.mxu0 0.0
        %3111 = vmatpush1.xpose.msra.mxu0 0.0
        %3112 = vmatprep.subr.mxu0 0.0
        %3113 = vmatpush1.xpose.msra.mxu0 0.0
        %3114 = vmatprep.subr.mxu0 0.0
        %3115 = vmatpush1.xpose.msra.mxu0 0.0
        %3116 = vmatprep.subr.mxu0 0.0
        %3117 = vmatpush1.xpose.msra.mxu0 0.0
        %3118 = vmatprep.subr.mxu0 0.0
        %3119 = vmatpush1.xpose.msra.mxu0 0.0
        %3120 = vmatprep.mubr.f32.mxu0 0.0
        %3121 = vmatmul.mubr.f32.gmra.mrb[0].mxu0 %v3054
        %v3122 = vpop.f32.mrb[0].mxu0
        %v3123 = vadd.f32 0.0, %v3122
        %v3124 = vpop.f32.mrb[0].mxu0
        %3125 = vdwg.mxu0
        %3126 = vxpose.xlu0.b32.start [1/16] %v3123, 128
        %3127 = vxpose.xlu0.b32.cont [2/16] 0.0, 128
        %3128 = vxpose.xlu0.b32.cont [3/16] 0.0, 128
        %3129 = vxpose.xlu0.b32.cont [4/16] 0.0, 128
        %3130 = vxpose.xlu0.b32.cont [5/16] 0.0, 128
        %3131 = vxpose.xlu0.b32.cont [6/16] 0.0, 128
        %3132 = vxpose.xlu0.b32.cont [7/16] 0.0, 128
        %3133 = vxpose.xlu0.b32.cont [8/16] 0.0, 128
        %3134 = vxpose.xlu0.b32.cont [9/16] 0.0, 128
        %3135 = vxpose.xlu0.b32.cont [10/16] 0.0, 128
        %3136 = vxpose.xlu0.b32.cont [11/16] 0.0, 128
        %3137 = vxpose.xlu0.b32.cont [12/16] 0.0, 128
        %3138 = vxpose.xlu0.b32.cont [13/16] 0.0, 128
        %3139 = vxpose.xlu0.b32.cont [14/16] 0.0, 128
        %3140 = vxpose.xlu0.b32.cont [15/16] 0.0, 128
        %3141 = vxpose.xlu0.b32.end [16/16] 0.0, 128
        %v3142 = vpop.trf.xlu0
        %v3143 = vpop.trf.xlu0
        %v3144 = vpop.trf.xlu0
        %v3145 = vpop.trf.xlu0
        %v3146 = vpop.trf.xlu0
        %v3147 = vpop.trf.xlu0
        %v3148 = vpop.trf.xlu0
        %v3149 = vpop.trf.xlu0
        %v3150 = vpop.trf.xlu0
        %v3151 = vpop.trf.xlu0
        %v3152 = vpop.trf.xlu0
        %v3153 = vpop.trf.xlu0
        %v3154 = vpop.trf.xlu0
        %v3155 = vpop.trf.xlu0
        %v3156 = vpop.trf.xlu0
        %v3157 = vpop.trf.xlu0
        %v3159 = vsel %vm626, %v3123, 0
        %3161 = vmatprep.subr.mxu0 0.0
        %3162 = vmatpush1.xpose.msra.mxu0 %v631
        %3163 = vmatprep.subr.mxu0 0.0
        %3164 = vmatpush1.xpose.msra.mxu0 0.0
        %3165 = vmatprep.subr.mxu0 0.0
        %3166 = vmatpush1.xpose.msra.mxu0 0.0
        %3167 = vmatprep.subr.mxu0 0.0
        %3168 = vmatpush1.xpose.msra.mxu0 0.0
        %3169 = vmatprep.subr.mxu0 0.0
        %3170 = vmatpush1.xpose.msra.mxu0 0.0
        %3171 = vmatprep.subr.mxu0 0.0
        %3172 = vmatpush1.xpose.msra.mxu0 0.0
        %3173 = vmatprep.subr.mxu0 0.0
        %3174 = vmatpush1.xpose.msra.mxu0 0.0
        %3175 = vmatprep.subr.mxu0 0.0
        %3176 = vmatpush1.xpose.msra.mxu0 0.0
        %3177 = vmatprep.subr.mxu0 0.0
        %3178 = vmatpush1.xpose.msra.mxu0 0.0
        %3179 = vmatprep.subr.mxu0 0.0
        %3180 = vmatpush1.xpose.msra.mxu0 0.0
        %3181 = vmatprep.subr.mxu0 0.0
        %3182 = vmatpush1.xpose.msra.mxu0 0.0
        %3183 = vmatprep.subr.mxu0 0.0
        %3184 = vmatpush1.xpose.msra.mxu0 0.0
        %3185 = vmatprep.subr.mxu0 0.0
        %3186 = vmatpush1.xpose.msra.mxu0 0.0
        %3187 = vmatprep.subr.mxu0 0.0
        %3188 = vmatpush1.xpose.msra.mxu0 0.0
        %3189 = vmatprep.subr.mxu0 0.0
        %3190 = vmatpush1.xpose.msra.mxu0 0.0
        %3191 = vmatprep.subr.mxu0 0.0
        %3192 = vmatpush1.xpose.msra.mxu0 0.0
        %3193 = vmatprep.subr.mxu0 0.0
        %3194 = vmatpush1.xpose.msra.mxu0 0.0
        %3195 = vmatprep.subr.mxu0 0.0
        %3196 = vmatpush1.xpose.msra.mxu0 0.0
        %3197 = vmatprep.subr.mxu0 0.0
        %3198 = vmatpush1.xpose.msra.mxu0 0.0
        %3199 = vmatprep.subr.mxu0 0.0
        %3200 = vmatpush1.xpose.msra.mxu0 0.0
        %3201 = vmatprep.subr.mxu0 0.0
        %3202 = vmatpush1.xpose.msra.mxu0 0.0
        %3203 = vmatprep.subr.mxu0 0.0
        %3204 = vmatpush1.xpose.msra.mxu0 0.0
        %3205 = vmatprep.subr.mxu0 0.0
        %3206 = vmatpush1.xpose.msra.mxu0 0.0
        %3207 = vmatprep.subr.mxu0 0.0
        %3208 = vmatpush1.xpose.msra.mxu0 0.0
        %3209 = vmatprep.subr.mxu0 0.0
        %3210 = vmatpush1.xpose.msra.mxu0 0.0
        %3211 = vmatprep.subr.mxu0 0.0
        %3212 = vmatpush1.xpose.msra.mxu0 0.0
        %3213 = vmatprep.subr.mxu0 0.0
        %3214 = vmatpush1.xpose.msra.mxu0 0.0
        %3215 = vmatprep.subr.mxu0 0.0
        %3216 = vmatpush1.xpose.msra.mxu0 0.0
        %3217 = vmatprep.subr.mxu0 0.0
        %3218 = vmatpush1.xpose.msra.mxu0 0.0
        %3219 = vmatprep.subr.mxu0 0.0
        %3220 = vmatpush1.xpose.msra.mxu0 0.0
        %3221 = vmatprep.subr.mxu0 0.0
        %3222 = vmatpush1.xpose.msra.mxu0 0.0
        %3223 = vmatprep.subr.mxu0 0.0
        %3224 = vmatpush1.xpose.msra.mxu0 0.0
        %3225 = vmatprep.mubr.f32.mxu0 0.0
        %3226 = vmatmul.mubr.f32.gmra.mrb[0].mxu0 %v3159
        %v3227 = vpop.f32.mrb[0].mxu0
        %v3228 = vadd.f32 0.0, %v3227
        %v3229 = vpop.f32.mrb[0].mxu0
        %3230 = vdwg.mxu0
        %3231 = vxpose.xlu0.b32.start [1/16] %v3228, 128
        %3232 = vxpose.xlu0.b32.cont [2/16] 0.0, 128
        %3233 = vxpose.xlu0.b32.cont [3/16] 0.0, 128
        %3234 = vxpose.xlu0.b32.cont [4/16] 0.0, 128
        %3235 = vxpose.xlu0.b32.cont [5/16] 0.0, 128
        %3236 = vxpose.xlu0.b32.cont [6/16] 0.0, 128
        %3237 = vxpose.xlu0.b32.cont [7/16] 0.0, 128
        %3238 = vxpose.xlu0.b32.cont [8/16] 0.0, 128
        %3239 = vxpose.xlu0.b32.cont [9/16] 0.0, 128
        %3240 = vxpose.xlu0.b32.cont [10/16] 0.0, 128
        %3241 = vxpose.xlu0.b32.cont [11/16] 0.0, 128
        %3242 = vxpose.xlu0.b32.cont [12/16] 0.0, 128
        %3243 = vxpose.xlu0.b32.cont [13/16] 0.0, 128
        %3244 = vxpose.xlu0.b32.cont [14/16] 0.0, 128
        %3245 = vxpose.xlu0.b32.cont [15/16] 0.0, 128
        %3246 = vxpose.xlu0.b32.end [16/16] 0.0, 128
        %v3247 = vpop.trf.xlu0
        %v3248 = vpop.trf.xlu0
        %v3249 = vpop.trf.xlu0
        %v3250 = vpop.trf.xlu0
        %v3251 = vpop.trf.xlu0
        %v3252 = vpop.trf.xlu0
        %v3253 = vpop.trf.xlu0
        %v3254 = vpop.trf.xlu0
        %v3255 = vpop.trf.xlu0
        %v3256 = vpop.trf.xlu0
        %v3257 = vpop.trf.xlu0
        %v3258 = vpop.trf.xlu0
        %v3259 = vpop.trf.xlu0
        %v3260 = vpop.trf.xlu0
        %v3261 = vpop.trf.xlu0
        %v3262 = vpop.trf.xlu0
        %v3263 = vmul.f32 %v3247, 2.0
        %v3264 = vsub.f32 %v3263, %v3020
        %v3265 = vld [vmem:[%s10] sm:$0xff]
        %s3266 = scalar_lea.vmem %s10, 8
        %v3267 = vld [vmem:[%s3266] sm:$0xff]
        %v3269 = vsel %vm1325, %v3142, 0
        %3271 = vmatprep.subr.mxu0 0.0
        %3272 = vmatpush1.msra.mxu0 %v3267
        %3273 = vmatprep.subr.mxu0 0.0
        %3274 = vmatpush1.msra.mxu0 0.0
        %3275 = vmatprep.subr.mxu0 0.0
        %3276 = vmatpush1.msra.mxu0 0.0
        %3277 = vmatprep.subr.mxu0 0.0
        %3278 = vmatpush1.msra.mxu0 0.0
        %3279 = vmatprep.subr.mxu0 0.0
        %3280 = vmatpush1.msra.mxu0 0.0
        %3281 = vmatprep.subr.mxu0 0.0
        %3282 = vmatpush1.msra.mxu0 0.0
        %3283 = vmatprep.subr.mxu0 0.0
        %3284 = vmatpush1.msra.mxu0 0.0
        %3285 = vmatprep.subr.mxu0 0.0
        %3286 = vmatpush1.msra.mxu0 0.0
        %3287 = vmatprep.subr.mxu0 0.0
        %3288 = vmatpush1.msra.mxu0 0.0
        %3289 = vmatprep.subr.mxu0 0.0
        %3290 = vmatpush1.msra.mxu0 0.0
        %3291 = vmatprep.subr.mxu0 0.0
        %3292 = vmatpush1.msra.mxu0 0.0
        %3293 = vmatprep.subr.mxu0 0.0
        %3294 = vmatpush1.msra.mxu0 0.0
        %3295 = vmatprep.subr.mxu0 0.0
        %3296 = vmatpush1.msra.mxu0 0.0
        %3297 = vmatprep.subr.mxu0 0.0
        %3298 = vmatpush1.msra.mxu0 0.0
        %3299 = vmatprep.subr.mxu0 0.0
        %3300 = vmatpush1.msra.mxu0 0.0
        %3301 = vmatprep.subr.mxu0 0.0
        %3302 = vmatpush1.msra.mxu0 0.0
        %3303 = vmatprep.subr.mxu0 0.0
        %3304 = vmatpush1.msra.mxu0 0.0
        %3305 = vmatprep.subr.mxu0 0.0
        %3306 = vmatpush1.msra.mxu0 0.0
        %3307 = vmatprep.subr.mxu0 0.0
        %3308 = vmatpush1.msra.mxu0 0.0
        %3309 = vmatprep.subr.mxu0 0.0
        %3310 = vmatpush1.msra.mxu0 0.0
        %3311 = vmatprep.subr.mxu0 0.0
        %3312 = vmatpush1.msra.mxu0 0.0
        %3313 = vmatprep.subr.mxu0 0.0
        %3314 = vmatpush1.msra.mxu0 0.0
        %3315 = vmatprep.subr.mxu0 0.0
        %3316 = vmatpush1.msra.mxu0 0.0
        %3317 = vmatprep.subr.mxu0 0.0
        %3318 = vmatpush1.msra.mxu0 0.0
        %3319 = vmatprep.subr.mxu0 0.0
        %3320 = vmatpush1.msra.mxu0 0.0
        %3321 = vmatprep.subr.mxu0 0.0
        %3322 = vmatpush1.msra.mxu0 0.0
        %3323 = vmatprep.subr.mxu0 0.0
        %3324 = vmatpush1.msra.mxu0 0.0
        %3325 = vmatprep.subr.mxu0 0.0
        %3326 = vmatpush1.msra.mxu0 0.0
        %3327 = vmatprep.subr.mxu0 0.0
        %3328 = vmatpush1.msra.mxu0 0.0
        %3329 = vmatprep.subr.mxu0 0.0
        %3330 = vmatpush1.msra.mxu0 0.0
        %3331 = vmatprep.subr.mxu0 0.0
        %3332 = vmatpush1.msra.mxu0 0.0
        %3333 = vmatprep.subr.mxu0 0.0
        %3334 = vmatpush1.msra.mxu0 0.0
        %3335 = vmatprep.mubr.f32.mxu0 0.0
        %3336 = vmatmul.mubr.f32.gmra.mrb[0].mxu0 %v3269
        %v3337 = vpop.f32.mrb[0].mxu0
        %v3338 = vadd.f32 0.0, %v3337
        %v3339 = vpop.f32.mrb[0].mxu0
        %3340 = vdwg.mxu0
        %v3342 = vsel %vm1325, %v3020, 0
        %3344 = vmatprep.subr.mxu0 0.0
        %3345 = vmatpush1.msra.mxu0 %v3265
        %3346 = vmatprep.subr.mxu0 0.0
        %3347 = vmatpush1.msra.mxu0 0.0
        %3348 = vmatprep.subr.mxu0 0.0
        %3349 = vmatpush1.msra.mxu0 0.0
        %3350 = vmatprep.subr.mxu0 0.0
        %3351 = vmatpush1.msra.mxu0 0.0
        %3352 = vmatprep.subr.mxu0 0.0
        %3353 = vmatpush1.msra.mxu0 0.0
        %3354 = vmatprep.subr.mxu0 0.0
        %3355 = vmatpush1.msra.mxu0 0.0
        %3356 = vmatprep.subr.mxu0 0.0
        %3357 = vmatpush1.msra.mxu0 0.0
        %3358 = vmatprep.subr.mxu0 0.0
        %3359 = vmatpush1.msra.mxu0 0.0
        %3360 = vmatprep.subr.mxu0 0.0
        %3361 = vmatpush1.msra.mxu0 0.0
        %3362 = vmatprep.subr.mxu0 0.0
        %3363 = vmatpush1.msra.mxu0 0.0
        %3364 = vmatprep.subr.mxu0 0.0
        %3365 = vmatpush1.msra.mxu0 0.0
        %3366 = vmatprep.subr.mxu0 0.0
        %3367 = vmatpush1.msra.mxu0 0.0
        %3368 = vmatprep.subr.mxu0 0.0
        %3369 = vmatpush1.msra.mxu0 0.0
        %3370 = vmatprep.subr.mxu0 0.0
        %3371 = vmatpush1.msra.mxu0 0.0
        %3372 = vmatprep.subr.mxu0 0.0
        %3373 = vmatpush1.msra.mxu0 0.0
        %3374 = vmatprep.subr.mxu0 0.0
        %3375 = vmatpush1.msra.mxu0 0.0
        %3376 = vmatprep.subr.mxu0 0.0
        %3377 = vmatpush1.msra.mxu0 0.0
        %3378 = vmatprep.subr.mxu0 0.0
        %3379 = vmatpush1.msra.mxu0 0.0
        %3380 = vmatprep.subr.mxu0 0.0
        %3381 = vmatpush1.msra.mxu0 0.0
        %3382 = vmatprep.subr.mxu0 0.0
        %3383 = vmatpush1.msra.mxu0 0.0
        %3384 = vmatprep.subr.mxu0 0.0
        %3385 = vmatpush1.msra.mxu0 0.0
        %3386 = vmatprep.subr.mxu0 0.0
        %3387 = vmatpush1.msra.mxu0 0.0
        %3388 = vmatprep.subr.mxu0 0.0
        %3389 = vmatpush1.msra.mxu0 0.0
        %3390 = vmatprep.subr.mxu0 0.0
        %3391 = vmatpush1.msra.mxu0 0.0
        %3392 = vmatprep.subr.mxu0 0.0
        %3393 = vmatpush1.msra.mxu0 0.0
        %3394 = vmatprep.subr.mxu0 0.0
        %3395 = vmatpush1.msra.mxu0 0.0
        %3396 = vmatprep.subr.mxu0 0.0
        %3397 = vmatpush1.msra.mxu0 0.0
        %3398 = vmatprep.subr.mxu0 0.0
        %3399 = vmatpush1.msra.mxu0 0.0
        %3400 = vmatprep.subr.mxu0 0.0
        %3401 = vmatpush1.msra.mxu0 0.0
        %3402 = vmatprep.subr.mxu0 0.0
        %3403 = vmatpush1.msra.mxu0 0.0
        %3404 = vmatprep.subr.mxu0 0.0
        %3405 = vmatpush1.msra.mxu0 0.0
        %3406 = vmatprep.subr.mxu0 0.0
        %3407 = vmatpush1.msra.mxu0 0.0
        %3408 = vmatprep.mubr.f32.mxu0 0.0
        %3409 = vmatmul.mubr.f32.gmra.mrb[0].mxu0 %v3342
        %v3410 = vpop.f32.mrb[0].mxu0
        %v3411 = vadd.f32 %v3338, %v3410
        %v3412 = vpop.f32.mrb[0].mxu0
        %3413 = vdwg.mxu0
        %s3414 = scalar_lea.vmem %s10, 16
        %v3415 = vld [vmem:[%s3414] sm:$0xff]
        %v3417 = vsel %vm1325, %v3264, 0
        %3419 = vmatprep.subr.mxu0 0.0
        %3420 = vmatpush1.msra.mxu0 %v3415
        %3421 = vmatprep.subr.mxu0 0.0
        %3422 = vmatpush1.msra.mxu0 0.0
        %3423 = vmatprep.subr.mxu0 0.0
        %3424 = vmatpush1.msra.mxu0 0.0
        %3425 = vmatprep.subr.mxu0 0.0
        %3426 = vmatpush1.msra.mxu0 0.0
        %3427 = vmatprep.subr.mxu0 0.0
        %3428 = vmatpush1.msra.mxu0 0.0
        %3429 = vmatprep.subr.mxu0 0.0
        %3430 = vmatpush1.msra.mxu0 0.0
        %3431 = vmatprep.subr.mxu0 0.0
        %3432 = vmatpush1.msra.mxu0 0.0
        %3433 = vmatprep.subr.mxu0 0.0
        %3434 = vmatpush1.msra.mxu0 0.0
        %3435 = vmatprep.subr.mxu0 0.0
        %3436 = vmatpush1.msra.mxu0 0.0
        %3437 = vmatprep.subr.mxu0 0.0
        %3438 = vmatpush1.msra.mxu0 0.0
        %3439 = vmatprep.subr.mxu0 0.0
        %3440 = vmatpush1.msra.mxu0 0.0
        %3441 = vmatprep.subr.mxu0 0.0
        %3442 = vmatpush1.msra.mxu0 0.0
        %3443 = vmatprep.subr.mxu0 0.0
        %3444 = vmatpush1.msra.mxu0 0.0
        %3445 = vmatprep.subr.mxu0 0.0
        %3446 = vmatpush1.msra.mxu0 0.0
        %3447 = vmatprep.subr.mxu0 0.0
        %3448 = vmatpush1.msra.mxu0 0.0
        %3449 = vmatprep.subr.mxu0 0.0
        %3450 = vmatpush1.msra.mxu0 0.0
        %3451 = vmatprep.subr.mxu0 0.0
        %3452 = vmatpush1.msra.mxu0 0.0
        %3453 = vmatprep.subr.mxu0 0.0
        %3454 = vmatpush1.msra.mxu0 0.0
        %3455 = vmatprep.subr.mxu0 0.0
        %3456 = vmatpush1.msra.mxu0 0.0
        %3457 = vmatprep.subr.mxu0 0.0
        %3458 = vmatpush1.msra.mxu0 0.0
        %3459 = vmatprep.subr.mxu0 0.0
        %3460 = vmatpush1.msra.mxu0 0.0
        %3461 = vmatprep.subr.mxu0 0.0
        %3462 = vmatpush1.msra.mxu0 0.0
        %3463 = vmatprep.subr.mxu0 0.0
        %3464 = vmatpush1.msra.mxu0 0.0
        %3465 = vmatprep.subr.mxu0 0.0
        %3466 = vmatpush1.msra.mxu0 0.0
        %3467 = vmatprep.subr.mxu0 0.0
        %3468 = vmatpush1.msra.mxu0 0.0
        %3469 = vmatprep.subr.mxu0 0.0
        %3470 = vmatpush1.msra.mxu0 0.0
        %3471 = vmatprep.subr.mxu0 0.0
        %3472 = vmatpush1.msra.mxu0 0.0
        %3473 = vmatprep.subr.mxu0 0.0
        %3474 = vmatpush1.msra.mxu0 0.0
        %3475 = vmatprep.subr.mxu0 0.0
        %3476 = vmatpush1.msra.mxu0 0.0
        %3477 = vmatprep.subr.mxu0 0.0
        %3478 = vmatpush1.msra.mxu0 0.0
        %3479 = vmatprep.subr.mxu0 0.0
        %3480 = vmatpush1.msra.mxu0 0.0
        %3481 = vmatprep.subr.mxu0 0.0
        %3482 = vmatpush1.msra.mxu0 0.0
        %3483 = vmatprep.mubr.f32.mxu0 0.0
        %3484 = vmatmul.mubr.f32.gmra.mrb[0].mxu0 %v3417
        %v3485 = vpop.f32.mrb[0].mxu0
        %v3486 = vadd.f32 0.0, %v3485
        %v3487 = vpop.f32.mrb[0].mxu0
        %3488 = vdwg.mxu0
        %v3489 = vadd.f32 %v3411, %v3486
        %3491 = vrot.lane.b32.xlu0 %v3489, 16
        %v3492 = vpop.permute.xlu0 %3491
        %v3494 = vadd.f32 %v2535, %v3492
        %v3495 = vld [vmem:[%s12] sm:$0x1]
        %v3497 = vlaneseq
        %v3498 = vshrl.u32 %v3497, 7
        %v3499 = vsub.s32 0, %v3498
        %v3500 = vrot.slane %v3495, %v3499
        %3501 = vrot.lane.b32.xlu0 %v3500, 16
        %v3502 = vpop.permute.xlu0 %3501
        %v3504 = vadd.f32 %v3494, %v3502
        %v3505 = vtanh.pop %v3504
        %3506 = vrot.lane.b32.xlu0 %v2067, 8
        %v3507 = vpop.permute.xlu0 %3506
        %v3509 = vmul.f32 %v3019, %v3507
        %v3510 = vsub.f32 1.0, %v3019
        %3512 = vrot.lane.b32.xlu0 %v3505, 120
        %v3513 = vpop.permute.xlu0 %3512
        %v3515 = vmul.f32 %v3510, %v3513
        %v3516 = vadd.f32 %v3509, %v3515
        %3518 = vrot.lane.b32.xlu0 %v3516, 120
        %v3519 = vpop.permute.xlu0 %3518
        %s3521 = scalar_lea.vmem %s582, 4 [#allocation4]
        %3522 = vst.msk [vmem:[%s3521] sm:$0xf] %vm2064, %v3519
        %v3523 = vld [vmem:[%s13] sm:$0xff]
        %v3524 = vld [vmem:[#allocation2] sm:$0x1]
        %v3526 = vlaneseq
        %v3527 = vshrl.u32 %v3526, 7
        %v3528 = vsub.s32 0, %v3527
        %v3529 = vrot.slane %v3524, %v3528
        %v3531 = vsel %vm1325, %v3519, 0
        %3533 = vmatprep.subr.mxu0 0.0
        %3534 = vmatpush1.msra.mxu0 %v3523
        %3535 = vmatprep.subr.mxu0 0.0
        %3536 = vmatpush1.msra.mxu0 0.0
        %3537 = vmatprep.subr.mxu0 0.0
        %3538 = vmatpush1.msra.mxu0 0.0
        %3539 = vmatprep.subr.mxu0 0.0
        %3540 = vmatpush1.msra.mxu0 0.0
        %3541 = vmatprep.subr.mxu0 0.0
        %3542 = vmatpush1.msra.mxu0 0.0
        %3543 = vmatprep.subr.mxu0 0.0
        %3544 = vmatpush1.msra.mxu0 0.0
        %3545 = vmatprep.subr.mxu0 0.0
        %3546 = vmatpush1.msra.mxu0 0.0
        %3547 = vmatprep.subr.mxu0 0.0
        %3548 = vmatpush1.msra.mxu0 0.0
        %3549 = vmatprep.subr.mxu0 0.0
        %3550 = vmatpush1.msra.mxu0 0.0
        %3551 = vmatprep.subr.mxu0 0.0
        %3552 = vmatpush1.msra.mxu0 0.0
        %3553 = vmatprep.subr.mxu0 0.0
        %3554 = vmatpush1.msra.mxu0 0.0
        %3555 = vmatprep.subr.mxu0 0.0
        %3556 = vmatpush1.msra.mxu0 0.0
        %3557 = vmatprep.subr.mxu0 0.0
        %3558 = vmatpush1.msra.mxu0 0.0
        %3559 = vmatprep.subr.mxu0 0.0
        %3560 = vmatpush1.msra.mxu0 0.0
        %3561 = vmatprep.subr.mxu0 0.0
        %3562 = vmatpush1.msra.mxu0 0.0
        %3563 = vmatprep.subr.mxu0 0.0
        %3564 = vmatpush1.msra.mxu0 0.0
        %3565 = vmatprep.subr.mxu0 0.0
        %3566 = vmatpush1.msra.mxu0 0.0
        %3567 = vmatprep.subr.mxu0 0.0
        %3568 = vmatpush1.msra.mxu0 0.0
        %3569 = vmatprep.subr.mxu0 0.0
        %3570 = vmatpush1.msra.mxu0 0.0
        %3571 = vmatprep.subr.mxu0 0.0
        %3572 = vmatpush1.msra.mxu0 0.0
        %3573 = vmatprep.subr.mxu0 0.0
        %3574 = vmatpush1.msra.mxu0 0.0
        %3575 = vmatprep.subr.mxu0 0.0
        %3576 = vmatpush1.msra.mxu0 0.0
        %3577 = vmatprep.subr.mxu0 0.0
        %3578 = vmatpush1.msra.mxu0 0.0
        %3579 = vmatprep.subr.mxu0 0.0
        %3580 = vmatpush1.msra.mxu0 0.0
        %3581 = vmatprep.subr.mxu0 0.0
        %3582 = vmatpush1.msra.mxu0 0.0
        %3583 = vmatprep.subr.mxu0 0.0
        %3584 = vmatpush1.msra.mxu0 0.0
        %3585 = vmatprep.subr.mxu0 0.0
        %3586 = vmatpush1.msra.mxu0 0.0
        %3587 = vmatprep.subr.mxu0 0.0
        %3588 = vmatpush1.msra.mxu0 0.0
        %3589 = vmatprep.subr.mxu0 0.0
        %3590 = vmatpush1.msra.mxu0 0.0
        %3591 = vmatprep.subr.mxu0 0.0
        %3592 = vmatpush1.msra.mxu0 0.0
        %3593 = vmatprep.subr.mxu0 0.0
        %3594 = vmatpush1.msra.mxu0 0.0
        %3595 = vmatprep.subr.mxu0 0.0
        %3596 = vmatpush1.msra.mxu0 0.0
        %3597 = vmatprep.mubr.f32.mxu0 0.0
        %3598 = vmatmul.mubr.f32.gmra.mrb[0].mxu0 %v3531
        %v3599 = vpop.f32.mrb[0].mxu0
        %v3600 = vadd.f32 %v3529, %v3599
        %v3601 = vpop.f32.mrb[0].mxu0
        %3602 = vdwg.mxu0
        %vm3603 = vcmask 3072
        %3604 = vst.msk [vmem:[%s590] sm:$0xf] %vm3603, %v3600
        %p3605 = scmp.lt.s32.totalorder %s30, 1
        %s3606 = scalar_select %p3605, %s30, 1
        %s3607 = smul.addr %s3606, 4
        %s3608 = scalar_lea.vmem %s15, %s3607
        %s3609 = sand.u32 %s389, 1
        %s3610 = sand.u32 %s389, 1
        %s3611 = smul.addr %s3610, 8
        %s3612 = scalar_lea.vmem [#allocation4], %s3611
        // Predicated region
        $region122: #{_lambda_.1} parent=116 // pred_check
          %p3613 = pneg %p373
        $region123: #{_lambda_.1} parent=116 // pred_check_branch
          %3615 = sbr.rel (%p3613) target = $region125
        $region124: #{_lambda_.1} parent=116 // pred_region
          _
        $region125: #{_lambda_.1} parent=116 // pred_fallthru
          _
        // Predicated region
        $region126: #{_lambda_.1} parent=116 // pred_check
          %p3616 = pneg %p399
        $region127: #{_lambda_.1} parent=116 // pred_check_branch
          %3618 = sbr.rel (%p3616) target = $region129
        $region128: #{_lambda_.1} parent=116 // pred_region
          %s3619 = smul.addr %s30, 4
          %s3620 = scalar_lea.vmem %s16, %s3619
          // Predicated region
          $region130: #{_lambda_.1} parent=128 // pred_check
            _
          $region131: #{_lambda_.1} parent=128 // pred_check_branch
            %3622 = sbr.rel (0) target = $region133
          $region132: #{_lambda_.1} parent=128 // pred_region
            // Predicated region
            $region134: #{_lambda_.1} parent=132 // pred_check
              _
            $region135: #{_lambda_.1} parent=132 // pred_check_branch
              %3624 = sbr.rel target = $region137
            $region136: #{_lambda_.1} parent=132 // pred_region
              // Predicated region
              $region149: #{_lambda_.1} parent=136 // pred_check
                _
              $region150: #{_lambda_.1} parent=136 // pred_check_branch
                %3641 = sbr.rel (0) target = $region152
              $region151: #{_lambda_.1} parent=136 // pred_region
                loop: start=0, step=1, limit=1
                $region153: #{_lambda_.1} parent=151 // loop_pre_header
                  _
                $region154: #{_lambda_.1} parent=151 // loop_header
                  %s3643 = sphi 0, %s3647
                  %p3644 = scmp.ge.s32.totalorder %s3643, 1
                  %s3648 = sphi %s3612, %s3612
                  %s3649 = sphi %s3620, %s3620
                $region155: #{_lambda_.1} parent=151 // loop_header_branch
                  %3646 = sbr.rel (%p3644) target = $region159
                $region156: #{_lambda_.1} parent=151 // loop_body
                  _
                $region157: #{_lambda_.1} parent=151 // loop_footer
                  %s3647 = sadd.s32 1, %s3643
                $region158: #{_lambda_.1} parent=151 // loop_footer_branch
                  %3642 = sbr.rel target = $region154
                $region159: #{_lambda_.1} parent=151 // loop_exit
                  _
                loop: start=0, step=1, limit=1
                $region160: #{_lambda_.1} parent=151 // loop_pre_header
                  _
                $region161: #{_lambda_.1} parent=151 // loop_header
                  %s3652 = sphi 0, %s3656
                  %p3653 = scmp.ge.s32.totalorder %s3652, 1
                  %s3657 = sphi %s3612, %s3612
                  %s3658 = sphi %s3620, %s3620
                $region162: #{_lambda_.1} parent=151 // loop_header_branch
                  %3655 = sbr.rel (%p3653) target = $region166
                $region163: #{_lambda_.1} parent=151 // loop_body
                  %v3659 = vld [vmem:[%s3657] sm:$0xf]
                  %3660 = vst [vmem:[%s3658] sm:$0xf] %v3659
                  %v3661 = vld [vmem:[%s3657 + $0x4] sm:$0xf]
                  %3662 = vst [vmem:[%s3658 + $0x8] sm:$0xf] %v3661
                $region164: #{_lambda_.1} parent=151 // loop_footer
                  %s3656 = sadd.s32 1, %s3652
                $region165: #{_lambda_.1} parent=151 // loop_footer_branch
                  %3651 = sbr.rel target = $region161
                $region166: #{_lambda_.1} parent=151 // loop_exit
                  _
              $region152: #{_lambda_.1} parent=136 // pred_fallthru
                _
            $region137: #{_lambda_.1} parent=132 // pred_fallthru
              _
            // Predicated region
            $region138: #{_lambda_.1} parent=132 // pred_check
              _
            $region139: #{_lambda_.1} parent=132 // pred_check_branch
              %3626 = sbr.rel (0) target = $region141
            $region140: #{_lambda_.1} parent=132 // pred_region
              loop: start=0, step=1, limit=1
              $region142: #{_lambda_.1} parent=140 // loop_pre_header
                _
              $region143: #{_lambda_.1} parent=140 // loop_header
                %s3629 = sphi 0, %s3633
                %p3630 = scmp.ge.s32.totalorder %s3629, 1
                %s3634 = sphi %s3612, %s3612
                %s3635 = sphi %s3620, %s3620
              $region144: #{_lambda_.1} parent=140 // loop_header_branch
                %3632 = sbr.rel (%p3630) target = $region148
              $region145: #{_lambda_.1} parent=140 // loop_body
                %v3636 = vld [vmem:[%s3634] sm:$0xf]
                %3637 = vst [vmem:[%s3635] sm:$0xf] %v3636
                %v3638 = vld [vmem:[%s3634 + $0x4] sm:$0xf]
                %3639 = vst [vmem:[%s3635 + $0x8] sm:$0xf] %v3638
              $region146: #{_lambda_.1} parent=140 // loop_footer
                %s3633 = sadd.s32 1, %s3629
              $region147: #{_lambda_.1} parent=140 // loop_footer_branch
                %3628 = sbr.rel target = $region143
              $region148: #{_lambda_.1} parent=140 // loop_exit
                _
            $region141: #{_lambda_.1} parent=132 // pred_fallthru
              _
          $region133: #{_lambda_.1} parent=128 // pred_fallthru
            _
          %3663 = vnop
        $region129: #{_lambda_.1} parent=116 // pred_fallthru
          _
      $region117: #{_lambda_.1} parent=5 // pred_fallthru
        _
      %p3664 = scmp.le.s32.totalorder 2, %s25
      // Predicated region
      $region167: #{_lambda_.1} parent=5 // pred_check
        %p3665 = pneg %p3664
      $region168: #{_lambda_.1} parent=5 // pred_check_branch
        %3667 = sbr.rel (%p3665) target = $region170
      $region169: #{_lambda_.1} parent=5 // pred_region
        %s3668 = ssub.s32 %s25, 2
        // Predicated region
        $region171: #{_lambda_.1} parent=169 // pred_check
          %p3669 = pneg %p379
        $region172: #{_lambda_.1} parent=169 // pred_check_branch
          %3671 = sbr.rel (%p3669) target = $region174
        $region173: #{_lambda_.1} parent=169 // pred_region
          %p3672 = scmp.lt.s32.totalorder %s31, 1
          %s3673 = scalar_select %p3672, %s31, 1
          %s3674 = smul.addr %s3673, 4
          %s3675 = scalar_lea.vmem %s15, %s3674
        $region174: #{_lambda_.1} parent=169 // pred_fallthru
          _
        // Predicated region
        $region175: #{_lambda_.1} parent=169 // pred_check
          %p3676 = pneg %p405
        $region176: #{_lambda_.1} parent=169 // pred_check_branch
          %3678 = sbr.rel (%p3676) target = $region178
        $region177: #{_lambda_.1} parent=169 // pred_region
          %s3679 = sand.u32 %s390, 1
          %s3680 = sand.u32 %s390, 1
          %s3681 = smul.addr %s3680, 8
          %s3682 = scalar_lea.vmem [#allocation4], %s3681
        $region178: #{_lambda_.1} parent=169 // pred_fallthru
          _
      $region170: #{_lambda_.1} parent=5 // pred_fallthru
        _
    $region6: #{_lambda_.1} parent=1 // loop_footer
      %s29 = sadd.s32 1, %s25
    $region7: #{_lambda_.1} parent=1 // loop_footer_branch
      %24 = sbr.rel target = $region3
    $region8: #{_lambda_.1} parent=1 // loop_exit
      _

</llo_original>
